<compile_context>
chip_gen: v5e
topology: v5e:2x2
jax: 0.10.0
libtpu: 0.0.40
codegen_flags: <defaults>
</compile_context>

<pallas_src>
import functools

import jax
import jax.numpy as jnp
from jax.experimental import pallas as pl
from jax.experimental.pallas import tpu as pltpu

EPS = 1e-5
LANE = 128


def _round_up(x, m):
    return (x + m - 1) // m * m


# ----------------------------- shared helpers -------------------------------
def _batchnorm(y, gamma, beta):
    """Training-mode BN per channel, single-pass stats (biased var)."""
    mean = jnp.mean(y, axis=0, keepdims=True)
    var = jnp.mean(y * y, axis=0, keepdims=True) - mean * mean
    return (y - mean) * jax.lax.rsqrt(var + EPS) * gamma + beta


def _im2col(xp, H, W):
    """xp: (B, H+2, W+2, C) padded NHWC -> (B*H*W, 9*C), tap-major."""
    B = xp.shape[0]
    C = xp.shape[-1]
    M = B * H * W
    return jnp.concatenate(
        [xp[:, ky:ky + H, kx:kx + W, :].reshape(M, C)
         for ky in range(3) for kx in range(3)],
        axis=-1)


# --------------------------------- kernel -----------------------------------
def resblock_kernel(cols_ref, w1_ref, g1_ref, b1_ref, w2_ref, g2_ref, b2_ref,
                    *rest, identity_shortcut):
    if identity_shortcut:
        xs_ref, out_ref, mid_ref = rest
    else:
        out_ref, mid_ref = rest

    B, H, W, Co = out_ref.shape          # Co = real Cout (unpadded)
    M = B * H * W
    Cop = w2_ref.shape[1]                # lane-padded Cout (multiple of 128)

    # conv1 (+ fused projection-shortcut conv): one reduced-K matmul, one BN.
    # Conv bias is dropped: a per-channel constant is cancelled exactly by the
    # training-mode BN mean subtraction.
    y = jnp.dot(cols_ref[...], w1_ref[...], preferred_element_type=jnp.float32)
    y = _batchnorm(y, g1_ref[...], b1_ref[...])

    y1 = jnp.maximum(y[:, :Cop], 0.0)                # main path (M, Cop)
    if identity_shortcut:
        ys = xs_ref[...]                             # (M, Co) real channels
    else:
        ys = y[:, Cop:Cop + Co]                      # (M, Co) real channels

    # conv2 input: write y1 into the interior of the padded scratch, zero only
    # the 1-px halo strips (proven lane-dense path; see TODO re value-pad).
    zrow = jnp.zeros((B, 1, W + 2, Cop), jnp.float32)
    zcol = jnp.zeros((B, H, 1, Cop), jnp.float32)
    mid_ref[:, 0:1, :, :] = zrow
    mid_ref[:, H + 1:H + 2, :, :] = zrow
    mid_ref[:, 1:H + 1, 0:1, :] = zcol
    mid_ref[:, 1:H + 1, W + 1:W + 2, :] = zcol
    mid_ref[:, 1:H + 1, 1:W + 1, :] = y1.reshape(B, H, W, Cop)

    # conv2 -> BN2 as a single fused-tap matmul (lane-dense 128-wide taps).
    cols2 = _im2col(mid_ref[...], H, W)              # (M, 9*Cop)
    y2 = jnp.dot(cols2, w2_ref[...], preferred_element_type=jnp.float32)
    y2 = _batchnorm(y2, g2_ref[...], b2_ref[...])

    # Final add + ReLU in real-channel space; store only the real channels.
    out = jnp.maximum(y2[:, :Co] + ys, 0.0)
    out_ref[...] = out.reshape(B, H, W, Co).astype(out_ref.dtype)


# -------------------------------- wrapper ------------------------------------
def _pack_w_reduced_k(w_hwio, kpad, npad):
    """(3,3,ci,co) -> (kpad, npad): tap-major K = 9*ci, zero-padded K and N."""
    ci, co = w_hwio.shape[2], w_hwio.shape[3]
    wf = w_hwio.astype(jnp.float32).reshape(9 * ci, co)
    return jnp.pad(wf, ((0, kpad - 9 * ci), (0, npad - co)))


def _pack_w_padded_cin(w_hwio, cinp, coutp):
    """(3,3,ci,co) -> (9*cinp, coutp): input channels zero-padded to cinp."""
    ci, co = w_hwio.shape[2], w_hwio.shape[3]
    wp = jnp.pad(w_hwio.astype(jnp.float32),
                 ((0, 0), (0, 0), (0, cinp - ci), (0, coutp - co)))
    return wp.reshape(9 * cinp, coutp)


def _pack_c(v, npad):
    """(1, co) per-channel vector -> (1, npad), zero padded."""
    return jnp.pad(v.astype(jnp.float32), ((0, 0), (0, npad - v.shape[1])))


def resblock_forward(x_nchw, params, *, stride=1):
    assert stride == 1, "only stride=1 is implemented"  # TODO(synk): stride>1

    B, Cin, H, W = x_nchw.shape
    Cout = params["w1"].shape[-1]
    identity_shortcut = (stride == 1 and Cin == Cout)

    coutp = _round_up(Cout, LANE)
    k1p = _round_up(9 * Cin, LANE)       # reduced contraction dim for conv1/ws
    M = B * H * W

    # NCHW -> NHWC (f32) and the small, lane-dense im2col block built in XLA:
    # (M, 9*Cin) zero-padded along K to a multiple of 128.  No channel-inflated
    # activation is ever materialized in HBM.
    x_nhwc = jnp.transpose(x_nchw, (0, 2, 3, 1)).astype(jnp.float32)
    xp = jnp.pad(x_nhwc, ((0, 0), (1, 1), (1, 1), (0, 0)))
    cols = _im2col(xp, H, W)
    cols = jnp.pad(cols, ((0, 0), (0, k1p - 9 * Cin)))

    w1p = _pack_w_reduced_k(params["w1"], k1p, coutp)
    if identity_shortcut:
        wcat = w1p
        gcat = _pack_c(params["g1"], coutp)
        bcat = _pack_c(params["be1"], coutp)
    else:
        # Fuse conv1 and the projection-shortcut conv along N (256 lanes):
        # one matmul + one BN covers both paths.
        wsp = _pack_w_reduced_k(params["ws"], k1p, coutp)
        wcat = jnp.concatenate([w1p, wsp], axis=1)
        gcat = jnp.concatenate([_pack_c(params["g1"], coutp),
                                _pack_c(params["gs"], coutp)], axis=1)
        bcat = jnp.concatenate([_pack_c(params["be1"], coutp),
                                _pack_c(params["bes"], coutp)], axis=1)

    w2p = _pack_w_padded_cin(params["w2"], coutp, coutp)
    g2p = _pack_c(params["g2"], coutp)
    b2p = _pack_c(params["be2"], coutp)

    args = [cols, wcat, gcat, bcat, w2p, g2p, b2p]
    if identity_shortcut:
        args.append(x_nhwc.reshape(M, Cin))          # identity shortcut, real C

    vmem = pl.BlockSpec(memory_space=pltpu.MemorySpace.VMEM)
    kernel = functools.partial(resblock_kernel,
                               identity_shortcut=identity_shortcut)

    out_nhwc = pl.pallas_call(
        kernel,
        out_shape=jax.ShapeDtypeStruct((B, H, W, Cout), jnp.float32),
        in_specs=[vmem] * len(args),
        out_specs=vmem,
        scratch_shapes=[pltpu.VMEM((B, H + 2, W + 2, coutp), jnp.float32)],
        # Re-derived budget: inputs ~1.1 MiB + scratch 0.3 MiB + in-kernel
        # values (cols2 dominates, ~2.3 MiB) => ~10 MiB peak.  32 MiB leaves
        # ample headroom everywhere, including v7x's 64 MiB total VMEM.
        compiler_params=pltpu.CompilerParams(vmem_limit_bytes=32 * 1024 * 1024),
    )(*args)

    return jnp.transpose(out_nhwc, (0, 3, 1, 2))     # back to NCHW


# ------------------------- deterministic parameters --------------------------
def make_params(key, cin, cout):
    def conv_init(k, ci, co):
        bound = 1.0 / float(ci * 9) ** 0.5
        kw, kb = jax.random.split(k)
        w = jax.random.uniform(kw, (3, 3, ci, co), jnp.float32, -bound, bound)
        b = jax.random.uniform(kb, (co,), jnp.float32, -bound, bound)
        return w, b

    k1, k2, k3 = jax.random.split(key, 3)
    w1, b1 = conv_init(k1, cin, cout)
    w2, b2 = conv_init(k2, cout, cout)
    ws, bs = conv_init(k3, cin, cout)
    ones = jnp.ones((1, cout), jnp.float32)
    zeros = jnp.zeros((1, cout), jnp.float32)
    return dict(w1=w1, b1=b1, g1=ones, be1=zeros,
                w2=w2, b2=b2, g2=ones, be2=zeros,
                ws=ws, bs=bs, gs=ones, bes=zeros)


# ------------------------------ pure-JAX reference ---------------------------
def _conv_ref(x_nhwc, w_hwio, b):
    y = jax.lax.conv_general_dilated(
        x_nhwc, w_hwio, window_strides=(1, 1), padding="SAME",
        dimension_numbers=("NHWC", "HWIO", "NHWC"))
    return y + b.reshape(1, 1, 1, -1)


def _bn_ref(y, g, be):
    mean = y.mean(axis=(0, 1, 2), keepdims=True)
    var = ((y - mean) ** 2).mean(axis=(0, 1, 2), keepdims=True)
    return (y - mean) * jax.lax.rsqrt(var + EPS) * g.reshape(1, 1, 1, -1) \
        + be.reshape(1, 1, 1, -1)


def resblock_ref(x_nchw, p, *, identity_shortcut):
    """Matches the PyTorch module: identity shortcut iff stride==1 and Cin==Cout."""
    x = jnp.transpose(x_nchw, (0, 2, 3, 1)).astype(jnp.float32)
    y = _bn_ref(_conv_ref(x, p["w1"], p["b1"]), p["g1"], p["be1"])
    y = jnp.maximum(y, 0.0)
    y = _bn_ref(_conv_ref(y, p["w2"], p["b2"]), p["g2"], p["be2"])
    if identity_shortcut:
        s = x
    else:
        s = _bn_ref(_conv_ref(x, p["ws"], p["bs"]), p["gs"], p["bes"])
    out = jnp.maximum(y + s, 0.0)
    return jnp.transpose(out, (0, 3, 1, 2))


# ----------------------------------- main ------------------------------------
if __name__ == "__main__":
    key = jax.random.PRNGKey(0)
    k1, k2, k3, k4 = jax.random.split(key, 4)

    # 1) projection shortcut (Cin != Cout)
    B, Cin, Cout, H, W = 2, 4, 8, 16, 16
    x = jax.random.normal(k1, (B, Cin, H, W), dtype=jnp.float32)   # NCHW input
    params = make_params(k2, Cin, Cout)

    out = jax.block_until_ready(resblock_forward(x, params, stride=1))
    ref = resblock_ref(x, params, identity_shortcut=False)
    assert out.shape == (B, Cout, H, W)
    assert jnp.allclose(out, ref, rtol=1e-3, atol=1e-3), \
        f"projection max abs err {float(jnp.max(jnp.abs(out - ref)))}"

    # 2) identity shortcut (Cin == Cout, stride 1)
    Cin2 = Cout2 = 8
    x2 = jax.random.normal(k3, (B, Cin2, H, W), dtype=jnp.float32)
    params2 = make_params(k4, Cin2, Cout2)

    out2 = jax.block_until_ready(resblock_forward(x2, params2, stride=1))
    ref2 = resblock_ref(x2, params2, identity_shortcut=True)
    assert out2.shape == (B, Cout2, H, W)
    assert jnp.allclose(out2, ref2, rtol=1e-3, atol=1e-3), \
        f"identity max abs err {float(jnp.max(jnp.abs(out2 - ref2)))}"

    print("KERNEL_OK")
</pallas_src>

<mosaic_0001>
module attributes {stable_mosaic.version = 11 : i64} {
  func.func @resblock_kernel(%arg0: memref<512x128xf32, #tpu.memory_space<vmem>>, %arg1: memref<128x256xf32, #tpu.memory_space<vmem>>, %arg2: memref<1x256xf32, #tpu.memory_space<vmem>>, %arg3: memref<1x256xf32, #tpu.memory_space<vmem>>, %arg4: memref<1152x128xf32, #tpu.memory_space<vmem>>, %arg5: memref<1x128xf32, #tpu.memory_space<vmem>>, %arg6: memref<1x128xf32, #tpu.memory_space<vmem>>, %arg7: memref<2x16x16x8xf32, #tpu.memory_space<vmem>>, %arg8: memref<2x18x18x128xf32, #tpu.memory_space<vmem>>) attributes {dimension_semantics = [], scalar_prefetch = 0 : i64, scratch_operands = 1 : i64, tpu.core_type = #tpu.core_type<tc>} {
    %c0 = arith.constant 0 : index
    %c0_0 = arith.constant 0 : index
    %0 = vector.load %arg0[%c0, %c0_0] : memref<512x128xf32, #tpu.memory_space<vmem>>, vector<512x128xf32>
    %c0_1 = arith.constant 0 : index
    %c0_2 = arith.constant 0 : index
    %1 = vector.load %arg1[%c0_1, %c0_2] : memref<128x256xf32, #tpu.memory_space<vmem>>, vector<128x256xf32>
    %cst = arith.constant dense<0.000000e+00> : vector<512x256xf32>
    %2 = tpu.matmul %0, %1, %cst {dimension_numbers = #tpu.dot_dimension_numbers<[1], [0], [0], [1], [0, 0, 1, 1], [], []>} : vector<512x128xf32>, vector<128x256xf32>, vector<512x256xf32> -> vector<512x256xf32>
    %c0_3 = arith.constant 0 : index
    %c0_4 = arith.constant 0 : index
    %3 = vector.load %arg2[%c0_3, %c0_4] : memref<1x256xf32, #tpu.memory_space<vmem>>, vector<1x256xf32>
    %c0_5 = arith.constant 0 : index
    %c0_6 = arith.constant 0 : index
    %4 = vector.load %arg3[%c0_5, %c0_6] : memref<1x256xf32, #tpu.memory_space<vmem>>, vector<1x256xf32>
    %cst_7 = arith.constant dense<0.000000e+00> : vector<256xf32>
    %5 = vector.multi_reduction <add>, %2, %cst_7 [0] : vector<512x256xf32> to vector<256xf32>
    %6 = vector.shape_cast %5 : vector<256xf32> to vector<1x256xf32>
    %cst_8 = arith.constant 5.120000e+02 : f32
    %7 = vector.broadcast %cst_8 : f32 to vector<1x256xf32>
    %8 = arith.divf %6, %7 : vector<1x256xf32>
    %9 = arith.mulf %2, %2 : vector<512x256xf32>
    %cst_9 = arith.constant dense<0.000000e+00> : vector<256xf32>
    %10 = vector.multi_reduction <add>, %9, %cst_9 [0] : vector<512x256xf32> to vector<256xf32>
    %11 = vector.shape_cast %10 : vector<256xf32> to vector<1x256xf32>
    %cst_10 = arith.constant 5.120000e+02 : f32
    %12 = vector.broadcast %cst_10 : f32 to vector<1x256xf32>
    %13 = arith.divf %11, %12 : vector<1x256xf32>
    %14 = arith.mulf %8, %8 : vector<1x256xf32>
    %15 = arith.subf %13, %14 : vector<1x256xf32>
    %16 = vector.broadcast %8 : vector<1x256xf32> to vector<512x256xf32>
    %17 = arith.subf %2, %16 : vector<512x256xf32>
    %cst_11 = arith.constant 9.99999974E-6 : f32
    %18 = vector.broadcast %cst_11 : f32 to vector<1x256xf32>
    %19 = arith.addf %15, %18 : vector<1x256xf32>
    %20 = math.rsqrt %19 : vector<1x256xf32>
    %21 = vector.broadcast %20 : vector<1x256xf32> to vector<512x256xf32>
    %22 = arith.mulf %17, %21 : vector<512x256xf32>
    %23 = vector.broadcast %3 : vector<1x256xf32> to vector<512x256xf32>
    %24 = arith.mulf %22, %23 : vector<512x256xf32>
    %25 = vector.broadcast %4 : vector<1x256xf32> to vector<512x256xf32>
    %26 = arith.addf %24, %25 : vector<512x256xf32>
    %27 = vector.extract_strided_slice %26 {offsets = [0, 0], sizes = [512, 128], strides = [1, 1]} : vector<512x256xf32> to vector<512x128xf32>
    %cst_12 = arith.constant 0.000000e+00 : f32
    %28 = vector.broadcast %cst_12 : f32 to vector<512x128xf32>
    %29 = arith.maximumf %27, %28 : vector<512x128xf32>
    %30 = vector.extract_strided_slice %26 {offsets = [0, 128], sizes = [512, 8], strides = [1, 1]} : vector<512x256xf32> to vector<512x8xf32>
    %cst_13 = arith.constant 0.000000e+00 : f32
    %31 = vector.broadcast %cst_13 : f32 to vector<2x1x18x128xf32>
    %cst_14 = arith.constant 0.000000e+00 : f32
    %32 = vector.broadcast %cst_14 : f32 to vector<2x16x1x128xf32>
    %c0_15 = arith.constant 0 : index
    %c0_16 = arith.constant 0 : index
    %c0_17 = arith.constant 0 : index
    %c0_18 = arith.constant 0 : index
    %33 = vector.load %arg8[%c0_15, %c0_16, %c0_17, %c0_18] : memref<2x18x18x128xf32, #tpu.memory_space<vmem>>, vector<2x1x18x128xf32>
    tpu.vector_store %arg8[%c0_15, %c0_16, %c0_17, %c0_18], %31 {strides = array<i32>} : memref<2x18x18x128xf32, #tpu.memory_space<vmem>>, vector<2x1x18x128xf32>,
    %c0_19 = arith.constant 0 : index
    %c17 = arith.constant 17 : index
    %c0_20 = arith.constant 0 : index
    %c0_21 = arith.constant 0 : index
    %34 = vector.load %arg8[%c0_19, %c17, %c0_20, %c0_21] : memref<2x18x18x128xf32, #tpu.memory_space<vmem>>, vector<2x1x18x128xf32>
    tpu.vector_store %arg8[%c0_19, %c17, %c0_20, %c0_21], %31 {strides = array<i32>} : memref<2x18x18x128xf32, #tpu.memory_space<vmem>>, vector<2x1x18x128xf32>,
    %c0_22 = arith.constant 0 : index
    %c1 = arith.constant 1 : index
    %c0_23 = arith.constant 0 : index
    %c0_24 = arith.constant 0 : index
    %35 = vector.load %arg8[%c0_22, %c1, %c0_23, %c0_24] : memref<2x18x18x128xf32, #tpu.memory_space<vmem>>, vector<2x16x1x128xf32>
    tpu.vector_store %arg8[%c0_22, %c1, %c0_23, %c0_24], %32 {strides = array<i32>} : memref<2x18x18x128xf32, #tpu.memory_space<vmem>>, vector<2x16x1x128xf32>,
    %c0_25 = arith.constant 0 : index
    %c1_26 = arith.constant 1 : index
    %c17_27 = arith.constant 17 : index
    %c0_28 = arith.constant 0 : index
    %36 = vector.load %arg8[%c0_25, %c1_26, %c17_27, %c0_28] : memref<2x18x18x128xf32, #tpu.memory_space<vmem>>, vector<2x16x1x128xf32>
    tpu.vector_store %arg8[%c0_25, %c1_26, %c17_27, %c0_28], %32 {strides = array<i32>} : memref<2x18x18x128xf32, #tpu.memory_space<vmem>>, vector<2x16x1x128xf32>,
    %37 = vector.shape_cast %29 : vector<512x128xf32> to vector<2x16x16x128xf32>
    %c0_29 = arith.constant 0 : index
    %c1_30 = arith.constant 1 : index
    %c1_31 = arith.constant 1 : index
    %c0_32 = arith.constant 0 : index
    %38 = vector.load %arg8[%c0_29, %c1_30, %c1_31, %c0_32] : memref<2x18x18x128xf32, #tpu.memory_space<vmem>>, vector<2x16x16x128xf32>
    tpu.vector_store %arg8[%c0_29, %c1_30, %c1_31, %c0_32], %37 {strides = array<i32>} : memref<2x18x18x128xf32, #tpu.memory_space<vmem>>, vector<2x16x16x128xf32>,
    %c0_33 = arith.constant 0 : index
    %c0_34 = arith.constant 0 : index
    %c0_35 = arith.constant 0 : index
    %c0_36 = arith.constant 0 : index
    %39 = vector.load %arg8[%c0_33, %c0_34, %c0_35, %c0_36] : memref<2x18x18x128xf32, #tpu.memory_space<vmem>>, vector<2x18x18x128xf32>
    %40 = vector.extract_strided_slice %39 {offsets = [0, 0, 0, 0], sizes = [2, 16, 16, 128], strides = [1, 1, 1, 1]} : vector<2x18x18x128xf32> to vector<2x16x16x128xf32>
    %41 = vector.shape_cast %40 : vector<2x16x16x128xf32> to vector<512x128xf32>
    %42 = vector.extract_strided_slice %39 {offsets = [0, 0, 1, 0], sizes = [2, 16, 16, 128], strides = [1, 1, 1, 1]} : vector<2x18x18x128xf32> to vector<2x16x16x128xf32>
    %43 = vector.shape_cast %42 : vector<2x16x16x128xf32> to vector<512x128xf32>
    %44 = vector.extract_strided_slice %39 {offsets = [0, 0, 2, 0], sizes = [2, 16, 16, 128], strides = [1, 1, 1, 1]} : vector<2x18x18x128xf32> to vector<2x16x16x128xf32>
    %45 = vector.shape_cast %44 : vector<2x16x16x128xf32> to vector<512x128xf32>
    %46 = vector.extract_strided_slice %39 {offsets = [0, 1, 0, 0], sizes = [2, 16, 16, 128], strides = [1, 1, 1, 1]} : vector<2x18x18x128xf32> to vector<2x16x16x128xf32>
    %47 = vector.shape_cast %46 : vector<2x16x16x128xf32> to vector<512x128xf32>
    %48 = vector.extract_strided_slice %39 {offsets = [0, 1, 1, 0], sizes = [2, 16, 16, 128], strides = [1, 1, 1, 1]} : vector<2x18x18x128xf32> to vector<2x16x16x128xf32>
    %49 = vector.shape_cast %48 : vector<2x16x16x128xf32> to vector<512x128xf32>
    %50 = vector.extract_strided_slice %39 {offsets = [0, 1, 2, 0], sizes = [2, 16, 16, 128], strides = [1, 1, 1, 1]} : vector<2x18x18x128xf32> to vector<2x16x16x128xf32>
    %51 = vector.shape_cast %50 : vector<2x16x16x128xf32> to vector<512x128xf32>
    %52 = vector.extract_strided_slice %39 {offsets = [0, 2, 0, 0], sizes = [2, 16, 16, 128], strides = [1, 1, 1, 1]} : vector<2x18x18x128xf32> to vector<2x16x16x128xf32>
    %53 = vector.shape_cast %52 : vector<2x16x16x128xf32> to vector<512x128xf32>
    %54 = vector.extract_strided_slice %39 {offsets = [0, 2, 1, 0], sizes = [2, 16, 16, 128], strides = [1, 1, 1, 1]} : vector<2x18x18x128xf32> to vector<2x16x16x128xf32>
    %55 = vector.shape_cast %54 : vector<2x16x16x128xf32> to vector<512x128xf32>
    %56 = vector.extract_strided_slice %39 {offsets = [0, 2, 2, 0], sizes = [2, 16, 16, 128], strides = [1, 1, 1, 1]} : vector<2x18x18x128xf32> to vector<2x16x16x128xf32>
    %57 = vector.shape_cast %56 : vector<2x16x16x128xf32> to vector<512x128xf32>
    %58 = tpu.concatenate %41, %43, %45, %47, %49, %51, %53, %55, %57 in 1 : vector<512x128xf32>, vector<512x128xf32>, vector<512x128xf32>, vector<512x128xf32>, vector<512x128xf32>, vector<512x128xf32>, vector<512x128xf32>, vector<512x128xf32>, vector<512x128xf32> -> vector<512x1152xf32>
    %c0_37 = arith.constant 0 : index
    %c0_38 = arith.constant 0 : index
    %59 = vector.load %arg4[%c0_37, %c0_38] : memref<1152x128xf32, #tpu.memory_space<vmem>>, vector<1152x128xf32>
    %cst_39 = arith.constant dense<0.000000e+00> : vector<512x128xf32>
    %60 = tpu.matmul %58, %59, %cst_39 {dimension_numbers = #tpu.dot_dimension_numbers<[1], [0], [0], [1], [0, 0, 1, 1], [], []>} : vector<512x1152xf32>, vector<1152x128xf32>, vector<512x128xf32> -> vector<512x128xf32>
    %c0_40 = arith.constant 0 : index
    %c0_41 = arith.constant 0 : index
    %61 = vector.load %arg5[%c0_40, %c0_41] : memref<1x128xf32, #tpu.memory_space<vmem>>, vector<1x128xf32>
    %c0_42 = arith.constant 0 : index
    %c0_43 = arith.constant 0 : index
    %62 = vector.load %arg6[%c0_42, %c0_43] : memref<1x128xf32, #tpu.memory_space<vmem>>, vector<1x128xf32>
    %cst_44 = arith.constant dense<0.000000e+00> : vector<128xf32>
    %63 = vector.multi_reduction <add>, %60, %cst_44 [0] : vector<512x128xf32> to vector<128xf32>
    %64 = vector.shape_cast %63 : vector<128xf32> to vector<1x128xf32>
    %cst_45 = arith.constant 5.120000e+02 : f32
    %65 = vector.broadcast %cst_45 : f32 to vector<1x128xf32>
    %66 = arith.divf %64, %65 : vector<1x128xf32>
    %67 = arith.mulf %60, %60 : vector<512x128xf32>
    %cst_46 = arith.constant dense<0.000000e+00> : vector<128xf32>
    %68 = vector.multi_reduction <add>, %67, %cst_46 [0] : vector<512x128xf32> to vector<128xf32>
    %69 = vector.shape_cast %68 : vector<128xf32> to vector<1x128xf32>
    %cst_47 = arith.constant 5.120000e+02 : f32
    %70 = vector.broadcast %cst_47 : f32 to vector<1x128xf32>
    %71 = arith.divf %69, %70 : vector<1x128xf32>
    %72 = arith.mulf %66, %66 : vector<1x128xf32>
    %73 = arith.subf %71, %72 : vector<1x128xf32>
    %74 = vector.broadcast %66 : vector<1x128xf32> to vector<512x128xf32>
    %75 = arith.subf %60, %74 : vector<512x128xf32>
    %cst_48 = arith.constant 9.99999974E-6 : f32
    %76 = vector.broadcast %cst_48 : f32 to vector<1x128xf32>
    %77 = arith.addf %73, %76 : vector<1x128xf32>
    %78 = math.rsqrt %77 : vector<1x128xf32>
    %79 = vector.broadcast %78 : vector<1x128xf32> to vector<512x128xf32>
    %80 = arith.mulf %75, %79 : vector<512x128xf32>
    %81 = vector.broadcast %61 : vector<1x128xf32> to vector<512x128xf32>
    %82 = arith.mulf %80, %81 : vector<512x128xf32>
    %83 = vector.broadcast %62 : vector<1x128xf32> to vector<512x128xf32>
    %84 = arith.addf %82, %83 : vector<512x128xf32>
    %85 = vector.extract_strided_slice %84 {offsets = [0, 0], sizes = [512, 8], strides = [1, 1]} : vector<512x128xf32> to vector<512x8xf32>
    %86 = arith.addf %85, %30 : vector<512x8xf32>
    %cst_49 = arith.constant 0.000000e+00 : f32
    %87 = vector.broadcast %cst_49 : f32 to vector<512x8xf32>
    %88 = arith.maximumf %86, %87 : vector<512x8xf32>
    %89 = vector.shape_cast %88 : vector<512x8xf32> to vector<2x16x16x8xf32>
    %c0_50 = arith.constant 0 : index
    %c0_51 = arith.constant 0 : index
    %c0_52 = arith.constant 0 : index
    %c0_53 = arith.constant 0 : index
    %90 = vector.load %arg7[%c0_50, %c0_51, %c0_52, %c0_53] : memref<2x16x16x8xf32, #tpu.memory_space<vmem>>, vector<2x16x16x8xf32>
    tpu.vector_store %arg7[%c0_50, %c0_51, %c0_52, %c0_53], %89 {strides = array<i32>} : memref<2x16x16x8xf32, #tpu.memory_space<vmem>>, vector<2x16x16x8xf32>,
    return
  }
}

</mosaic_0001>

<llo_original>
// kernel: tpu_custom_call.1
$region0: #{tpu_custom_call.1}
  #allocation0 [shape = 'u32[]', space=smem, size = 0x4, offset = 0x4, fixed_abs, tag = 'smem constant byte address 0x4 - core index']
  #allocation1 [shape = 'u32[72,128]{1,0:T(1,128)}', space=vmem, size = 0x9000, scoped, tag = 'internal scratch']
  #allocation2 [shape = 'f32[2,18,18,128]{3,2,1,0:T(8,128)}', space=vmem, size = 0x6c000, scoped, tag = 'scratch operand']
  %s0 = inlined_call_operand.hbm [shape: f32[512,128], index: 0, kind: input, shape index: {}]
  %s1 = inlined_call_operand.hbm [shape: f32[128,256], index: 1, kind: input, shape index: {}]
  %s2 = inlined_call_operand.hbm [shape: f32[1,256], index: 2, kind: input, shape index: {}]
  %s3 = inlined_call_operand.vmem [shape: f32[1,256], index: 3, kind: input, shape index: {}]
  %s4 = inlined_call_operand.hbm [shape: f32[1152,128], index: 4, kind: input, shape index: {}]
  %s5 = inlined_call_operand.vmem [shape: f32[1,128], index: 5, kind: input, shape index: {}]
  %s6 = inlined_call_operand.vmem [shape: f32[1,128], index: 6, kind: input, shape index: {}]
  %s7 = inlined_call_operand.vmem [shape: f32[2,16,16,8], index: 7, kind: output, shape index: {}]
  %s8 = sld [smem:[#allocation0]]
  $region54: #{tpu_custom_call.1} parent=0
    _
  %s10 = ssub.s32 1, %s8
  %s11 = scalar_select 0, %s10, %s8
  $region1: #{tpu_custom_call.1} parent=0
    #allocation3 [shape = 'u8[262144]{0}', space=vmem, size = 0x40000, scoped, tag = 'input window, operand 0, single buffered']
    #allocation4 [shape = 's32[1]{0}', space=sflag, size = 0x4, scoped, tag = 'scoped memory for tpu_custom_call.1']
    #allocation5 [shape = 'u8[131072]{0}', space=vmem, size = 0x20000, scoped, tag = 'input window, operand 1, single buffered']
    #allocation6 [shape = 's32[1]{0}', space=sflag, size = 0x4, scoped, tag = 'scoped memory for tpu_custom_call.1']
    #allocation7 [shape = 'u8[1024]{0}', space=vmem, size = 0x400, scoped, tag = 'input window, operand 2, single buffered']
    #allocation8 [shape = 'u8[589824]{0}', space=vmem, size = 0x90000, scoped, tag = 'input window, operand 4, single buffered']
    #allocation9 [shape = 's32[1]{0}', space=sflag, size = 0x4, scoped, tag = 'scoped memory for tpu_custom_call.1']
    %12 = vsyncpa [#allocation4], 0
    %13 = vsyncpa [#allocation6], 0
    %14 = vsyncpa [#allocation9], 0
    // Predicated region
    $region2: #{tpu_custom_call.1} parent=1 // pred_check
      _
    $region3: #{tpu_custom_call.1} parent=1 // pred_check_branch
      %16 = sbr.rel (0) target = $region5
    $region4: #{tpu_custom_call.1} parent=1 // pred_region
      %18 = vsyncadd [#allocation4], 0
      %s19 = sshll.u32 %s0, 4
      %s20 = int_to_ptr.hbm [resolvable:$true] %s19
      %s21 = sshll.u32 [#allocation3], 4
      %s22 = int_to_ptr.vmem [resolvable:$true] %s21
      %27 = dma.hbm_to_vmem [thread:$0]  %s20, 8192, %s22, [#allocation4], 128, 128, 8
    $region5: #{tpu_custom_call.1} parent=1 // pred_fallthru
      _
    // Predicated region
    $region6: #{tpu_custom_call.1} parent=1 // pred_check
      _
    $region7: #{tpu_custom_call.1} parent=1 // pred_check_branch
      %29 = sbr.rel (0) target = $region9
    $region8: #{tpu_custom_call.1} parent=1 // pred_region
      %31 = vsyncadd [#allocation6], 0
      %s32 = sshll.u32 %s1, 4
      %s33 = int_to_ptr.hbm [resolvable:$true] %s32
      %s34 = sshll.u32 [#allocation5], 4
      %s35 = int_to_ptr.vmem [resolvable:$true] %s34
      %40 = dma.hbm_to_vmem [thread:$0]  %s33, 4096, %s35, [#allocation6], 256, 256, 16
    $region9: #{tpu_custom_call.1} parent=1 // pred_fallthru
      _
    // Predicated region
    $region10: #{tpu_custom_call.1} parent=1 // pred_check
      _
    $region11: #{tpu_custom_call.1} parent=1 // pred_check_branch
      %42 = sbr.rel (0) target = $region13
    $region12: #{tpu_custom_call.1} parent=1 // pred_region
      %44 = vsyncadd [#allocation6], 0
      %s46 = sshll.u32 %s2, 4
      %s47 = int_to_ptr.hbm [resolvable:$true] %s46
      %s48 = sshll.u32 [#allocation7], 4
      %s49 = int_to_ptr.vmem [resolvable:$true] %s48
      %51 = dma.hbm_to_vmem [thread:$0]  %s47, 32, %s49, [#allocation6]
    $region13: #{tpu_custom_call.1} parent=1 // pred_fallthru
      _
    // Predicated region
    $region14: #{tpu_custom_call.1} parent=1 // pred_check
      _
    $region15: #{tpu_custom_call.1} parent=1 // pred_check_branch
      %53 = sbr.rel (0) target = $region17
    $region16: #{tpu_custom_call.1} parent=1 // pred_region
      _
    $region17: #{tpu_custom_call.1} parent=1 // pred_fallthru
      _
    // Predicated region
    $region18: #{tpu_custom_call.1} parent=1 // pred_check
      _
    $region19: #{tpu_custom_call.1} parent=1 // pred_check_branch
      %55 = sbr.rel (0) target = $region21
    $region20: #{tpu_custom_call.1} parent=1 // pred_region
      %57 = vsyncadd [#allocation9], 0
      %s58 = sshll.u32 %s4, 4
      %s59 = int_to_ptr.hbm [resolvable:$true] %s58
      %s60 = sshll.u32 [#allocation8], 4
      %s61 = int_to_ptr.vmem [resolvable:$true] %s60
      %66 = dma.hbm_to_vmem [thread:$0]  %s59, 18432, %s61, [#allocation9], 128, 128, 8
    $region21: #{tpu_custom_call.1} parent=1 // pred_fallthru
      _
    // Predicated region
    $region22: #{tpu_custom_call.1} parent=1 // pred_check
      _
    $region23: #{tpu_custom_call.1} parent=1 // pred_check_branch
      %68 = sbr.rel (0) target = $region25
    $region24: #{tpu_custom_call.1} parent=1 // pred_region
      _
    $region25: #{tpu_custom_call.1} parent=1 // pred_fallthru
      _
    // Predicated region
    $region26: #{tpu_custom_call.1} parent=1 // pred_check
      _
    $region27: #{tpu_custom_call.1} parent=1 // pred_check_branch
      %70 = sbr.rel (0) target = $region29
    $region28: #{tpu_custom_call.1} parent=1 // pred_region
      _
    $region29: #{tpu_custom_call.1} parent=1 // pred_fallthru
      _
    // Predicated region
    $region30: #{tpu_custom_call.1} parent=1 // pred_check
      _
    $region31: #{tpu_custom_call.1} parent=1 // pred_check_branch
      %72 = sbr.rel (0) target = $region33
    $region32: #{tpu_custom_call.1} parent=1 // pred_region
      %74 = dma.done [#allocation4], 8192
    $region33: #{tpu_custom_call.1} parent=1 // pred_fallthru
      _
    // Predicated region
    $region34: #{tpu_custom_call.1} parent=1 // pred_check
      _
    $region35: #{tpu_custom_call.1} parent=1 // pred_check_branch
      %76 = sbr.rel (0) target = $region37
    $region36: #{tpu_custom_call.1} parent=1 // pred_region
      %78 = dma.done [#allocation6], 4096
    $region37: #{tpu_custom_call.1} parent=1 // pred_fallthru
      _
    // Predicated region
    $region38: #{tpu_custom_call.1} parent=1 // pred_check
      _
    $region39: #{tpu_custom_call.1} parent=1 // pred_check_branch
      %80 = sbr.rel (0) target = $region41
    $region40: #{tpu_custom_call.1} parent=1 // pred_region
      %82 = dma.done [#allocation6], 32
    $region41: #{tpu_custom_call.1} parent=1 // pred_fallthru
      _
    // Predicated region
    $region42: #{tpu_custom_call.1} parent=1 // pred_check
      _
    $region43: #{tpu_custom_call.1} parent=1 // pred_check_branch
      %84 = sbr.rel (0) target = $region45
    $region44: #{tpu_custom_call.1} parent=1 // pred_region
      %86 = dma.done [#allocation9], 18432
    $region45: #{tpu_custom_call.1} parent=1 // pred_fallthru
      _
    %v87 = vld [vmem:[#allocation3] sm:$0xff]
    %v88 = vld [vmem:[#allocation3 + $0x8] sm:$0xff]
    %v89 = vld [vmem:[#allocation3 + $0x10] sm:$0xff]
    %v90 = vld [vmem:[#allocation3 + $0x18] sm:$0xff]
    %v91 = vld [vmem:[#allocation3 + $0x20] sm:$0xff]
    %v92 = vld [vmem:[#allocation3 + $0x28] sm:$0xff]
    %v93 = vld [vmem:[#allocation3 + $0x30] sm:$0xff]
    %v94 = vld [vmem:[#allocation3 + $0x38] sm:$0xff]
    %v95 = vld [vmem:[#allocation3 + $0x40] sm:$0xff]
    %v96 = vld [vmem:[#allocation3 + $0x48] sm:$0xff]
    %v97 = vld [vmem:[#allocation3 + $0x50] sm:$0xff]
    %v98 = vld [vmem:[#allocation3 + $0x58] sm:$0xff]
    %v99 = vld [vmem:[#allocation3 + $0x60] sm:$0xff]
    %v100 = vld [vmem:[#allocation3 + $0x68] sm:$0xff]
    %v101 = vld [vmem:[#allocation3 + $0x70] sm:$0xff]
    %v102 = vld [vmem:[#allocation3 + $0x78] sm:$0xff]
    %v103 = vld [vmem:[#allocation3 + $0x80] sm:$0xff]
    %v104 = vld [vmem:[#allocation3 + $0x88] sm:$0xff]
    %v105 = vld [vmem:[#allocation3 + $0x90] sm:$0xff]
    %v106 = vld [vmem:[#allocation3 + $0x98] sm:$0xff]
    %v107 = vld [vmem:[#allocation3 + $0xa0] sm:$0xff]
    %v108 = vld [vmem:[#allocation3 + $0xa8] sm:$0xff]
    %v109 = vld [vmem:[#allocation3 + $0xb0] sm:$0xff]
    %v110 = vld [vmem:[#allocation3 + $0xb8] sm:$0xff]
    %v111 = vld [vmem:[#allocation3 + $0xc0] sm:$0xff]
    %v112 = vld [vmem:[#allocation3 + $0xc8] sm:$0xff]
    %v113 = vld [vmem:[#allocation3 + $0xd0] sm:$0xff]
    %v114 = vld [vmem:[#allocation3 + $0xd8] sm:$0xff]
    %v115 = vld [vmem:[#allocation3 + $0xe0] sm:$0xff]
    %v116 = vld [vmem:[#allocation3 + $0xe8] sm:$0xff]
    %v117 = vld [vmem:[#allocation3 + $0xf0] sm:$0xff]
    %v118 = vld [vmem:[#allocation3 + $0xf8] sm:$0xff]
    %v119 = vld [vmem:[#allocation3 + $0x100] sm:$0xff]
    %v120 = vld [vmem:[#allocation3 + $0x108] sm:$0xff]
    %v121 = vld [vmem:[#allocation3 + $0x110] sm:$0xff]
    %v122 = vld [vmem:[#allocation3 + $0x118] sm:$0xff]
    %v123 = vld [vmem:[#allocation3 + $0x120] sm:$0xff]
    %v124 = vld [vmem:[#allocation3 + $0x128] sm:$0xff]
    %v125 = vld [vmem:[#allocation3 + $0x130] sm:$0xff]
    %v126 = vld [vmem:[#allocation3 + $0x138] sm:$0xff]
    %v127 = vld [vmem:[#allocation3 + $0x140] sm:$0xff]
    %v128 = vld [vmem:[#allocation3 + $0x148] sm:$0xff]
    %v129 = vld [vmem:[#allocation3 + $0x150] sm:$0xff]
    %v130 = vld [vmem:[#allocation3 + $0x158] sm:$0xff]
    %v131 = vld [vmem:[#allocation3 + $0x160] sm:$0xff]
    %v132 = vld [vmem:[#allocation3 + $0x168] sm:$0xff]
    %v133 = vld [vmem:[#allocation3 + $0x170] sm:$0xff]
    %v134 = vld [vmem:[#allocation3 + $0x178] sm:$0xff]
    %v135 = vld [vmem:[#allocation3 + $0x180] sm:$0xff]
    %v136 = vld [vmem:[#allocation3 + $0x188] sm:$0xff]
    %v137 = vld [vmem:[#allocation3 + $0x190] sm:$0xff]
    %v138 = vld [vmem:[#allocation3 + $0x198] sm:$0xff]
    %v139 = vld [vmem:[#allocation3 + $0x1a0] sm:$0xff]
    %v140 = vld [vmem:[#allocation3 + $0x1a8] sm:$0xff]
    %v141 = vld [vmem:[#allocation3 + $0x1b0] sm:$0xff]
    %v142 = vld [vmem:[#allocation3 + $0x1b8] sm:$0xff]
    %v143 = vld [vmem:[#allocation3 + $0x1c0] sm:$0xff]
    %v144 = vld [vmem:[#allocation3 + $0x1c8] sm:$0xff]
    %v145 = vld [vmem:[#allocation3 + $0x1d0] sm:$0xff]
    %v146 = vld [vmem:[#allocation3 + $0x1d8] sm:$0xff]
    %v147 = vld [vmem:[#allocation3 + $0x1e0] sm:$0xff]
    %v148 = vld [vmem:[#allocation3 + $0x1e8] sm:$0xff]
    %v149 = vld [vmem:[#allocation3 + $0x1f0] sm:$0xff]
    %v150 = vld [vmem:[#allocation3 + $0x1f8] sm:$0xff]
    %v151 = vld [vmem:[#allocation5] sm:$0xff]
    %v152 = vld [vmem:[#allocation5 + $0x8] sm:$0xff]
    %v153 = vld [vmem:[#allocation5 + $0x10] sm:$0xff]
    %v154 = vld [vmem:[#allocation5 + $0x18] sm:$0xff]
    %v155 = vld [vmem:[#allocation5 + $0x20] sm:$0xff]
    %v156 = vld [vmem:[#allocation5 + $0x28] sm:$0xff]
    %v157 = vld [vmem:[#allocation5 + $0x30] sm:$0xff]
    %v158 = vld [vmem:[#allocation5 + $0x38] sm:$0xff]
    %v159 = vld [vmem:[#allocation5 + $0x40] sm:$0xff]
    %v160 = vld [vmem:[#allocation5 + $0x48] sm:$0xff]
    %v161 = vld [vmem:[#allocation5 + $0x50] sm:$0xff]
    %v162 = vld [vmem:[#allocation5 + $0x58] sm:$0xff]
    %v163 = vld [vmem:[#allocation5 + $0x60] sm:$0xff]
    %v164 = vld [vmem:[#allocation5 + $0x68] sm:$0xff]
    %v165 = vld [vmem:[#allocation5 + $0x70] sm:$0xff]
    %v166 = vld [vmem:[#allocation5 + $0x78] sm:$0xff]
    %v167 = vld [vmem:[#allocation5 + $0x80] sm:$0xff]
    %v168 = vld [vmem:[#allocation5 + $0x88] sm:$0xff]
    %v169 = vld [vmem:[#allocation5 + $0x90] sm:$0xff]
    %v170 = vld [vmem:[#allocation5 + $0x98] sm:$0xff]
    %v171 = vld [vmem:[#allocation5 + $0xa0] sm:$0xff]
    %v172 = vld [vmem:[#allocation5 + $0xa8] sm:$0xff]
    %v173 = vld [vmem:[#allocation5 + $0xb0] sm:$0xff]
    %v174 = vld [vmem:[#allocation5 + $0xb8] sm:$0xff]
    %v175 = vld [vmem:[#allocation5 + $0xc0] sm:$0xff]
    %v176 = vld [vmem:[#allocation5 + $0xc8] sm:$0xff]
    %v177 = vld [vmem:[#allocation5 + $0xd0] sm:$0xff]
    %v178 = vld [vmem:[#allocation5 + $0xd8] sm:$0xff]
    %v179 = vld [vmem:[#allocation5 + $0xe0] sm:$0xff]
    %v180 = vld [vmem:[#allocation5 + $0xe8] sm:$0xff]
    %v181 = vld [vmem:[#allocation5 + $0xf0] sm:$0xff]
    %v182 = vld [vmem:[#allocation5 + $0xf8] sm:$0xff]
    %183 = vmatpush.msra.mxu0 %v181
    %184 = vmatpush.msra.mxu0 %v179
    %185 = vmatpush.msra.mxu0 %v177
    %186 = vmatpush.msra.mxu0 %v175
    %187 = vmatpush.msra.mxu0 %v173
    %188 = vmatpush.msra.mxu0 %v171
    %189 = vmatpush.msra.mxu0 %v169
    %190 = vmatpush.msra.mxu0 %v167
    %191 = vmatpush.msra.mxu0 %v165
    %192 = vmatpush.msra.mxu0 %v163
    %193 = vmatpush.msra.mxu0 %v161
    %194 = vmatpush.msra.mxu0 %v159
    %195 = vmatpush.msra.mxu0 %v157
    %196 = vmatpush.msra.mxu0 %v155
    %197 = vmatpush.msra.mxu0 %v153
    %198 = vmatpush.msra.mxu0 %v151
    %199 = vmatmul.f32.gmra.mxu0 %v87
    %v200 = vpop.f32.mrf.mxu0
    %v201 = vadd.f32 0.0, %v200
    %202 = vmatmul.f32.gmra.mxu0 %v88
    %v203 = vpop.f32.mrf.mxu0
    %v204 = vadd.f32 0.0, %v203
    %205 = vmatmul.f32.gmra.mxu0 %v89
    %v206 = vpop.f32.mrf.mxu0
    %v207 = vadd.f32 0.0, %v206
    %208 = vmatmul.f32.gmra.mxu0 %v90
    %v209 = vpop.f32.mrf.mxu0
    %v210 = vadd.f32 0.0, %v209
    %211 = vmatmul.f32.gmra.mxu0 %v91
    %v212 = vpop.f32.mrf.mxu0
    %v213 = vadd.f32 0.0, %v212
    %214 = vmatmul.f32.gmra.mxu0 %v92
    %v215 = vpop.f32.mrf.mxu0
    %v216 = vadd.f32 0.0, %v215
    %217 = vmatmul.f32.gmra.mxu0 %v93
    %v218 = vpop.f32.mrf.mxu0
    %v219 = vadd.f32 0.0, %v218
    %220 = vmatmul.f32.gmra.mxu0 %v94
    %v221 = vpop.f32.mrf.mxu0
    %v222 = vadd.f32 0.0, %v221
    %223 = vmatmul.f32.gmra.mxu0 %v95
    %v224 = vpop.f32.mrf.mxu0
    %v225 = vadd.f32 0.0, %v224
    %226 = vmatmul.f32.gmra.mxu0 %v96
    %v227 = vpop.f32.mrf.mxu0
    %v228 = vadd.f32 0.0, %v227
    %229 = vmatmul.f32.gmra.mxu0 %v97
    %v230 = vpop.f32.mrf.mxu0
    %v231 = vadd.f32 0.0, %v230
    %232 = vmatmul.f32.gmra.mxu0 %v98
    %v233 = vpop.f32.mrf.mxu0
    %v234 = vadd.f32 0.0, %v233
    %235 = vmatmul.f32.gmra.mxu0 %v99
    %v236 = vpop.f32.mrf.mxu0
    %v237 = vadd.f32 0.0, %v236
    %238 = vmatmul.f32.gmra.mxu0 %v100
    %v239 = vpop.f32.mrf.mxu0
    %v240 = vadd.f32 0.0, %v239
    %241 = vmatmul.f32.gmra.mxu0 %v101
    %v242 = vpop.f32.mrf.mxu0
    %v243 = vadd.f32 0.0, %v242
    %244 = vmatmul.f32.gmra.mxu0 %v102
    %v245 = vpop.f32.mrf.mxu0
    %v246 = vadd.f32 0.0, %v245
    %247 = vmatmul.f32.gmra.mxu0 %v103
    %v248 = vpop.f32.mrf.mxu0
    %v249 = vadd.f32 0.0, %v248
    %250 = vmatmul.f32.gmra.mxu0 %v104
    %v251 = vpop.f32.mrf.mxu0
    %v252 = vadd.f32 0.0, %v251
    %253 = vmatmul.f32.gmra.mxu0 %v105
    %v254 = vpop.f32.mrf.mxu0
    %v255 = vadd.f32 0.0, %v254
    %256 = vmatmul.f32.gmra.mxu0 %v106
    %v257 = vpop.f32.mrf.mxu0
    %v258 = vadd.f32 0.0, %v257
    %259 = vmatmul.f32.gmra.mxu0 %v107
    %v260 = vpop.f32.mrf.mxu0
    %v261 = vadd.f32 0.0, %v260
    %262 = vmatmul.f32.gmra.mxu0 %v108
    %v263 = vpop.f32.mrf.mxu0
    %v264 = vadd.f32 0.0, %v263
    %265 = vmatmul.f32.gmra.mxu0 %v109
    %v266 = vpop.f32.mrf.mxu0
    %v267 = vadd.f32 0.0, %v266
    %268 = vmatmul.f32.gmra.mxu0 %v110
    %v269 = vpop.f32.mrf.mxu0
    %v270 = vadd.f32 0.0, %v269
    %271 = vmatmul.f32.gmra.mxu0 %v111
    %v272 = vpop.f32.mrf.mxu0
    %v273 = vadd.f32 0.0, %v272
    %274 = vmatmul.f32.gmra.mxu0 %v112
    %v275 = vpop.f32.mrf.mxu0
    %v276 = vadd.f32 0.0, %v275
    %277 = vmatmul.f32.gmra.mxu0 %v113
    %v278 = vpop.f32.mrf.mxu0
    %v279 = vadd.f32 0.0, %v278
    %280 = vmatmul.f32.gmra.mxu0 %v114
    %v281 = vpop.f32.mrf.mxu0
    %v282 = vadd.f32 0.0, %v281
    %283 = vmatmul.f32.gmra.mxu0 %v115
    %v284 = vpop.f32.mrf.mxu0
    %v285 = vadd.f32 0.0, %v284
    %286 = vmatmul.f32.gmra.mxu0 %v116
    %v287 = vpop.f32.mrf.mxu0
    %v288 = vadd.f32 0.0, %v287
    %289 = vmatmul.f32.gmra.mxu0 %v117
    %v290 = vpop.f32.mrf.mxu0
    %v291 = vadd.f32 0.0, %v290
    %292 = vmatmul.f32.gmra.mxu0 %v118
    %v293 = vpop.f32.mrf.mxu0
    %v294 = vadd.f32 0.0, %v293
    %295 = vmatmul.f32.gmra.mxu0 %v119
    %v296 = vpop.f32.mrf.mxu0
    %v297 = vadd.f32 0.0, %v296
    %298 = vmatmul.f32.gmra.mxu0 %v120
    %v299 = vpop.f32.mrf.mxu0
    %v300 = vadd.f32 0.0, %v299
    %301 = vmatmul.f32.gmra.mxu0 %v121
    %v302 = vpop.f32.mrf.mxu0
    %v303 = vadd.f32 0.0, %v302
    %304 = vmatmul.f32.gmra.mxu0 %v122
    %v305 = vpop.f32.mrf.mxu0
    %v306 = vadd.f32 0.0, %v305
    %307 = vmatmul.f32.gmra.mxu0 %v123
    %v308 = vpop.f32.mrf.mxu0
    %v309 = vadd.f32 0.0, %v308
    %310 = vmatmul.f32.gmra.mxu0 %v124
    %v311 = vpop.f32.mrf.mxu0
    %v312 = vadd.f32 0.0, %v311
    %313 = vmatmul.f32.gmra.mxu0 %v125
    %v314 = vpop.f32.mrf.mxu0
    %v315 = vadd.f32 0.0, %v314
    %316 = vmatmul.f32.gmra.mxu0 %v126
    %v317 = vpop.f32.mrf.mxu0
    %v318 = vadd.f32 0.0, %v317
    %319 = vmatmul.f32.gmra.mxu0 %v127
    %v320 = vpop.f32.mrf.mxu0
    %v321 = vadd.f32 0.0, %v320
    %322 = vmatmul.f32.gmra.mxu0 %v128
    %v323 = vpop.f32.mrf.mxu0
    %v324 = vadd.f32 0.0, %v323
    %325 = vmatmul.f32.gmra.mxu0 %v129
    %v326 = vpop.f32.mrf.mxu0
    %v327 = vadd.f32 0.0, %v326
    %328 = vmatmul.f32.gmra.mxu0 %v130
    %v329 = vpop.f32.mrf.mxu0
    %v330 = vadd.f32 0.0, %v329
    %331 = vmatmul.f32.gmra.mxu0 %v131
    %v332 = vpop.f32.mrf.mxu0
    %v333 = vadd.f32 0.0, %v332
    %334 = vmatmul.f32.gmra.mxu0 %v132
    %v335 = vpop.f32.mrf.mxu0
    %v336 = vadd.f32 0.0, %v335
    %337 = vmatmul.f32.gmra.mxu0 %v133
    %v338 = vpop.f32.mrf.mxu0
    %v339 = vadd.f32 0.0, %v338
    %340 = vmatmul.f32.gmra.mxu0 %v134
    %v341 = vpop.f32.mrf.mxu0
    %v342 = vadd.f32 0.0, %v341
    %343 = vmatmul.f32.gmra.mxu0 %v135
    %v344 = vpop.f32.mrf.mxu0
    %v345 = vadd.f32 0.0, %v344
    %346 = vmatmul.f32.gmra.mxu0 %v136
    %v347 = vpop.f32.mrf.mxu0
    %v348 = vadd.f32 0.0, %v347
    %349 = vmatmul.f32.gmra.mxu0 %v137
    %v350 = vpop.f32.mrf.mxu0
    %v351 = vadd.f32 0.0, %v350
    %352 = vmatmul.f32.gmra.mxu0 %v138
    %v353 = vpop.f32.mrf.mxu0
    %v354 = vadd.f32 0.0, %v353
    %355 = vmatmul.f32.gmra.mxu0 %v139
    %v356 = vpop.f32.mrf.mxu0
    %v357 = vadd.f32 0.0, %v356
    %358 = vmatmul.f32.gmra.mxu0 %v140
    %v359 = vpop.f32.mrf.mxu0
    %v360 = vadd.f32 0.0, %v359
    %361 = vmatmul.f32.gmra.mxu0 %v141
    %v362 = vpop.f32.mrf.mxu0
    %v363 = vadd.f32 0.0, %v362
    %364 = vmatmul.f32.gmra.mxu0 %v142
    %v365 = vpop.f32.mrf.mxu0
    %v366 = vadd.f32 0.0, %v365
    %367 = vmatmul.f32.gmra.mxu0 %v143
    %v368 = vpop.f32.mrf.mxu0
    %v369 = vadd.f32 0.0, %v368
    %370 = vmatmul.f32.gmra.mxu0 %v144
    %v371 = vpop.f32.mrf.mxu0
    %v372 = vadd.f32 0.0, %v371
    %373 = vmatmul.f32.gmra.mxu0 %v145
    %v374 = vpop.f32.mrf.mxu0
    %v375 = vadd.f32 0.0, %v374
    %376 = vmatmul.f32.gmra.mxu0 %v146
    %v377 = vpop.f32.mrf.mxu0
    %v378 = vadd.f32 0.0, %v377
    %379 = vmatmul.f32.gmra.mxu0 %v147
    %v380 = vpop.f32.mrf.mxu0
    %v381 = vadd.f32 0.0, %v380
    %382 = vmatmul.f32.gmra.mxu0 %v148
    %v383 = vpop.f32.mrf.mxu0
    %v384 = vadd.f32 0.0, %v383
    %385 = vmatmul.f32.gmra.mxu0 %v149
    %v386 = vpop.f32.mrf.mxu0
    %v387 = vadd.f32 0.0, %v386
    %388 = vmatmul.f32.gmra.mxu0 %v150
    %v389 = vpop.f32.mrf.mxu0
    %v390 = vadd.f32 0.0, %v389
    %391 = vdwg.mxu0
    %392 = vmatpush.msra.mxu0 %v182
    %393 = vmatpush.msra.mxu0 %v180
    %394 = vmatpush.msra.mxu0 %v178
    %395 = vmatpush.msra.mxu0 %v176
    %396 = vmatpush.msra.mxu0 %v174
    %397 = vmatpush.msra.mxu0 %v172
    %398 = vmatpush.msra.mxu0 %v170
    %399 = vmatpush.msra.mxu0 %v168
    %400 = vmatpush.msra.mxu0 %v166
    %401 = vmatpush.msra.mxu0 %v164
    %402 = vmatpush.msra.mxu0 %v162
    %403 = vmatpush.msra.mxu0 %v160
    %404 = vmatpush.msra.mxu0 %v158
    %405 = vmatpush.msra.mxu0 %v156
    %406 = vmatpush.msra.mxu0 %v154
    %407 = vmatpush.msra.mxu0 %v152
    %408 = vmatmul.f32.gmra.mxu0 %v87
    %v409 = vpop.f32.mrf.mxu0
    %v410 = vadd.f32 0.0, %v409
    %411 = vmatmul.f32.gmra.mxu0 %v88
    %v412 = vpop.f32.mrf.mxu0
    %v413 = vadd.f32 0.0, %v412
    %414 = vmatmul.f32.gmra.mxu0 %v89
    %v415 = vpop.f32.mrf.mxu0
    %v416 = vadd.f32 0.0, %v415
    %417 = vmatmul.f32.gmra.mxu0 %v90
    %v418 = vpop.f32.mrf.mxu0
    %v419 = vadd.f32 0.0, %v418
    %420 = vmatmul.f32.gmra.mxu0 %v91
    %v421 = vpop.f32.mrf.mxu0
    %v422 = vadd.f32 0.0, %v421
    %423 = vmatmul.f32.gmra.mxu0 %v92
    %v424 = vpop.f32.mrf.mxu0
    %v425 = vadd.f32 0.0, %v424
    %426 = vmatmul.f32.gmra.mxu0 %v93
    %v427 = vpop.f32.mrf.mxu0
    %v428 = vadd.f32 0.0, %v427
    %429 = vmatmul.f32.gmra.mxu0 %v94
    %v430 = vpop.f32.mrf.mxu0
    %v431 = vadd.f32 0.0, %v430
    %432 = vmatmul.f32.gmra.mxu0 %v95
    %v433 = vpop.f32.mrf.mxu0
    %v434 = vadd.f32 0.0, %v433
    %435 = vmatmul.f32.gmra.mxu0 %v96
    %v436 = vpop.f32.mrf.mxu0
    %v437 = vadd.f32 0.0, %v436
    %438 = vmatmul.f32.gmra.mxu0 %v97
    %v439 = vpop.f32.mrf.mxu0
    %v440 = vadd.f32 0.0, %v439
    %441 = vmatmul.f32.gmra.mxu0 %v98
    %v442 = vpop.f32.mrf.mxu0
    %v443 = vadd.f32 0.0, %v442
    %444 = vmatmul.f32.gmra.mxu0 %v99
    %v445 = vpop.f32.mrf.mxu0
    %v446 = vadd.f32 0.0, %v445
    %447 = vmatmul.f32.gmra.mxu0 %v100
    %v448 = vpop.f32.mrf.mxu0
    %v449 = vadd.f32 0.0, %v448
    %450 = vmatmul.f32.gmra.mxu0 %v101
    %v451 = vpop.f32.mrf.mxu0
    %v452 = vadd.f32 0.0, %v451
    %453 = vmatmul.f32.gmra.mxu0 %v102
    %v454 = vpop.f32.mrf.mxu0
    %v455 = vadd.f32 0.0, %v454
    %456 = vmatmul.f32.gmra.mxu0 %v103
    %v457 = vpop.f32.mrf.mxu0
    %v458 = vadd.f32 0.0, %v457
    %459 = vmatmul.f32.gmra.mxu0 %v104
    %v460 = vpop.f32.mrf.mxu0
    %v461 = vadd.f32 0.0, %v460
    %462 = vmatmul.f32.gmra.mxu0 %v105
    %v463 = vpop.f32.mrf.mxu0
    %v464 = vadd.f32 0.0, %v463
    %465 = vmatmul.f32.gmra.mxu0 %v106
    %v466 = vpop.f32.mrf.mxu0
    %v467 = vadd.f32 0.0, %v466
    %468 = vmatmul.f32.gmra.mxu0 %v107
    %v469 = vpop.f32.mrf.mxu0
    %v470 = vadd.f32 0.0, %v469
    %471 = vmatmul.f32.gmra.mxu0 %v108
    %v472 = vpop.f32.mrf.mxu0
    %v473 = vadd.f32 0.0, %v472
    %474 = vmatmul.f32.gmra.mxu0 %v109
    %v475 = vpop.f32.mrf.mxu0
    %v476 = vadd.f32 0.0, %v475
    %477 = vmatmul.f32.gmra.mxu0 %v110
    %v478 = vpop.f32.mrf.mxu0
    %v479 = vadd.f32 0.0, %v478
    %480 = vmatmul.f32.gmra.mxu0 %v111
    %v481 = vpop.f32.mrf.mxu0
    %v482 = vadd.f32 0.0, %v481
    %483 = vmatmul.f32.gmra.mxu0 %v112
    %v484 = vpop.f32.mrf.mxu0
    %v485 = vadd.f32 0.0, %v484
    %486 = vmatmul.f32.gmra.mxu0 %v113
    %v487 = vpop.f32.mrf.mxu0
    %v488 = vadd.f32 0.0, %v487
    %489 = vmatmul.f32.gmra.mxu0 %v114
    %v490 = vpop.f32.mrf.mxu0
    %v491 = vadd.f32 0.0, %v490
    %492 = vmatmul.f32.gmra.mxu0 %v115
    %v493 = vpop.f32.mrf.mxu0
    %v494 = vadd.f32 0.0, %v493
    %495 = vmatmul.f32.gmra.mxu0 %v116
    %v496 = vpop.f32.mrf.mxu0
    %v497 = vadd.f32 0.0, %v496
    %498 = vmatmul.f32.gmra.mxu0 %v117
    %v499 = vpop.f32.mrf.mxu0
    %v500 = vadd.f32 0.0, %v499
    %501 = vmatmul.f32.gmra.mxu0 %v118
    %v502 = vpop.f32.mrf.mxu0
    %v503 = vadd.f32 0.0, %v502
    %504 = vmatmul.f32.gmra.mxu0 %v119
    %v505 = vpop.f32.mrf.mxu0
    %v506 = vadd.f32 0.0, %v505
    %507 = vmatmul.f32.gmra.mxu0 %v120
    %v508 = vpop.f32.mrf.mxu0
    %v509 = vadd.f32 0.0, %v508
    %510 = vmatmul.f32.gmra.mxu0 %v121
    %v511 = vpop.f32.mrf.mxu0
    %v512 = vadd.f32 0.0, %v511
    %513 = vmatmul.f32.gmra.mxu0 %v122
    %v514 = vpop.f32.mrf.mxu0
    %v515 = vadd.f32 0.0, %v514
    %516 = vmatmul.f32.gmra.mxu0 %v123
    %v517 = vpop.f32.mrf.mxu0
    %v518 = vadd.f32 0.0, %v517
    %519 = vmatmul.f32.gmra.mxu0 %v124
    %v520 = vpop.f32.mrf.mxu0
    %v521 = vadd.f32 0.0, %v520
    %522 = vmatmul.f32.gmra.mxu0 %v125
    %v523 = vpop.f32.mrf.mxu0
    %v524 = vadd.f32 0.0, %v523
    %525 = vmatmul.f32.gmra.mxu0 %v126
    %v526 = vpop.f32.mrf.mxu0
    %v527 = vadd.f32 0.0, %v526
    %528 = vmatmul.f32.gmra.mxu0 %v127
    %v529 = vpop.f32.mrf.mxu0
    %v530 = vadd.f32 0.0, %v529
    %531 = vmatmul.f32.gmra.mxu0 %v128
    %v532 = vpop.f32.mrf.mxu0
    %v533 = vadd.f32 0.0, %v532
    %534 = vmatmul.f32.gmra.mxu0 %v129
    %v535 = vpop.f32.mrf.mxu0
    %v536 = vadd.f32 0.0, %v535
    %537 = vmatmul.f32.gmra.mxu0 %v130
    %v538 = vpop.f32.mrf.mxu0
    %v539 = vadd.f32 0.0, %v538
    %540 = vmatmul.f32.gmra.mxu0 %v131
    %v541 = vpop.f32.mrf.mxu0
    %v542 = vadd.f32 0.0, %v541
    %543 = vmatmul.f32.gmra.mxu0 %v132
    %v544 = vpop.f32.mrf.mxu0
    %v545 = vadd.f32 0.0, %v544
    %546 = vmatmul.f32.gmra.mxu0 %v133
    %v547 = vpop.f32.mrf.mxu0
    %v548 = vadd.f32 0.0, %v547
    %549 = vmatmul.f32.gmra.mxu0 %v134
    %v550 = vpop.f32.mrf.mxu0
    %v551 = vadd.f32 0.0, %v550
    %552 = vmatmul.f32.gmra.mxu0 %v135
    %v553 = vpop.f32.mrf.mxu0
    %v554 = vadd.f32 0.0, %v553
    %555 = vmatmul.f32.gmra.mxu0 %v136
    %v556 = vpop.f32.mrf.mxu0
    %v557 = vadd.f32 0.0, %v556
    %558 = vmatmul.f32.gmra.mxu0 %v137
    %v559 = vpop.f32.mrf.mxu0
    %v560 = vadd.f32 0.0, %v559
    %561 = vmatmul.f32.gmra.mxu0 %v138
    %v562 = vpop.f32.mrf.mxu0
    %v563 = vadd.f32 0.0, %v562
    %564 = vmatmul.f32.gmra.mxu0 %v139
    %v565 = vpop.f32.mrf.mxu0
    %v566 = vadd.f32 0.0, %v565
    %567 = vmatmul.f32.gmra.mxu0 %v140
    %v568 = vpop.f32.mrf.mxu0
    %v569 = vadd.f32 0.0, %v568
    %570 = vmatmul.f32.gmra.mxu0 %v141
    %v571 = vpop.f32.mrf.mxu0
    %v572 = vadd.f32 0.0, %v571
    %573 = vmatmul.f32.gmra.mxu0 %v142
    %v574 = vpop.f32.mrf.mxu0
    %v575 = vadd.f32 0.0, %v574
    %576 = vmatmul.f32.gmra.mxu0 %v143
    %v577 = vpop.f32.mrf.mxu0
    %v578 = vadd.f32 0.0, %v577
    %579 = vmatmul.f32.gmra.mxu0 %v144
    %v580 = vpop.f32.mrf.mxu0
    %v581 = vadd.f32 0.0, %v580
    %582 = vmatmul.f32.gmra.mxu0 %v145
    %v583 = vpop.f32.mrf.mxu0
    %v584 = vadd.f32 0.0, %v583
    %585 = vmatmul.f32.gmra.mxu0 %v146
    %v586 = vpop.f32.mrf.mxu0
    %v587 = vadd.f32 0.0, %v586
    %588 = vmatmul.f32.gmra.mxu0 %v147
    %v589 = vpop.f32.mrf.mxu0
    %v590 = vadd.f32 0.0, %v589
    %591 = vmatmul.f32.gmra.mxu0 %v148
    %v592 = vpop.f32.mrf.mxu0
    %v593 = vadd.f32 0.0, %v592
    %594 = vmatmul.f32.gmra.mxu0 %v149
    %v595 = vpop.f32.mrf.mxu0
    %v596 = vadd.f32 0.0, %v595
    %597 = vmatmul.f32.gmra.mxu0 %v150
    %v598 = vpop.f32.mrf.mxu0
    %v599 = vadd.f32 0.0, %v598
    %600 = vdwg.mxu0
    %v601 = vld [vmem:[#allocation7] sm:$0x3]
    %v602 = vld [vmem:[%s3] sm:$0x3]
    %v603 = vadd.f32 %v201, %v204
    %v604 = vadd.f32 %v603, %v207
    %v605 = vadd.f32 %v604, %v210
    %v606 = vadd.f32 %v605, %v213
    %v607 = vadd.f32 %v606, %v216
    %v608 = vadd.f32 %v607, %v219
    %v609 = vadd.f32 %v608, %v222
    %v610 = vadd.f32 %v609, %v225
    %v611 = vadd.f32 %v610, %v228
    %v612 = vadd.f32 %v611, %v231
    %v613 = vadd.f32 %v612, %v234
    %v614 = vadd.f32 %v613, %v237
    %v615 = vadd.f32 %v614, %v240
    %v616 = vadd.f32 %v615, %v243
    %v617 = vadd.f32 %v616, %v246
    %v618 = vadd.f32 %v617, %v249
    %v619 = vadd.f32 %v618, %v252
    %v620 = vadd.f32 %v619, %v255
    %v621 = vadd.f32 %v620, %v258
    %v622 = vadd.f32 %v621, %v261
    %v623 = vadd.f32 %v622, %v264
    %v624 = vadd.f32 %v623, %v267
    %v625 = vadd.f32 %v624, %v270
    %v626 = vadd.f32 %v625, %v273
    %v627 = vadd.f32 %v626, %v276
    %v628 = vadd.f32 %v627, %v279
    %v629 = vadd.f32 %v628, %v282
    %v630 = vadd.f32 %v629, %v285
    %v631 = vadd.f32 %v630, %v288
    %v632 = vadd.f32 %v631, %v291
    %v633 = vadd.f32 %v632, %v294
    %v634 = vadd.f32 %v633, %v297
    %v635 = vadd.f32 %v634, %v300
    %v636 = vadd.f32 %v635, %v303
    %v637 = vadd.f32 %v636, %v306
    %v638 = vadd.f32 %v637, %v309
    %v639 = vadd.f32 %v638, %v312
    %v640 = vadd.f32 %v639, %v315
    %v641 = vadd.f32 %v640, %v318
    %v642 = vadd.f32 %v641, %v321
    %v643 = vadd.f32 %v642, %v324
    %v644 = vadd.f32 %v643, %v327
    %v645 = vadd.f32 %v644, %v330
    %v646 = vadd.f32 %v645, %v333
    %v647 = vadd.f32 %v646, %v336
    %v648 = vadd.f32 %v647, %v339
    %v649 = vadd.f32 %v648, %v342
    %v650 = vadd.f32 %v649, %v345
    %v651 = vadd.f32 %v650, %v348
    %v652 = vadd.f32 %v651, %v351
    %v653 = vadd.f32 %v652, %v354
    %v654 = vadd.f32 %v653, %v357
    %v655 = vadd.f32 %v654, %v360
    %v656 = vadd.f32 %v655, %v363
    %v657 = vadd.f32 %v656, %v366
    %v658 = vadd.f32 %v657, %v369
    %v659 = vadd.f32 %v658, %v372
    %v660 = vadd.f32 %v659, %v375
    %v661 = vadd.f32 %v660, %v378
    %v662 = vadd.f32 %v661, %v381
    %v663 = vadd.f32 %v662, %v384
    %v664 = vadd.f32 %v663, %v387
    %v665 = vadd.f32 %v664, %v390
    %v666 = vrot.slane %v665, 4
    %v667 = vadd.f32 %v665, %v666
    %v668 = vrot.slane %v667, 2
    %v669 = vadd.f32 %v667, %v668
    %v670 = vrot.slane %v669, 1
    %v671 = vadd.f32 %v669, %v670
    %v672 = vadd.f32 %v410, %v413
    %v673 = vadd.f32 %v672, %v416
    %v674 = vadd.f32 %v673, %v419
    %v675 = vadd.f32 %v674, %v422
    %v676 = vadd.f32 %v675, %v425
    %v677 = vadd.f32 %v676, %v428
    %v678 = vadd.f32 %v677, %v431
    %v679 = vadd.f32 %v678, %v434
    %v680 = vadd.f32 %v679, %v437
    %v681 = vadd.f32 %v680, %v440
    %v682 = vadd.f32 %v681, %v443
    %v683 = vadd.f32 %v682, %v446
    %v684 = vadd.f32 %v683, %v449
    %v685 = vadd.f32 %v684, %v452
    %v686 = vadd.f32 %v685, %v455
    %v687 = vadd.f32 %v686, %v458
    %v688 = vadd.f32 %v687, %v461
    %v689 = vadd.f32 %v688, %v464
    %v690 = vadd.f32 %v689, %v467
    %v691 = vadd.f32 %v690, %v470
    %v692 = vadd.f32 %v691, %v473
    %v693 = vadd.f32 %v692, %v476
    %v694 = vadd.f32 %v693, %v479
    %v695 = vadd.f32 %v694, %v482
    %v696 = vadd.f32 %v695, %v485
    %v697 = vadd.f32 %v696, %v488
    %v698 = vadd.f32 %v697, %v491
    %v699 = vadd.f32 %v698, %v494
    %v700 = vadd.f32 %v699, %v497
    %v701 = vadd.f32 %v700, %v500
    %v702 = vadd.f32 %v701, %v503
    %v703 = vadd.f32 %v702, %v506
    %v704 = vadd.f32 %v703, %v509
    %v705 = vadd.f32 %v704, %v512
    %v706 = vadd.f32 %v705, %v515
    %v707 = vadd.f32 %v706, %v518
    %v708 = vadd.f32 %v707, %v521
    %v709 = vadd.f32 %v708, %v524
    %v710 = vadd.f32 %v709, %v527
    %v711 = vadd.f32 %v710, %v530
    %v712 = vadd.f32 %v711, %v533
    %v713 = vadd.f32 %v712, %v536
    %v714 = vadd.f32 %v713, %v539
    %v715 = vadd.f32 %v714, %v542
    %v716 = vadd.f32 %v715, %v545
    %v717 = vadd.f32 %v716, %v548
    %v718 = vadd.f32 %v717, %v551
    %v719 = vadd.f32 %v718, %v554
    %v720 = vadd.f32 %v719, %v557
    %v721 = vadd.f32 %v720, %v560
    %v722 = vadd.f32 %v721, %v563
    %v723 = vadd.f32 %v722, %v566
    %v724 = vadd.f32 %v723, %v569
    %v725 = vadd.f32 %v724, %v572
    %v726 = vadd.f32 %v725, %v575
    %v727 = vadd.f32 %v726, %v578
    %v728 = vadd.f32 %v727, %v581
    %v729 = vadd.f32 %v728, %v584
    %v730 = vadd.f32 %v729, %v587
    %v731 = vadd.f32 %v730, %v590
    %v732 = vadd.f32 %v731, %v593
    %v733 = vadd.f32 %v732, %v596
    %v734 = vadd.f32 %v733, %v599
    %v735 = vrot.slane %v734, 4
    %v736 = vadd.f32 %v734, %v735
    %v737 = vrot.slane %v736, 2
    %v738 = vadd.f32 %v736, %v737
    %v739 = vrot.slane %v738, 1
    %v740 = vadd.f32 %v738, %v739
    %v741 = vrcp.pop 512.0
    %v742 = vmul.f32 512.0, %v741
    %v743 = vsub.f32 1.0, %v742
    %v744 = vmul.f32 %v741, %v743
    %v745 = vadd.f32 %v741, %v744
    %vm746 = vweird.f32 %v741
    %v747 = vsel %vm746, %v741, %v745
    %v748 = vmul.f32 %v671, %v747
    %v749 = vmul.f32 %v740, %v747
    %v750 = vmul.f32 %v201, %v201
    %v751 = vmul.f32 %v410, %v410
    %v752 = vmul.f32 %v204, %v204
    %v753 = vmul.f32 %v413, %v413
    %v754 = vmul.f32 %v207, %v207
    %v755 = vmul.f32 %v416, %v416
    %v756 = vmul.f32 %v210, %v210
    %v757 = vmul.f32 %v419, %v419
    %v758 = vmul.f32 %v213, %v213
    %v759 = vmul.f32 %v422, %v422
    %v760 = vmul.f32 %v216, %v216
    %v761 = vmul.f32 %v425, %v425
    %v762 = vmul.f32 %v219, %v219
    %v763 = vmul.f32 %v428, %v428
    %v764 = vmul.f32 %v222, %v222
    %v765 = vmul.f32 %v431, %v431
    %v766 = vmul.f32 %v225, %v225
    %v767 = vmul.f32 %v434, %v434
    %v768 = vmul.f32 %v228, %v228
    %v769 = vmul.f32 %v437, %v437
    %v770 = vmul.f32 %v231, %v231
    %v771 = vmul.f32 %v440, %v440
    %v772 = vmul.f32 %v234, %v234
    %v773 = vmul.f32 %v443, %v443
    %v774 = vmul.f32 %v237, %v237
    %v775 = vmul.f32 %v446, %v446
    %v776 = vmul.f32 %v240, %v240
    %v777 = vmul.f32 %v449, %v449
    %v778 = vmul.f32 %v243, %v243
    %v779 = vmul.f32 %v452, %v452
    %v780 = vmul.f32 %v246, %v246
    %v781 = vmul.f32 %v455, %v455
    %v782 = vmul.f32 %v249, %v249
    %v783 = vmul.f32 %v458, %v458
    %v784 = vmul.f32 %v252, %v252
    %v785 = vmul.f32 %v461, %v461
    %v786 = vmul.f32 %v255, %v255
    %v787 = vmul.f32 %v464, %v464
    %v788 = vmul.f32 %v258, %v258
    %v789 = vmul.f32 %v467, %v467
    %v790 = vmul.f32 %v261, %v261
    %v791 = vmul.f32 %v470, %v470
    %v792 = vmul.f32 %v264, %v264
    %v793 = vmul.f32 %v473, %v473
    %v794 = vmul.f32 %v267, %v267
    %v795 = vmul.f32 %v476, %v476
    %v796 = vmul.f32 %v270, %v270
    %v797 = vmul.f32 %v479, %v479
    %v798 = vmul.f32 %v273, %v273
    %v799 = vmul.f32 %v482, %v482
    %v800 = vmul.f32 %v276, %v276
    %v801 = vmul.f32 %v485, %v485
    %v802 = vmul.f32 %v279, %v279
    %v803 = vmul.f32 %v488, %v488
    %v804 = vmul.f32 %v282, %v282
    %v805 = vmul.f32 %v491, %v491
    %v806 = vmul.f32 %v285, %v285
    %v807 = vmul.f32 %v494, %v494
    %v808 = vmul.f32 %v288, %v288
    %v809 = vmul.f32 %v497, %v497
    %v810 = vmul.f32 %v291, %v291
    %v811 = vmul.f32 %v500, %v500
    %v812 = vmul.f32 %v294, %v294
    %v813 = vmul.f32 %v503, %v503
    %v814 = vmul.f32 %v297, %v297
    %v815 = vmul.f32 %v506, %v506
    %v816 = vmul.f32 %v300, %v300
    %v817 = vmul.f32 %v509, %v509
    %v818 = vmul.f32 %v303, %v303
    %v819 = vmul.f32 %v512, %v512
    %v820 = vmul.f32 %v306, %v306
    %v821 = vmul.f32 %v515, %v515
    %v822 = vmul.f32 %v309, %v309
    %v823 = vmul.f32 %v518, %v518
    %v824 = vmul.f32 %v312, %v312
    %v825 = vmul.f32 %v521, %v521
    %v826 = vmul.f32 %v315, %v315
    %v827 = vmul.f32 %v524, %v524
    %v828 = vmul.f32 %v318, %v318
    %v829 = vmul.f32 %v527, %v527
    %v830 = vmul.f32 %v321, %v321
    %v831 = vmul.f32 %v530, %v530
    %v832 = vmul.f32 %v324, %v324
    %v833 = vmul.f32 %v533, %v533
    %v834 = vmul.f32 %v327, %v327
    %v835 = vmul.f32 %v536, %v536
    %v836 = vmul.f32 %v330, %v330
    %v837 = vmul.f32 %v539, %v539
    %v838 = vmul.f32 %v333, %v333
    %v839 = vmul.f32 %v542, %v542
    %v840 = vmul.f32 %v336, %v336
    %v841 = vmul.f32 %v545, %v545
    %v842 = vmul.f32 %v339, %v339
    %v843 = vmul.f32 %v548, %v548
    %v844 = vmul.f32 %v342, %v342
    %v845 = vmul.f32 %v551, %v551
    %v846 = vmul.f32 %v345, %v345
    %v847 = vmul.f32 %v554, %v554
    %v848 = vmul.f32 %v348, %v348
    %v849 = vmul.f32 %v557, %v557
    %v850 = vmul.f32 %v351, %v351
    %v851 = vmul.f32 %v560, %v560
    %v852 = vmul.f32 %v354, %v354
    %v853 = vmul.f32 %v563, %v563
    %v854 = vmul.f32 %v357, %v357
    %v855 = vmul.f32 %v566, %v566
    %v856 = vmul.f32 %v360, %v360
    %v857 = vmul.f32 %v569, %v569
    %v858 = vmul.f32 %v363, %v363
    %v859 = vmul.f32 %v572, %v572
    %v860 = vmul.f32 %v366, %v366
    %v861 = vmul.f32 %v575, %v575
    %v862 = vmul.f32 %v369, %v369
    %v863 = vmul.f32 %v578, %v578
    %v864 = vmul.f32 %v372, %v372
    %v865 = vmul.f32 %v581, %v581
    %v866 = vmul.f32 %v375, %v375
    %v867 = vmul.f32 %v584, %v584
    %v868 = vmul.f32 %v378, %v378
    %v869 = vmul.f32 %v587, %v587
    %v870 = vmul.f32 %v381, %v381
    %v871 = vmul.f32 %v590, %v590
    %v872 = vmul.f32 %v384, %v384
    %v873 = vmul.f32 %v593, %v593
    %v874 = vmul.f32 %v387, %v387
    %v875 = vmul.f32 %v596, %v596
    %v876 = vmul.f32 %v390, %v390
    %v877 = vmul.f32 %v599, %v599
    %v878 = vadd.f32 %v750, %v752
    %v879 = vadd.f32 %v878, %v754
    %v880 = vadd.f32 %v879, %v756
    %v881 = vadd.f32 %v880, %v758
    %v882 = vadd.f32 %v881, %v760
    %v883 = vadd.f32 %v882, %v762
    %v884 = vadd.f32 %v883, %v764
    %v885 = vadd.f32 %v884, %v766
    %v886 = vadd.f32 %v885, %v768
    %v887 = vadd.f32 %v886, %v770
    %v888 = vadd.f32 %v887, %v772
    %v889 = vadd.f32 %v888, %v774
    %v890 = vadd.f32 %v889, %v776
    %v891 = vadd.f32 %v890, %v778
    %v892 = vadd.f32 %v891, %v780
    %v893 = vadd.f32 %v892, %v782
    %v894 = vadd.f32 %v893, %v784
    %v895 = vadd.f32 %v894, %v786
    %v896 = vadd.f32 %v895, %v788
    %v897 = vadd.f32 %v896, %v790
    %v898 = vadd.f32 %v897, %v792
    %v899 = vadd.f32 %v898, %v794
    %v900 = vadd.f32 %v899, %v796
    %v901 = vadd.f32 %v900, %v798
    %v902 = vadd.f32 %v901, %v800
    %v903 = vadd.f32 %v902, %v802
    %v904 = vadd.f32 %v903, %v804
    %v905 = vadd.f32 %v904, %v806
    %v906 = vadd.f32 %v905, %v808
    %v907 = vadd.f32 %v906, %v810
    %v908 = vadd.f32 %v907, %v812
    %v909 = vadd.f32 %v908, %v814
    %v910 = vadd.f32 %v909, %v816
    %v911 = vadd.f32 %v910, %v818
    %v912 = vadd.f32 %v911, %v820
    %v913 = vadd.f32 %v912, %v822
    %v914 = vadd.f32 %v913, %v824
    %v915 = vadd.f32 %v914, %v826
    %v916 = vadd.f32 %v915, %v828
    %v917 = vadd.f32 %v916, %v830
    %v918 = vadd.f32 %v917, %v832
    %v919 = vadd.f32 %v918, %v834
    %v920 = vadd.f32 %v919, %v836
    %v921 = vadd.f32 %v920, %v838
    %v922 = vadd.f32 %v921, %v840
    %v923 = vadd.f32 %v922, %v842
    %v924 = vadd.f32 %v923, %v844
    %v925 = vadd.f32 %v924, %v846
    %v926 = vadd.f32 %v925, %v848
    %v927 = vadd.f32 %v926, %v850
    %v928 = vadd.f32 %v927, %v852
    %v929 = vadd.f32 %v928, %v854
    %v930 = vadd.f32 %v929, %v856
    %v931 = vadd.f32 %v930, %v858
    %v932 = vadd.f32 %v931, %v860
    %v933 = vadd.f32 %v932, %v862
    %v934 = vadd.f32 %v933, %v864
    %v935 = vadd.f32 %v934, %v866
    %v936 = vadd.f32 %v935, %v868
    %v937 = vadd.f32 %v936, %v870
    %v938 = vadd.f32 %v937, %v872
    %v939 = vadd.f32 %v938, %v874
    %v940 = vadd.f32 %v939, %v876
    %v941 = vrot.slane %v940, 4
    %v942 = vadd.f32 %v940, %v941
    %v943 = vrot.slane %v942, 2
    %v944 = vadd.f32 %v942, %v943
    %v945 = vrot.slane %v944, 1
    %v946 = vadd.f32 %v944, %v945
    %v947 = vadd.f32 %v751, %v753
    %v948 = vadd.f32 %v947, %v755
    %v949 = vadd.f32 %v948, %v757
    %v950 = vadd.f32 %v949, %v759
    %v951 = vadd.f32 %v950, %v761
    %v952 = vadd.f32 %v951, %v763
    %v953 = vadd.f32 %v952, %v765
    %v954 = vadd.f32 %v953, %v767
    %v955 = vadd.f32 %v954, %v769
    %v956 = vadd.f32 %v955, %v771
    %v957 = vadd.f32 %v956, %v773
    %v958 = vadd.f32 %v957, %v775
    %v959 = vadd.f32 %v958, %v777
    %v960 = vadd.f32 %v959, %v779
    %v961 = vadd.f32 %v960, %v781
    %v962 = vadd.f32 %v961, %v783
    %v963 = vadd.f32 %v962, %v785
    %v964 = vadd.f32 %v963, %v787
    %v965 = vadd.f32 %v964, %v789
    %v966 = vadd.f32 %v965, %v791
    %v967 = vadd.f32 %v966, %v793
    %v968 = vadd.f32 %v967, %v795
    %v969 = vadd.f32 %v968, %v797
    %v970 = vadd.f32 %v969, %v799
    %v971 = vadd.f32 %v970, %v801
    %v972 = vadd.f32 %v971, %v803
    %v973 = vadd.f32 %v972, %v805
    %v974 = vadd.f32 %v973, %v807
    %v975 = vadd.f32 %v974, %v809
    %v976 = vadd.f32 %v975, %v811
    %v977 = vadd.f32 %v976, %v813
    %v978 = vadd.f32 %v977, %v815
    %v979 = vadd.f32 %v978, %v817
    %v980 = vadd.f32 %v979, %v819
    %v981 = vadd.f32 %v980, %v821
    %v982 = vadd.f32 %v981, %v823
    %v983 = vadd.f32 %v982, %v825
    %v984 = vadd.f32 %v983, %v827
    %v985 = vadd.f32 %v984, %v829
    %v986 = vadd.f32 %v985, %v831
    %v987 = vadd.f32 %v986, %v833
    %v988 = vadd.f32 %v987, %v835
    %v989 = vadd.f32 %v988, %v837
    %v990 = vadd.f32 %v989, %v839
    %v991 = vadd.f32 %v990, %v841
    %v992 = vadd.f32 %v991, %v843
    %v993 = vadd.f32 %v992, %v845
    %v994 = vadd.f32 %v993, %v847
    %v995 = vadd.f32 %v994, %v849
    %v996 = vadd.f32 %v995, %v851
    %v997 = vadd.f32 %v996, %v853
    %v998 = vadd.f32 %v997, %v855
    %v999 = vadd.f32 %v998, %v857
    %v1000 = vadd.f32 %v999, %v859
    %v1001 = vadd.f32 %v1000, %v861
    %v1002 = vadd.f32 %v1001, %v863
    %v1003 = vadd.f32 %v1002, %v865
    %v1004 = vadd.f32 %v1003, %v867
    %v1005 = vadd.f32 %v1004, %v869
    %v1006 = vadd.f32 %v1005, %v871
    %v1007 = vadd.f32 %v1006, %v873
    %v1008 = vadd.f32 %v1007, %v875
    %v1009 = vadd.f32 %v1008, %v877
    %v1010 = vrot.slane %v1009, 4
    %v1011 = vadd.f32 %v1009, %v1010
    %v1012 = vrot.slane %v1011, 2
    %v1013 = vadd.f32 %v1011, %v1012
    %v1014 = vrot.slane %v1013, 1
    %v1015 = vadd.f32 %v1013, %v1014
    %v1016 = vmul.f32 %v946, %v747
    %v1017 = vmul.f32 %v1015, %v747
    %v1018 = vmul.f32 %v748, %v748
    %v1019 = vmul.f32 %v749, %v749
    %v1020 = vsub.f32 %v1016, %v1018
    %v1021 = vsub.f32 %v1017, %v1019
    %v1022 = vsub.f32 %v201, %v748
    %v1023 = vsub.f32 %v410, %v749
    %v1024 = vsub.f32 %v204, %v748
    %v1025 = vsub.f32 %v413, %v749
    %v1026 = vsub.f32 %v207, %v748
    %v1027 = vsub.f32 %v416, %v749
    %v1028 = vsub.f32 %v210, %v748
    %v1029 = vsub.f32 %v419, %v749
    %v1030 = vsub.f32 %v213, %v748
    %v1031 = vsub.f32 %v422, %v749
    %v1032 = vsub.f32 %v216, %v748
    %v1033 = vsub.f32 %v425, %v749
    %v1034 = vsub.f32 %v219, %v748
    %v1035 = vsub.f32 %v428, %v749
    %v1036 = vsub.f32 %v222, %v748
    %v1037 = vsub.f32 %v431, %v749
    %v1038 = vsub.f32 %v225, %v748
    %v1039 = vsub.f32 %v434, %v749
    %v1040 = vsub.f32 %v228, %v748
    %v1041 = vsub.f32 %v437, %v749
    %v1042 = vsub.f32 %v231, %v748
    %v1043 = vsub.f32 %v440, %v749
    %v1044 = vsub.f32 %v234, %v748
    %v1045 = vsub.f32 %v443, %v749
    %v1046 = vsub.f32 %v237, %v748
    %v1047 = vsub.f32 %v446, %v749
    %v1048 = vsub.f32 %v240, %v748
    %v1049 = vsub.f32 %v449, %v749
    %v1050 = vsub.f32 %v243, %v748
    %v1051 = vsub.f32 %v452, %v749
    %v1052 = vsub.f32 %v246, %v748
    %v1053 = vsub.f32 %v455, %v749
    %v1054 = vsub.f32 %v249, %v748
    %v1055 = vsub.f32 %v458, %v749
    %v1056 = vsub.f32 %v252, %v748
    %v1057 = vsub.f32 %v461, %v749
    %v1058 = vsub.f32 %v255, %v748
    %v1059 = vsub.f32 %v464, %v749
    %v1060 = vsub.f32 %v258, %v748
    %v1061 = vsub.f32 %v467, %v749
    %v1062 = vsub.f32 %v261, %v748
    %v1063 = vsub.f32 %v470, %v749
    %v1064 = vsub.f32 %v264, %v748
    %v1065 = vsub.f32 %v473, %v749
    %v1066 = vsub.f32 %v267, %v748
    %v1067 = vsub.f32 %v476, %v749
    %v1068 = vsub.f32 %v270, %v748
    %v1069 = vsub.f32 %v479, %v749
    %v1070 = vsub.f32 %v273, %v748
    %v1071 = vsub.f32 %v482, %v749
    %v1072 = vsub.f32 %v276, %v748
    %v1073 = vsub.f32 %v485, %v749
    %v1074 = vsub.f32 %v279, %v748
    %v1075 = vsub.f32 %v488, %v749
    %v1076 = vsub.f32 %v282, %v748
    %v1077 = vsub.f32 %v491, %v749
    %v1078 = vsub.f32 %v285, %v748
    %v1079 = vsub.f32 %v494, %v749
    %v1080 = vsub.f32 %v288, %v748
    %v1081 = vsub.f32 %v497, %v749
    %v1082 = vsub.f32 %v291, %v748
    %v1083 = vsub.f32 %v500, %v749
    %v1084 = vsub.f32 %v294, %v748
    %v1085 = vsub.f32 %v503, %v749
    %v1086 = vsub.f32 %v297, %v748
    %v1087 = vsub.f32 %v506, %v749
    %v1088 = vsub.f32 %v300, %v748
    %v1089 = vsub.f32 %v509, %v749
    %v1090 = vsub.f32 %v303, %v748
    %v1091 = vsub.f32 %v512, %v749
    %v1092 = vsub.f32 %v306, %v748
    %v1093 = vsub.f32 %v515, %v749
    %v1094 = vsub.f32 %v309, %v748
    %v1095 = vsub.f32 %v518, %v749
    %v1096 = vsub.f32 %v312, %v748
    %v1097 = vsub.f32 %v521, %v749
    %v1098 = vsub.f32 %v315, %v748
    %v1099 = vsub.f32 %v524, %v749
    %v1100 = vsub.f32 %v318, %v748
    %v1101 = vsub.f32 %v527, %v749
    %v1102 = vsub.f32 %v321, %v748
    %v1103 = vsub.f32 %v530, %v749
    %v1104 = vsub.f32 %v324, %v748
    %v1105 = vsub.f32 %v533, %v749
    %v1106 = vsub.f32 %v327, %v748
    %v1107 = vsub.f32 %v536, %v749
    %v1108 = vsub.f32 %v330, %v748
    %v1109 = vsub.f32 %v539, %v749
    %v1110 = vsub.f32 %v333, %v748
    %v1111 = vsub.f32 %v542, %v749
    %v1112 = vsub.f32 %v336, %v748
    %v1113 = vsub.f32 %v545, %v749
    %v1114 = vsub.f32 %v339, %v748
    %v1115 = vsub.f32 %v548, %v749
    %v1116 = vsub.f32 %v342, %v748
    %v1117 = vsub.f32 %v551, %v749
    %v1118 = vsub.f32 %v345, %v748
    %v1119 = vsub.f32 %v554, %v749
    %v1120 = vsub.f32 %v348, %v748
    %v1121 = vsub.f32 %v557, %v749
    %v1122 = vsub.f32 %v351, %v748
    %v1123 = vsub.f32 %v560, %v749
    %v1124 = vsub.f32 %v354, %v748
    %v1125 = vsub.f32 %v563, %v749
    %v1126 = vsub.f32 %v357, %v748
    %v1127 = vsub.f32 %v566, %v749
    %v1128 = vsub.f32 %v360, %v748
    %v1129 = vsub.f32 %v569, %v749
    %v1130 = vsub.f32 %v363, %v748
    %v1131 = vsub.f32 %v572, %v749
    %v1132 = vsub.f32 %v366, %v748
    %v1133 = vsub.f32 %v575, %v749
    %v1134 = vsub.f32 %v369, %v748
    %v1135 = vsub.f32 %v578, %v749
    %v1136 = vsub.f32 %v372, %v748
    %v1137 = vsub.f32 %v581, %v749
    %v1138 = vsub.f32 %v375, %v748
    %v1139 = vsub.f32 %v584, %v749
    %v1140 = vsub.f32 %v378, %v748
    %v1141 = vsub.f32 %v587, %v749
    %v1142 = vsub.f32 %v381, %v748
    %v1143 = vsub.f32 %v590, %v749
    %v1144 = vsub.f32 %v384, %v748
    %v1145 = vsub.f32 %v593, %v749
    %v1146 = vsub.f32 %v387, %v748
    %v1147 = vsub.f32 %v596, %v749
    %v1148 = vsub.f32 %v390, %v748
    %v1149 = vsub.f32 %v599, %v749
    %v1150 = vadd.f32 %v1020, 1e-05
    %v1151 = vadd.f32 %v1021, 1e-05
    %v1152 = vrsqrt.pop %v1150
    %v1153 = vmul.f32 %v1152, %v1150
    %v1154 = vmul.f32 %v1153, %v1152
    %v1155 = vmul.f32 0.5, %v1154
    %v1156 = vsub.f32 1.5, %v1155
    %v1157 = vmul.f32 %v1152, %v1156
    %vm1158 = vweird.f32 %v1150
    %vm1159 = vweird.f32 %v1152
    %vm1160 = vmor %vm1158, %vm1159
    %v1161 = vsel %vm1160, %v1152, %v1157
    %v1162 = vrsqrt.pop %v1151
    %v1163 = vmul.f32 %v1162, %v1151
    %v1164 = vmul.f32 %v1163, %v1162
    %v1165 = vmul.f32 0.5, %v1164
    %v1166 = vsub.f32 1.5, %v1165
    %v1167 = vmul.f32 %v1162, %v1166
    %vm1168 = vweird.f32 %v1151
    %vm1169 = vweird.f32 %v1162
    %vm1170 = vmor %vm1168, %vm1169
    %v1171 = vsel %vm1170, %v1162, %v1167
    %v1172 = vmul.f32 %v1022, %v1161
    %v1173 = vmul.f32 %v1023, %v1171
    %v1174 = vmul.f32 %v1024, %v1161
    %v1175 = vmul.f32 %v1025, %v1171
    %v1176 = vmul.f32 %v1026, %v1161
    %v1177 = vmul.f32 %v1027, %v1171
    %v1178 = vmul.f32 %v1028, %v1161
    %v1179 = vmul.f32 %v1029, %v1171
    %v1180 = vmul.f32 %v1030, %v1161
    %v1181 = vmul.f32 %v1031, %v1171
    %v1182 = vmul.f32 %v1032, %v1161
    %v1183 = vmul.f32 %v1033, %v1171
    %v1184 = vmul.f32 %v1034, %v1161
    %v1185 = vmul.f32 %v1035, %v1171
    %v1186 = vmul.f32 %v1036, %v1161
    %v1187 = vmul.f32 %v1037, %v1171
    %v1188 = vmul.f32 %v1038, %v1161
    %v1189 = vmul.f32 %v1039, %v1171
    %v1190 = vmul.f32 %v1040, %v1161
    %v1191 = vmul.f32 %v1041, %v1171
    %v1192 = vmul.f32 %v1042, %v1161
    %v1193 = vmul.f32 %v1043, %v1171
    %v1194 = vmul.f32 %v1044, %v1161
    %v1195 = vmul.f32 %v1045, %v1171
    %v1196 = vmul.f32 %v1046, %v1161
    %v1197 = vmul.f32 %v1047, %v1171
    %v1198 = vmul.f32 %v1048, %v1161
    %v1199 = vmul.f32 %v1049, %v1171
    %v1200 = vmul.f32 %v1050, %v1161
    %v1201 = vmul.f32 %v1051, %v1171
    %v1202 = vmul.f32 %v1052, %v1161
    %v1203 = vmul.f32 %v1053, %v1171
    %v1204 = vmul.f32 %v1054, %v1161
    %v1205 = vmul.f32 %v1055, %v1171
    %v1206 = vmul.f32 %v1056, %v1161
    %v1207 = vmul.f32 %v1057, %v1171
    %v1208 = vmul.f32 %v1058, %v1161
    %v1209 = vmul.f32 %v1059, %v1171
    %v1210 = vmul.f32 %v1060, %v1161
    %v1211 = vmul.f32 %v1061, %v1171
    %v1212 = vmul.f32 %v1062, %v1161
    %v1213 = vmul.f32 %v1063, %v1171
    %v1214 = vmul.f32 %v1064, %v1161
    %v1215 = vmul.f32 %v1065, %v1171
    %v1216 = vmul.f32 %v1066, %v1161
    %v1217 = vmul.f32 %v1067, %v1171
    %v1218 = vmul.f32 %v1068, %v1161
    %v1219 = vmul.f32 %v1069, %v1171
    %v1220 = vmul.f32 %v1070, %v1161
    %v1221 = vmul.f32 %v1071, %v1171
    %v1222 = vmul.f32 %v1072, %v1161
    %v1223 = vmul.f32 %v1073, %v1171
    %v1224 = vmul.f32 %v1074, %v1161
    %v1225 = vmul.f32 %v1075, %v1171
    %v1226 = vmul.f32 %v1076, %v1161
    %v1227 = vmul.f32 %v1077, %v1171
    %v1228 = vmul.f32 %v1078, %v1161
    %v1229 = vmul.f32 %v1079, %v1171
    %v1230 = vmul.f32 %v1080, %v1161
    %v1231 = vmul.f32 %v1081, %v1171
    %v1232 = vmul.f32 %v1082, %v1161
    %v1233 = vmul.f32 %v1083, %v1171
    %v1234 = vmul.f32 %v1084, %v1161
    %v1235 = vmul.f32 %v1085, %v1171
    %v1236 = vmul.f32 %v1086, %v1161
    %v1237 = vmul.f32 %v1087, %v1171
    %v1238 = vmul.f32 %v1088, %v1161
    %v1239 = vmul.f32 %v1089, %v1171
    %v1240 = vmul.f32 %v1090, %v1161
    %v1241 = vmul.f32 %v1091, %v1171
    %v1242 = vmul.f32 %v1092, %v1161
    %v1243 = vmul.f32 %v1093, %v1171
    %v1244 = vmul.f32 %v1094, %v1161
    %v1245 = vmul.f32 %v1095, %v1171
    %v1246 = vmul.f32 %v1096, %v1161
    %v1247 = vmul.f32 %v1097, %v1171
    %v1248 = vmul.f32 %v1098, %v1161
    %v1249 = vmul.f32 %v1099, %v1171
    %v1250 = vmul.f32 %v1100, %v1161
    %v1251 = vmul.f32 %v1101, %v1171
    %v1252 = vmul.f32 %v1102, %v1161
    %v1253 = vmul.f32 %v1103, %v1171
    %v1254 = vmul.f32 %v1104, %v1161
    %v1255 = vmul.f32 %v1105, %v1171
    %v1256 = vmul.f32 %v1106, %v1161
    %v1257 = vmul.f32 %v1107, %v1171
    %v1258 = vmul.f32 %v1108, %v1161
    %v1259 = vmul.f32 %v1109, %v1171
    %v1260 = vmul.f32 %v1110, %v1161
    %v1261 = vmul.f32 %v1111, %v1171
    %v1262 = vmul.f32 %v1112, %v1161
    %v1263 = vmul.f32 %v1113, %v1171
    %v1264 = vmul.f32 %v1114, %v1161
    %v1265 = vmul.f32 %v1115, %v1171
    %v1266 = vmul.f32 %v1116, %v1161
    %v1267 = vmul.f32 %v1117, %v1171
    %v1268 = vmul.f32 %v1118, %v1161
    %v1269 = vmul.f32 %v1119, %v1171
    %v1270 = vmul.f32 %v1120, %v1161
    %v1271 = vmul.f32 %v1121, %v1171
    %v1272 = vmul.f32 %v1122, %v1161
    %v1273 = vmul.f32 %v1123, %v1171
    %v1274 = vmul.f32 %v1124, %v1161
    %v1275 = vmul.f32 %v1125, %v1171
    %v1276 = vmul.f32 %v1126, %v1161
    %v1277 = vmul.f32 %v1127, %v1171
    %v1278 = vmul.f32 %v1128, %v1161
    %v1279 = vmul.f32 %v1129, %v1171
    %v1280 = vmul.f32 %v1130, %v1161
    %v1281 = vmul.f32 %v1131, %v1171
    %v1282 = vmul.f32 %v1132, %v1161
    %v1283 = vmul.f32 %v1133, %v1171
    %v1284 = vmul.f32 %v1134, %v1161
    %v1285 = vmul.f32 %v1135, %v1171
    %v1286 = vmul.f32 %v1136, %v1161
    %v1287 = vmul.f32 %v1137, %v1171
    %v1288 = vmul.f32 %v1138, %v1161
    %v1289 = vmul.f32 %v1139, %v1171
    %v1290 = vmul.f32 %v1140, %v1161
    %v1291 = vmul.f32 %v1141, %v1171
    %v1292 = vmul.f32 %v1142, %v1161
    %v1293 = vmul.f32 %v1143, %v1171
    %v1294 = vmul.f32 %v1144, %v1161
    %v1295 = vmul.f32 %v1145, %v1171
    %v1296 = vmul.f32 %v1146, %v1161
    %v1297 = vmul.f32 %v1147, %v1171
    %v1298 = vmul.f32 %v1148, %v1161
    %v1299 = vmul.f32 %v1149, %v1171
    %v1301 = vperm.slane %v601, 0
    %v1302 = vperm.slane %v601, 1
    %v1305 = vmul.f32 %v1172, %v1301
    %v1306 = vmul.f32 %v1173, %v1302
    %v1307 = vmul.f32 %v1174, %v1301
    %v1308 = vmul.f32 %v1175, %v1302
    %v1309 = vmul.f32 %v1176, %v1301
    %v1310 = vmul.f32 %v1177, %v1302
    %v1311 = vmul.f32 %v1178, %v1301
    %v1312 = vmul.f32 %v1179, %v1302
    %v1313 = vmul.f32 %v1180, %v1301
    %v1314 = vmul.f32 %v1181, %v1302
    %v1315 = vmul.f32 %v1182, %v1301
    %v1316 = vmul.f32 %v1183, %v1302
    %v1317 = vmul.f32 %v1184, %v1301
    %v1318 = vmul.f32 %v1185, %v1302
    %v1319 = vmul.f32 %v1186, %v1301
    %v1320 = vmul.f32 %v1187, %v1302
    %v1321 = vmul.f32 %v1188, %v1301
    %v1322 = vmul.f32 %v1189, %v1302
    %v1323 = vmul.f32 %v1190, %v1301
    %v1324 = vmul.f32 %v1191, %v1302
    %v1325 = vmul.f32 %v1192, %v1301
    %v1326 = vmul.f32 %v1193, %v1302
    %v1327 = vmul.f32 %v1194, %v1301
    %v1328 = vmul.f32 %v1195, %v1302
    %v1329 = vmul.f32 %v1196, %v1301
    %v1330 = vmul.f32 %v1197, %v1302
    %v1331 = vmul.f32 %v1198, %v1301
    %v1332 = vmul.f32 %v1199, %v1302
    %v1333 = vmul.f32 %v1200, %v1301
    %v1334 = vmul.f32 %v1201, %v1302
    %v1335 = vmul.f32 %v1202, %v1301
    %v1336 = vmul.f32 %v1203, %v1302
    %v1337 = vmul.f32 %v1204, %v1301
    %v1338 = vmul.f32 %v1205, %v1302
    %v1339 = vmul.f32 %v1206, %v1301
    %v1340 = vmul.f32 %v1207, %v1302
    %v1341 = vmul.f32 %v1208, %v1301
    %v1342 = vmul.f32 %v1209, %v1302
    %v1343 = vmul.f32 %v1210, %v1301
    %v1344 = vmul.f32 %v1211, %v1302
    %v1345 = vmul.f32 %v1212, %v1301
    %v1346 = vmul.f32 %v1213, %v1302
    %v1347 = vmul.f32 %v1214, %v1301
    %v1348 = vmul.f32 %v1215, %v1302
    %v1349 = vmul.f32 %v1216, %v1301
    %v1350 = vmul.f32 %v1217, %v1302
    %v1351 = vmul.f32 %v1218, %v1301
    %v1352 = vmul.f32 %v1219, %v1302
    %v1353 = vmul.f32 %v1220, %v1301
    %v1354 = vmul.f32 %v1221, %v1302
    %v1355 = vmul.f32 %v1222, %v1301
    %v1356 = vmul.f32 %v1223, %v1302
    %v1357 = vmul.f32 %v1224, %v1301
    %v1358 = vmul.f32 %v1225, %v1302
    %v1359 = vmul.f32 %v1226, %v1301
    %v1360 = vmul.f32 %v1227, %v1302
    %v1361 = vmul.f32 %v1228, %v1301
    %v1362 = vmul.f32 %v1229, %v1302
    %v1363 = vmul.f32 %v1230, %v1301
    %v1364 = vmul.f32 %v1231, %v1302
    %v1365 = vmul.f32 %v1232, %v1301
    %v1366 = vmul.f32 %v1233, %v1302
    %v1367 = vmul.f32 %v1234, %v1301
    %v1368 = vmul.f32 %v1235, %v1302
    %v1369 = vmul.f32 %v1236, %v1301
    %v1370 = vmul.f32 %v1237, %v1302
    %v1371 = vmul.f32 %v1238, %v1301
    %v1372 = vmul.f32 %v1239, %v1302
    %v1373 = vmul.f32 %v1240, %v1301
    %v1374 = vmul.f32 %v1241, %v1302
    %v1375 = vmul.f32 %v1242, %v1301
    %v1376 = vmul.f32 %v1243, %v1302
    %v1377 = vmul.f32 %v1244, %v1301
    %v1378 = vmul.f32 %v1245, %v1302
    %v1379 = vmul.f32 %v1246, %v1301
    %v1380 = vmul.f32 %v1247, %v1302
    %v1381 = vmul.f32 %v1248, %v1301
    %v1382 = vmul.f32 %v1249, %v1302
    %v1383 = vmul.f32 %v1250, %v1301
    %v1384 = vmul.f32 %v1251, %v1302
    %v1385 = vmul.f32 %v1252, %v1301
    %v1386 = vmul.f32 %v1253, %v1302
    %v1387 = vmul.f32 %v1254, %v1301
    %v1388 = vmul.f32 %v1255, %v1302
    %v1389 = vmul.f32 %v1256, %v1301
    %v1390 = vmul.f32 %v1257, %v1302
    %v1391 = vmul.f32 %v1258, %v1301
    %v1392 = vmul.f32 %v1259, %v1302
    %v1393 = vmul.f32 %v1260, %v1301
    %v1394 = vmul.f32 %v1261, %v1302
    %v1395 = vmul.f32 %v1262, %v1301
    %v1396 = vmul.f32 %v1263, %v1302
    %v1397 = vmul.f32 %v1264, %v1301
    %v1398 = vmul.f32 %v1265, %v1302
    %v1399 = vmul.f32 %v1266, %v1301
    %v1400 = vmul.f32 %v1267, %v1302
    %v1401 = vmul.f32 %v1268, %v1301
    %v1402 = vmul.f32 %v1269, %v1302
    %v1403 = vmul.f32 %v1270, %v1301
    %v1404 = vmul.f32 %v1271, %v1302
    %v1405 = vmul.f32 %v1272, %v1301
    %v1406 = vmul.f32 %v1273, %v1302
    %v1407 = vmul.f32 %v1274, %v1301
    %v1408 = vmul.f32 %v1275, %v1302
    %v1409 = vmul.f32 %v1276, %v1301
    %v1410 = vmul.f32 %v1277, %v1302
    %v1411 = vmul.f32 %v1278, %v1301
    %v1412 = vmul.f32 %v1279, %v1302
    %v1413 = vmul.f32 %v1280, %v1301
    %v1414 = vmul.f32 %v1281, %v1302
    %v1415 = vmul.f32 %v1282, %v1301
    %v1416 = vmul.f32 %v1283, %v1302
    %v1417 = vmul.f32 %v1284, %v1301
    %v1418 = vmul.f32 %v1285, %v1302
    %v1419 = vmul.f32 %v1286, %v1301
    %v1420 = vmul.f32 %v1287, %v1302
    %v1421 = vmul.f32 %v1288, %v1301
    %v1422 = vmul.f32 %v1289, %v1302
    %v1423 = vmul.f32 %v1290, %v1301
    %v1424 = vmul.f32 %v1291, %v1302
    %v1425 = vmul.f32 %v1292, %v1301
    %v1426 = vmul.f32 %v1293, %v1302
    %v1427 = vmul.f32 %v1294, %v1301
    %v1428 = vmul.f32 %v1295, %v1302
    %v1429 = vmul.f32 %v1296, %v1301
    %v1430 = vmul.f32 %v1297, %v1302
    %v1431 = vmul.f32 %v1298, %v1301
    %v1432 = vmul.f32 %v1299, %v1302
    %v1434 = vperm.slane %v602, 0
    %v1435 = vperm.slane %v602, 1
    %v1438 = vadd.f32 %v1305, %v1434
    %v1439 = vadd.f32 %v1306, %v1435
    %v1440 = vadd.f32 %v1307, %v1434
    %v1441 = vadd.f32 %v1308, %v1435
    %v1442 = vadd.f32 %v1309, %v1434
    %v1443 = vadd.f32 %v1310, %v1435
    %v1444 = vadd.f32 %v1311, %v1434
    %v1445 = vadd.f32 %v1312, %v1435
    %v1446 = vadd.f32 %v1313, %v1434
    %v1447 = vadd.f32 %v1314, %v1435
    %v1448 = vadd.f32 %v1315, %v1434
    %v1449 = vadd.f32 %v1316, %v1435
    %v1450 = vadd.f32 %v1317, %v1434
    %v1451 = vadd.f32 %v1318, %v1435
    %v1452 = vadd.f32 %v1319, %v1434
    %v1453 = vadd.f32 %v1320, %v1435
    %v1454 = vadd.f32 %v1321, %v1434
    %v1455 = vadd.f32 %v1322, %v1435
    %v1456 = vadd.f32 %v1323, %v1434
    %v1457 = vadd.f32 %v1324, %v1435
    %v1458 = vadd.f32 %v1325, %v1434
    %v1459 = vadd.f32 %v1326, %v1435
    %v1460 = vadd.f32 %v1327, %v1434
    %v1461 = vadd.f32 %v1328, %v1435
    %v1462 = vadd.f32 %v1329, %v1434
    %v1463 = vadd.f32 %v1330, %v1435
    %v1464 = vadd.f32 %v1331, %v1434
    %v1465 = vadd.f32 %v1332, %v1435
    %v1466 = vadd.f32 %v1333, %v1434
    %v1467 = vadd.f32 %v1334, %v1435
    %v1468 = vadd.f32 %v1335, %v1434
    %v1469 = vadd.f32 %v1336, %v1435
    %v1470 = vadd.f32 %v1337, %v1434
    %v1471 = vadd.f32 %v1338, %v1435
    %v1472 = vadd.f32 %v1339, %v1434
    %v1473 = vadd.f32 %v1340, %v1435
    %v1474 = vadd.f32 %v1341, %v1434
    %v1475 = vadd.f32 %v1342, %v1435
    %v1476 = vadd.f32 %v1343, %v1434
    %v1477 = vadd.f32 %v1344, %v1435
    %v1478 = vadd.f32 %v1345, %v1434
    %v1479 = vadd.f32 %v1346, %v1435
    %v1480 = vadd.f32 %v1347, %v1434
    %v1481 = vadd.f32 %v1348, %v1435
    %v1482 = vadd.f32 %v1349, %v1434
    %v1483 = vadd.f32 %v1350, %v1435
    %v1484 = vadd.f32 %v1351, %v1434
    %v1485 = vadd.f32 %v1352, %v1435
    %v1486 = vadd.f32 %v1353, %v1434
    %v1487 = vadd.f32 %v1354, %v1435
    %v1488 = vadd.f32 %v1355, %v1434
    %v1489 = vadd.f32 %v1356, %v1435
    %v1490 = vadd.f32 %v1357, %v1434
    %v1491 = vadd.f32 %v1358, %v1435
    %v1492 = vadd.f32 %v1359, %v1434
    %v1493 = vadd.f32 %v1360, %v1435
    %v1494 = vadd.f32 %v1361, %v1434
    %v1495 = vadd.f32 %v1362, %v1435
    %v1496 = vadd.f32 %v1363, %v1434
    %v1497 = vadd.f32 %v1364, %v1435
    %v1498 = vadd.f32 %v1365, %v1434
    %v1499 = vadd.f32 %v1366, %v1435
    %v1500 = vadd.f32 %v1367, %v1434
    %v1501 = vadd.f32 %v1368, %v1435
    %v1502 = vadd.f32 %v1369, %v1434
    %v1503 = vadd.f32 %v1370, %v1435
    %v1504 = vadd.f32 %v1371, %v1434
    %v1505 = vadd.f32 %v1372, %v1435
    %v1506 = vadd.f32 %v1373, %v1434
    %v1507 = vadd.f32 %v1374, %v1435
    %v1508 = vadd.f32 %v1375, %v1434
    %v1509 = vadd.f32 %v1376, %v1435
    %v1510 = vadd.f32 %v1377, %v1434
    %v1511 = vadd.f32 %v1378, %v1435
    %v1512 = vadd.f32 %v1379, %v1434
    %v1513 = vadd.f32 %v1380, %v1435
    %v1514 = vadd.f32 %v1381, %v1434
    %v1515 = vadd.f32 %v1382, %v1435
    %v1516 = vadd.f32 %v1383, %v1434
    %v1517 = vadd.f32 %v1384, %v1435
    %v1518 = vadd.f32 %v1385, %v1434
    %v1519 = vadd.f32 %v1386, %v1435
    %v1520 = vadd.f32 %v1387, %v1434
    %v1521 = vadd.f32 %v1388, %v1435
    %v1522 = vadd.f32 %v1389, %v1434
    %v1523 = vadd.f32 %v1390, %v1435
    %v1524 = vadd.f32 %v1391, %v1434
    %v1525 = vadd.f32 %v1392, %v1435
    %v1526 = vadd.f32 %v1393, %v1434
    %v1527 = vadd.f32 %v1394, %v1435
    %v1528 = vadd.f32 %v1395, %v1434
    %v1529 = vadd.f32 %v1396, %v1435
    %v1530 = vadd.f32 %v1397, %v1434
    %v1531 = vadd.f32 %v1398, %v1435
    %v1532 = vadd.f32 %v1399, %v1434
    %v1533 = vadd.f32 %v1400, %v1435
    %v1534 = vadd.f32 %v1401, %v1434
    %v1535 = vadd.f32 %v1402, %v1435
    %v1536 = vadd.f32 %v1403, %v1434
    %v1537 = vadd.f32 %v1404, %v1435
    %v1538 = vadd.f32 %v1405, %v1434
    %v1539 = vadd.f32 %v1406, %v1435
    %v1540 = vadd.f32 %v1407, %v1434
    %v1541 = vadd.f32 %v1408, %v1435
    %v1542 = vadd.f32 %v1409, %v1434
    %v1543 = vadd.f32 %v1410, %v1435
    %v1544 = vadd.f32 %v1411, %v1434
    %v1545 = vadd.f32 %v1412, %v1435
    %v1546 = vadd.f32 %v1413, %v1434
    %v1547 = vadd.f32 %v1414, %v1435
    %v1548 = vadd.f32 %v1415, %v1434
    %v1549 = vadd.f32 %v1416, %v1435
    %v1550 = vadd.f32 %v1417, %v1434
    %v1551 = vadd.f32 %v1418, %v1435
    %v1552 = vadd.f32 %v1419, %v1434
    %v1553 = vadd.f32 %v1420, %v1435
    %v1554 = vadd.f32 %v1421, %v1434
    %v1555 = vadd.f32 %v1422, %v1435
    %v1556 = vadd.f32 %v1423, %v1434
    %v1557 = vadd.f32 %v1424, %v1435
    %v1558 = vadd.f32 %v1425, %v1434
    %v1559 = vadd.f32 %v1426, %v1435
    %v1560 = vadd.f32 %v1427, %v1434
    %v1561 = vadd.f32 %v1428, %v1435
    %v1562 = vadd.f32 %v1429, %v1434
    %v1563 = vadd.f32 %v1430, %v1435
    %v1564 = vadd.f32 %v1431, %v1434
    %v1565 = vadd.f32 %v1432, %v1435
    %v1566 = vmax.f32 %v1438, 0.0
    %v1567 = vmax.f32 %v1440, 0.0
    %v1568 = vmax.f32 %v1442, 0.0
    %v1569 = vmax.f32 %v1444, 0.0
    %v1570 = vmax.f32 %v1446, 0.0
    %v1571 = vmax.f32 %v1448, 0.0
    %v1572 = vmax.f32 %v1450, 0.0
    %v1573 = vmax.f32 %v1452, 0.0
    %v1574 = vmax.f32 %v1454, 0.0
    %v1575 = vmax.f32 %v1456, 0.0
    %v1576 = vmax.f32 %v1458, 0.0
    %v1577 = vmax.f32 %v1460, 0.0
    %v1578 = vmax.f32 %v1462, 0.0
    %v1579 = vmax.f32 %v1464, 0.0
    %v1580 = vmax.f32 %v1466, 0.0
    %v1581 = vmax.f32 %v1468, 0.0
    %v1582 = vmax.f32 %v1470, 0.0
    %v1583 = vmax.f32 %v1472, 0.0
    %v1584 = vmax.f32 %v1474, 0.0
    %v1585 = vmax.f32 %v1476, 0.0
    %v1586 = vmax.f32 %v1478, 0.0
    %v1587 = vmax.f32 %v1480, 0.0
    %v1588 = vmax.f32 %v1482, 0.0
    %v1589 = vmax.f32 %v1484, 0.0
    %v1590 = vmax.f32 %v1486, 0.0
    %v1591 = vmax.f32 %v1488, 0.0
    %v1592 = vmax.f32 %v1490, 0.0
    %v1593 = vmax.f32 %v1492, 0.0
    %v1594 = vmax.f32 %v1494, 0.0
    %v1595 = vmax.f32 %v1496, 0.0
    %v1596 = vmax.f32 %v1498, 0.0
    %v1597 = vmax.f32 %v1500, 0.0
    %v1598 = vmax.f32 %v1502, 0.0
    %v1599 = vmax.f32 %v1504, 0.0
    %v1600 = vmax.f32 %v1506, 0.0
    %v1601 = vmax.f32 %v1508, 0.0
    %v1602 = vmax.f32 %v1510, 0.0
    %v1603 = vmax.f32 %v1512, 0.0
    %v1604 = vmax.f32 %v1514, 0.0
    %v1605 = vmax.f32 %v1516, 0.0
    %v1606 = vmax.f32 %v1518, 0.0
    %v1607 = vmax.f32 %v1520, 0.0
    %v1608 = vmax.f32 %v1522, 0.0
    %v1609 = vmax.f32 %v1524, 0.0
    %v1610 = vmax.f32 %v1526, 0.0
    %v1611 = vmax.f32 %v1528, 0.0
    %v1612 = vmax.f32 %v1530, 0.0
    %v1613 = vmax.f32 %v1532, 0.0
    %v1614 = vmax.f32 %v1534, 0.0
    %v1615 = vmax.f32 %v1536, 0.0
    %v1616 = vmax.f32 %v1538, 0.0
    %v1617 = vmax.f32 %v1540, 0.0
    %v1618 = vmax.f32 %v1542, 0.0
    %v1619 = vmax.f32 %v1544, 0.0
    %v1620 = vmax.f32 %v1546, 0.0
    %v1621 = vmax.f32 %v1548, 0.0
    %v1622 = vmax.f32 %v1550, 0.0
    %v1623 = vmax.f32 %v1552, 0.0
    %v1624 = vmax.f32 %v1554, 0.0
    %v1625 = vmax.f32 %v1556, 0.0
    %v1626 = vmax.f32 %v1558, 0.0
    %v1627 = vmax.f32 %v1560, 0.0
    %v1628 = vmax.f32 %v1562, 0.0
    %v1629 = vmax.f32 %v1564, 0.0
    %1630 = vst [vmem:[#allocation2] sm:$0xff] 0.0
    %1631 = vst [vmem:[#allocation2 + $0x8] sm:$0xff] 0.0
    %1632 = vst [vmem:[#allocation2 + $0x10] sm:$0x3] 0.0
    %1633 = vst [vmem:[#allocation2 + $0x1b0] sm:$0xff] 0.0
    %1634 = vst [vmem:[#allocation2 + $0x1b8] sm:$0xff] 0.0
    %1635 = vst [vmem:[#allocation2 + $0x1c0] sm:$0x3] 0.0
    %s1636 = scalar_lea.vmem [#allocation2], 408
    %1637 = vst [vmem:[%s1636] sm:$0xff] 0.0
    %1638 = vst [vmem:[%s1636 + $0x8] sm:$0xff] 0.0
    %1639 = vst [vmem:[%s1636 + $0x10] sm:$0x3] 0.0
    %1640 = vst [vmem:[%s1636 + $0x1b0] sm:$0xff] 0.0
    %1641 = vst [vmem:[%s1636 + $0x1b8] sm:$0xff] 0.0
    %1642 = vst [vmem:[%s1636 + $0x1c0] sm:$0x3] 0.0
    %s1643 = scalar_lea.vmem [#allocation2], 24
    %1644 = vst [vmem:[%s1643] sm:$0x1] 0.0
    %1645 = vst [vmem:[%s1643 + $0x18] sm:$0x1] 0.0
    %1646 = vst [vmem:[%s1643 + $0x30] sm:$0x1] 0.0
    %1647 = vst [vmem:[%s1643 + $0x48] sm:$0x1] 0.0
    %1648 = vst [vmem:[%s1643 + $0x60] sm:$0x1] 0.0
    %1649 = vst [vmem:[%s1643 + $0x78] sm:$0x1] 0.0
    %1650 = vst [vmem:[%s1643 + $0x90] sm:$0x1] 0.0
    %1651 = vst [vmem:[%s1643 + $0xa8] sm:$0x1] 0.0
    %1652 = vst [vmem:[%s1643 + $0xc0] sm:$0x1] 0.0
    %1653 = vst [vmem:[%s1643 + $0xd8] sm:$0x1] 0.0
    %1654 = vst [vmem:[%s1643 + $0xf0] sm:$0x1] 0.0
    %1655 = vst [vmem:[%s1643 + $0x108] sm:$0x1] 0.0
    %1656 = vst [vmem:[%s1643 + $0x120] sm:$0x1] 0.0
    %1657 = vst [vmem:[%s1643 + $0x138] sm:$0x1] 0.0
    %1658 = vst [vmem:[%s1643 + $0x150] sm:$0x1] 0.0
    %1659 = vst [vmem:[%s1643 + $0x168] sm:$0x1] 0.0
    %1660 = vst [vmem:[%s1643 + $0x1b0] sm:$0x1] 0.0
    %1661 = vst [vmem:[%s1643 + $0x1c8] sm:$0x1] 0.0
    %1662 = vst [vmem:[%s1643 + $0x1e0] sm:$0x1] 0.0
    %1663 = vst [vmem:[%s1643 + $0x1f8] sm:$0x1] 0.0
    %1664 = vst [vmem:[%s1643 + $0x210] sm:$0x1] 0.0
    %1665 = vst [vmem:[%s1643 + $0x228] sm:$0x1] 0.0
    %1666 = vst [vmem:[%s1643 + $0x240] sm:$0x1] 0.0
    %1667 = vst [vmem:[%s1643 + $0x258] sm:$0x1] 0.0
    %1668 = vst [vmem:[%s1643 + $0x270] sm:$0x1] 0.0
    %1669 = vst [vmem:[%s1643 + $0x288] sm:$0x1] 0.0
    %1670 = vst [vmem:[%s1643 + $0x2a0] sm:$0x1] 0.0
    %1671 = vst [vmem:[%s1643 + $0x2b8] sm:$0x1] 0.0
    %1672 = vst [vmem:[%s1643 + $0x2d0] sm:$0x1] 0.0
    %1673 = vst [vmem:[%s1643 + $0x2e8] sm:$0x1] 0.0
    %1674 = vst [vmem:[%s1643 + $0x300] sm:$0x1] 0.0
    %1675 = vst [vmem:[%s1643 + $0x318] sm:$0x1] 0.0
    %1676 = vst [vmem:[%s1643 + $0x11] sm:$0x1] 0.0
    %1677 = vst [vmem:[%s1643 + $0x29] sm:$0x1] 0.0
    %1678 = vst [vmem:[%s1643 + $0x41] sm:$0x1] 0.0
    %1679 = vst [vmem:[%s1643 + $0x59] sm:$0x1] 0.0
    %1680 = vst [vmem:[%s1643 + $0x71] sm:$0x1] 0.0
    %1681 = vst [vmem:[%s1643 + $0x89] sm:$0x1] 0.0
    %1682 = vst [vmem:[%s1643 + $0xa1] sm:$0x1] 0.0
    %1683 = vst [vmem:[%s1643 + $0xb9] sm:$0x1] 0.0
    %1684 = vst [vmem:[%s1643 + $0xd1] sm:$0x1] 0.0
    %1685 = vst [vmem:[%s1643 + $0xe9] sm:$0x1] 0.0
    %1686 = vst [vmem:[%s1643 + $0x101] sm:$0x1] 0.0
    %1687 = vst [vmem:[%s1643 + $0x119] sm:$0x1] 0.0
    %1688 = vst [vmem:[%s1643 + $0x131] sm:$0x1] 0.0
    %1689 = vst [vmem:[%s1643 + $0x149] sm:$0x1] 0.0
    %1690 = vst [vmem:[%s1643 + $0x161] sm:$0x1] 0.0
    %1691 = vst [vmem:[%s1643 + $0x179] sm:$0x1] 0.0
    %1692 = vst [vmem:[%s1643 + $0x1c1] sm:$0x1] 0.0
    %1693 = vst [vmem:[%s1643 + $0x1d9] sm:$0x1] 0.0
    %1694 = vst [vmem:[%s1643 + $0x1f1] sm:$0x1] 0.0
    %1695 = vst [vmem:[%s1643 + $0x209] sm:$0x1] 0.0
    %1696 = vst [vmem:[%s1643 + $0x221] sm:$0x1] 0.0
    %1697 = vst [vmem:[%s1643 + $0x239] sm:$0x1] 0.0
    %1698 = vst [vmem:[%s1643 + $0x251] sm:$0x1] 0.0
    %1699 = vst [vmem:[%s1643 + $0x269] sm:$0x1] 0.0
    %1700 = vst [vmem:[%s1643 + $0x281] sm:$0x1] 0.0
    %1701 = vst [vmem:[%s1643 + $0x299] sm:$0x1] 0.0
    %1702 = vst [vmem:[%s1643 + $0x2b1] sm:$0x1] 0.0
    %1703 = vst [vmem:[%s1643 + $0x2c9] sm:$0x1] 0.0
    %1704 = vst [vmem:[%s1643 + $0x2e1] sm:$0x1] 0.0
    %1705 = vst [vmem:[%s1643 + $0x2f9] sm:$0x1] 0.0
    %1706 = vst [vmem:[%s1643 + $0x311] sm:$0x1] 0.0
    %1707 = vst [vmem:[%s1643 + $0x329] sm:$0x1] 0.0
    %1708 = vst [vmem:[%s1643 + $0x1] sm:$0xff] %v1566
    %1709 = vst [vmem:[%s1643 + $0x9] sm:$0xff] %v1567
    %1710 = vst [vmem:[%s1643 + $0x19] sm:$0xff] %v1568
    %1711 = vst [vmem:[%s1643 + $0x21] sm:$0xff] %v1569
    %1712 = vst [vmem:[%s1643 + $0x31] sm:$0xff] %v1570
    %1713 = vst [vmem:[%s1643 + $0x39] sm:$0xff] %v1571
    %1714 = vst [vmem:[%s1643 + $0x49] sm:$0xff] %v1572
    %1715 = vst [vmem:[%s1643 + $0x51] sm:$0xff] %v1573
    %1716 = vst [vmem:[%s1643 + $0x61] sm:$0xff] %v1574
    %1717 = vst [vmem:[%s1643 + $0x69] sm:$0xff] %v1575
    %1718 = vst [vmem:[%s1643 + $0x79] sm:$0xff] %v1576
    %1719 = vst [vmem:[%s1643 + $0x81] sm:$0xff] %v1577
    %1720 = vst [vmem:[%s1643 + $0x91] sm:$0xff] %v1578
    %1721 = vst [vmem:[%s1643 + $0x99] sm:$0xff] %v1579
    %1722 = vst [vmem:[%s1643 + $0xa9] sm:$0xff] %v1580
    %1723 = vst [vmem:[%s1643 + $0xb1] sm:$0xff] %v1581
    %1724 = vst [vmem:[%s1643 + $0xc1] sm:$0xff] %v1582
    %1725 = vst [vmem:[%s1643 + $0xc9] sm:$0xff] %v1583
    %1726 = vst [vmem:[%s1643 + $0xd9] sm:$0xff] %v1584
    %1727 = vst [vmem:[%s1643 + $0xe1] sm:$0xff] %v1585
    %1728 = vst [vmem:[%s1643 + $0xf1] sm:$0xff] %v1586
    %1729 = vst [vmem:[%s1643 + $0xf9] sm:$0xff] %v1587
    %1730 = vst [vmem:[%s1643 + $0x109] sm:$0xff] %v1588
    %1731 = vst [vmem:[%s1643 + $0x111] sm:$0xff] %v1589
    %1732 = vst [vmem:[%s1643 + $0x121] sm:$0xff] %v1590
    %1733 = vst [vmem:[%s1643 + $0x129] sm:$0xff] %v1591
    %1734 = vst [vmem:[%s1643 + $0x139] sm:$0xff] %v1592
    %1735 = vst [vmem:[%s1643 + $0x141] sm:$0xff] %v1593
    %1736 = vst [vmem:[%s1643 + $0x151] sm:$0xff] %v1594
    %1737 = vst [vmem:[%s1643 + $0x159] sm:$0xff] %v1595
    %1738 = vst [vmem:[%s1643 + $0x169] sm:$0xff] %v1596
    %1739 = vst [vmem:[%s1643 + $0x171] sm:$0xff] %v1597
    %1740 = vst [vmem:[%s1643 + $0x1b1] sm:$0xff] %v1598
    %1741 = vst [vmem:[%s1643 + $0x1b9] sm:$0xff] %v1599
    %1742 = vst [vmem:[%s1643 + $0x1c9] sm:$0xff] %v1600
    %1743 = vst [vmem:[%s1643 + $0x1d1] sm:$0xff] %v1601
    %1744 = vst [vmem:[%s1643 + $0x1e1] sm:$0xff] %v1602
    %1745 = vst [vmem:[%s1643 + $0x1e9] sm:$0xff] %v1603
    %1746 = vst [vmem:[%s1643 + $0x1f9] sm:$0xff] %v1604
    %1747 = vst [vmem:[%s1643 + $0x201] sm:$0xff] %v1605
    %1748 = vst [vmem:[%s1643 + $0x211] sm:$0xff] %v1606
    %1749 = vst [vmem:[%s1643 + $0x219] sm:$0xff] %v1607
    %1750 = vst [vmem:[%s1643 + $0x229] sm:$0xff] %v1608
    %1751 = vst [vmem:[%s1643 + $0x231] sm:$0xff] %v1609
    %1752 = vst [vmem:[%s1643 + $0x241] sm:$0xff] %v1610
    %1753 = vst [vmem:[%s1643 + $0x249] sm:$0xff] %v1611
    %1754 = vst [vmem:[%s1643 + $0x259] sm:$0xff] %v1612
    %1755 = vst [vmem:[%s1643 + $0x261] sm:$0xff] %v1613
    %1756 = vst [vmem:[%s1643 + $0x271] sm:$0xff] %v1614
    %1757 = vst [vmem:[%s1643 + $0x279] sm:$0xff] %v1615
    %1758 = vst [vmem:[%s1643 + $0x289] sm:$0xff] %v1616
    %1759 = vst [vmem:[%s1643 + $0x291] sm:$0xff] %v1617
    %1760 = vst [vmem:[%s1643 + $0x2a1] sm:$0xff] %v1618
    %1761 = vst [vmem:[%s1643 + $0x2a9] sm:$0xff] %v1619
    %1762 = vst [vmem:[%s1643 + $0x2b9] sm:$0xff] %v1620
    %1763 = vst [vmem:[%s1643 + $0x2c1] sm:$0xff] %v1621
    %1764 = vst [vmem:[%s1643 + $0x2d1] sm:$0xff] %v1622
    %1765 = vst [vmem:[%s1643 + $0x2d9] sm:$0xff] %v1623
    %1766 = vst [vmem:[%s1643 + $0x2e9] sm:$0xff] %v1624
    %1767 = vst [vmem:[%s1643 + $0x2f1] sm:$0xff] %v1625
    %1768 = vst [vmem:[%s1643 + $0x301] sm:$0xff] %v1626
    %1769 = vst [vmem:[%s1643 + $0x309] sm:$0xff] %v1627
    %1770 = vst [vmem:[%s1643 + $0x319] sm:$0xff] %v1628
    %1771 = vst [vmem:[%s1643 + $0x321] sm:$0xff] %v1629
    %v1772 = vld [vmem:[#allocation2] sm:$0xff]
    %v1773 = vld [vmem:[#allocation2 + $0x8] sm:$0xff]
    %v1774 = vld [vmem:[#allocation2 + $0x10] sm:$0x3]
    %v1775 = vld [vmem:[#allocation2 + $0x18] sm:$0xff]
    %v1776 = vld [vmem:[#allocation2 + $0x20] sm:$0xff]
    %v1777 = vld [vmem:[#allocation2 + $0x28] sm:$0x3]
    %v1778 = vld [vmem:[#allocation2 + $0x30] sm:$0xff]
    %v1779 = vld [vmem:[#allocation2 + $0x38] sm:$0xff]
    %v1780 = vld [vmem:[#allocation2 + $0x40] sm:$0x3]
    %v1781 = vld [vmem:[#allocation2 + $0x48] sm:$0xff]
    %v1782 = vld [vmem:[#allocation2 + $0x50] sm:$0xff]
    %v1783 = vld [vmem:[#allocation2 + $0x58] sm:$0x3]
    %v1784 = vld [vmem:[#allocation2 + $0x60] sm:$0xff]
    %v1785 = vld [vmem:[#allocation2 + $0x68] sm:$0xff]
    %v1786 = vld [vmem:[#allocation2 + $0x70] sm:$0x3]
    %v1787 = vld [vmem:[#allocation2 + $0x78] sm:$0xff]
    %v1788 = vld [vmem:[#allocation2 + $0x80] sm:$0xff]
    %v1789 = vld [vmem:[#allocation2 + $0x88] sm:$0x3]
    %v1790 = vld [vmem:[#allocation2 + $0x90] sm:$0xff]
    %v1791 = vld [vmem:[#allocation2 + $0x98] sm:$0xff]
    %v1792 = vld [vmem:[#allocation2 + $0xa0] sm:$0x3]
    %v1793 = vld [vmem:[#allocation2 + $0xa8] sm:$0xff]
    %v1794 = vld [vmem:[#allocation2 + $0xb0] sm:$0xff]
    %v1795 = vld [vmem:[#allocation2 + $0xb8] sm:$0x3]
    %v1796 = vld [vmem:[#allocation2 + $0xc0] sm:$0xff]
    %v1797 = vld [vmem:[#allocation2 + $0xc8] sm:$0xff]
    %v1798 = vld [vmem:[#allocation2 + $0xd0] sm:$0x3]
    %v1799 = vld [vmem:[#allocation2 + $0xd8] sm:$0xff]
    %v1800 = vld [vmem:[#allocation2 + $0xe0] sm:$0xff]
    %v1801 = vld [vmem:[#allocation2 + $0xe8] sm:$0x3]
    %v1802 = vld [vmem:[#allocation2 + $0xf0] sm:$0xff]
    %v1803 = vld [vmem:[#allocation2 + $0xf8] sm:$0xff]
    %v1804 = vld [vmem:[#allocation2 + $0x100] sm:$0x3]
    %v1805 = vld [vmem:[#allocation2 + $0x108] sm:$0xff]
    %v1806 = vld [vmem:[#allocation2 + $0x110] sm:$0xff]
    %v1807 = vld [vmem:[#allocation2 + $0x118] sm:$0x3]
    %v1808 = vld [vmem:[#allocation2 + $0x120] sm:$0xff]
    %v1809 = vld [vmem:[#allocation2 + $0x128] sm:$0xff]
    %v1810 = vld [vmem:[#allocation2 + $0x130] sm:$0x3]
    %v1811 = vld [vmem:[#allocation2 + $0x138] sm:$0xff]
    %v1812 = vld [vmem:[#allocation2 + $0x140] sm:$0xff]
    %v1813 = vld [vmem:[#allocation2 + $0x148] sm:$0x3]
    %v1814 = vld [vmem:[#allocation2 + $0x150] sm:$0xff]
    %v1815 = vld [vmem:[#allocation2 + $0x158] sm:$0xff]
    %v1816 = vld [vmem:[#allocation2 + $0x160] sm:$0x3]
    %v1817 = vld [vmem:[#allocation2 + $0x168] sm:$0xff]
    %v1818 = vld [vmem:[#allocation2 + $0x170] sm:$0xff]
    %v1819 = vld [vmem:[#allocation2 + $0x178] sm:$0x3]
    %v1820 = vld [vmem:[#allocation2 + $0x180] sm:$0xff]
    %v1821 = vld [vmem:[#allocation2 + $0x188] sm:$0xff]
    %v1822 = vld [vmem:[#allocation2 + $0x190] sm:$0x3]
    %v1823 = vld [vmem:[#allocation2 + $0x198] sm:$0xff]
    %v1824 = vld [vmem:[#allocation2 + $0x1a0] sm:$0xff]
    %v1825 = vld [vmem:[#allocation2 + $0x1a8] sm:$0x3]
    %v1826 = vld [vmem:[#allocation2 + $0x1b0] sm:$0xff]
    %v1827 = vld [vmem:[#allocation2 + $0x1b8] sm:$0xff]
    %v1828 = vld [vmem:[#allocation2 + $0x1c0] sm:$0x3]
    %v1829 = vld [vmem:[#allocation2 + $0x1c8] sm:$0xff]
    %v1830 = vld [vmem:[#allocation2 + $0x1d0] sm:$0xff]
    %v1831 = vld [vmem:[#allocation2 + $0x1d8] sm:$0x3]
    %v1832 = vld [vmem:[#allocation2 + $0x1e0] sm:$0xff]
    %v1833 = vld [vmem:[#allocation2 + $0x1e8] sm:$0xff]
    %v1834 = vld [vmem:[#allocation2 + $0x1f0] sm:$0x3]
    %v1835 = vld [vmem:[#allocation2 + $0x1f8] sm:$0xff]
    %v1836 = vld [vmem:[#allocation2 + $0x200] sm:$0xff]
    %v1837 = vld [vmem:[#allocation2 + $0x208] sm:$0x3]
    %v1838 = vld [vmem:[#allocation2 + $0x210] sm:$0xff]
    %v1839 = vld [vmem:[#allocation2 + $0x218] sm:$0xff]
    %v1840 = vld [vmem:[#allocation2 + $0x220] sm:$0x3]
    %v1841 = vld [vmem:[#allocation2 + $0x228] sm:$0xff]
    %v1842 = vld [vmem:[#allocation2 + $0x230] sm:$0xff]
    %v1843 = vld [vmem:[#allocation2 + $0x238] sm:$0x3]
    %v1844 = vld [vmem:[#allocation2 + $0x240] sm:$0xff]
    %v1845 = vld [vmem:[#allocation2 + $0x248] sm:$0xff]
    %v1846 = vld [vmem:[#allocation2 + $0x250] sm:$0x3]
    %v1847 = vld [vmem:[#allocation2 + $0x258] sm:$0xff]
    %v1848 = vld [vmem:[#allocation2 + $0x260] sm:$0xff]
    %v1849 = vld [vmem:[#allocation2 + $0x268] sm:$0x3]
    %v1850 = vld [vmem:[#allocation2 + $0x270] sm:$0xff]
    %v1851 = vld [vmem:[#allocation2 + $0x278] sm:$0xff]
    %v1852 = vld [vmem:[#allocation2 + $0x280] sm:$0x3]
    %v1853 = vld [vmem:[#allocation2 + $0x288] sm:$0xff]
    %v1854 = vld [vmem:[#allocation2 + $0x290] sm:$0xff]
    %v1855 = vld [vmem:[#allocation2 + $0x298] sm:$0x3]
    %v1856 = vld [vmem:[#allocation2 + $0x2a0] sm:$0xff]
    %v1857 = vld [vmem:[#allocation2 + $0x2a8] sm:$0xff]
    %v1858 = vld [vmem:[#allocation2 + $0x2b0] sm:$0x3]
    %v1859 = vld [vmem:[#allocation2 + $0x2b8] sm:$0xff]
    %v1860 = vld [vmem:[#allocation2 + $0x2c0] sm:$0xff]
    %v1861 = vld [vmem:[#allocation2 + $0x2c8] sm:$0x3]
    %v1862 = vld [vmem:[#allocation2 + $0x2d0] sm:$0xff]
    %v1863 = vld [vmem:[#allocation2 + $0x2d8] sm:$0xff]
    %v1864 = vld [vmem:[#allocation2 + $0x2e0] sm:$0x3]
    %v1865 = vld [vmem:[#allocation2 + $0x2e8] sm:$0xff]
    %v1866 = vld [vmem:[#allocation2 + $0x2f0] sm:$0xff]
    %v1867 = vld [vmem:[#allocation2 + $0x2f8] sm:$0x3]
    %v1868 = vld [vmem:[#allocation2 + $0x300] sm:$0xff]
    %v1869 = vld [vmem:[#allocation2 + $0x308] sm:$0xff]
    %v1870 = vld [vmem:[#allocation2 + $0x310] sm:$0x3]
    %v1871 = vld [vmem:[#allocation2 + $0x318] sm:$0xff]
    %v1872 = vld [vmem:[#allocation2 + $0x320] sm:$0xff]
    %v1873 = vld [vmem:[#allocation2 + $0x328] sm:$0x3]
    %v1874 = vld [vmem:[#allocation2 + $0x330] sm:$0xff]
    %v1875 = vld [vmem:[#allocation2 + $0x338] sm:$0xff]
    %v1876 = vld [vmem:[#allocation2 + $0x340] sm:$0x3]
    %v1877 = vld [vmem:[#allocation2 + $0x348] sm:$0xff]
    %v1878 = vld [vmem:[#allocation2 + $0x350] sm:$0xff]
    %v1879 = vld [vmem:[#allocation2 + $0x358] sm:$0x3]
    %vm1976 = vcmask 1046528
    %v1977 = vrot.slane %v1772, 1
    %v1978 = vrot.slane %v1773, 1
    %v1979 = vsel %vm1976, %v1977, %v1978
    %v1980 = vrot.slane %v1774, 1
    %v1981 = vsel %vm1976, %v1978, %v1980
    %v1982 = vrot.slane %v1775, 1
    %v1983 = vrot.slane %v1776, 1
    %v1984 = vsel %vm1976, %v1982, %v1983
    %v1985 = vrot.slane %v1777, 1
    %v1986 = vsel %vm1976, %v1983, %v1985
    %v1987 = vrot.slane %v1778, 1
    %v1988 = vrot.slane %v1779, 1
    %v1989 = vsel %vm1976, %v1987, %v1988
    %v1990 = vrot.slane %v1780, 1
    %v1991 = vsel %vm1976, %v1988, %v1990
    %v1992 = vrot.slane %v1781, 1
    %v1993 = vrot.slane %v1782, 1
    %v1994 = vsel %vm1976, %v1992, %v1993
    %v1995 = vrot.slane %v1783, 1
    %v1996 = vsel %vm1976, %v1993, %v1995
    %v1997 = vrot.slane %v1784, 1
    %v1998 = vrot.slane %v1785, 1
    %v1999 = vsel %vm1976, %v1997, %v1998
    %v2000 = vrot.slane %v1786, 1
    %v2001 = vsel %vm1976, %v1998, %v2000
    %v2002 = vrot.slane %v1787, 1
    %v2003 = vrot.slane %v1788, 1
    %v2004 = vsel %vm1976, %v2002, %v2003
    %v2005 = vrot.slane %v1789, 1
    %v2006 = vsel %vm1976, %v2003, %v2005
    %v2007 = vrot.slane %v1790, 1
    %v2008 = vrot.slane %v1791, 1
    %v2009 = vsel %vm1976, %v2007, %v2008
    %v2010 = vrot.slane %v1792, 1
    %v2011 = vsel %vm1976, %v2008, %v2010
    %v2012 = vrot.slane %v1793, 1
    %v2013 = vrot.slane %v1794, 1
    %v2014 = vsel %vm1976, %v2012, %v2013
    %v2015 = vrot.slane %v1795, 1
    %v2016 = vsel %vm1976, %v2013, %v2015
    %v2017 = vrot.slane %v1796, 1
    %v2018 = vrot.slane %v1797, 1
    %v2019 = vsel %vm1976, %v2017, %v2018
    %v2020 = vrot.slane %v1798, 1
    %v2021 = vsel %vm1976, %v2018, %v2020
    %v2022 = vrot.slane %v1799, 1
    %v2023 = vrot.slane %v1800, 1
    %v2024 = vsel %vm1976, %v2022, %v2023
    %v2025 = vrot.slane %v1801, 1
    %v2026 = vsel %vm1976, %v2023, %v2025
    %v2027 = vrot.slane %v1802, 1
    %v2028 = vrot.slane %v1803, 1
    %v2029 = vsel %vm1976, %v2027, %v2028
    %v2030 = vrot.slane %v1804, 1
    %v2031 = vsel %vm1976, %v2028, %v2030
    %v2032 = vrot.slane %v1805, 1
    %v2033 = vrot.slane %v1806, 1
    %v2034 = vsel %vm1976, %v2032, %v2033
    %v2035 = vrot.slane %v1807, 1
    %v2036 = vsel %vm1976, %v2033, %v2035
    %v2037 = vrot.slane %v1808, 1
    %v2038 = vrot.slane %v1809, 1
    %v2039 = vsel %vm1976, %v2037, %v2038
    %v2040 = vrot.slane %v1810, 1
    %v2041 = vsel %vm1976, %v2038, %v2040
    %v2042 = vrot.slane %v1811, 1
    %v2043 = vrot.slane %v1812, 1
    %v2044 = vsel %vm1976, %v2042, %v2043
    %v2045 = vrot.slane %v1813, 1
    %v2046 = vsel %vm1976, %v2043, %v2045
    %v2047 = vrot.slane %v1814, 1
    %v2048 = vrot.slane %v1815, 1
    %v2049 = vsel %vm1976, %v2047, %v2048
    %v2050 = vrot.slane %v1816, 1
    %v2051 = vsel %vm1976, %v2048, %v2050
    %v2052 = vrot.slane %v1817, 1
    %v2053 = vrot.slane %v1818, 1
    %v2054 = vsel %vm1976, %v2052, %v2053
    %v2055 = vrot.slane %v1819, 1
    %v2056 = vsel %vm1976, %v2053, %v2055
    %v2057 = vrot.slane %v1826, 1
    %v2058 = vrot.slane %v1827, 1
    %v2059 = vsel %vm1976, %v2057, %v2058
    %v2060 = vrot.slane %v1828, 1
    %v2061 = vsel %vm1976, %v2058, %v2060
    %v2062 = vrot.slane %v1829, 1
    %v2063 = vrot.slane %v1830, 1
    %v2064 = vsel %vm1976, %v2062, %v2063
    %v2065 = vrot.slane %v1831, 1
    %v2066 = vsel %vm1976, %v2063, %v2065
    %v2067 = vrot.slane %v1832, 1
    %v2068 = vrot.slane %v1833, 1
    %v2069 = vsel %vm1976, %v2067, %v2068
    %v2070 = vrot.slane %v1834, 1
    %v2071 = vsel %vm1976, %v2068, %v2070
    %v2072 = vrot.slane %v1835, 1
    %v2073 = vrot.slane %v1836, 1
    %v2074 = vsel %vm1976, %v2072, %v2073
    %v2075 = vrot.slane %v1837, 1
    %v2076 = vsel %vm1976, %v2073, %v2075
    %v2077 = vrot.slane %v1838, 1
    %v2078 = vrot.slane %v1839, 1
    %v2079 = vsel %vm1976, %v2077, %v2078
    %v2080 = vrot.slane %v1840, 1
    %v2081 = vsel %vm1976, %v2078, %v2080
    %v2082 = vrot.slane %v1841, 1
    %v2083 = vrot.slane %v1842, 1
    %v2084 = vsel %vm1976, %v2082, %v2083
    %v2085 = vrot.slane %v1843, 1
    %v2086 = vsel %vm1976, %v2083, %v2085
    %v2087 = vrot.slane %v1844, 1
    %v2088 = vrot.slane %v1845, 1
    %v2089 = vsel %vm1976, %v2087, %v2088
    %v2090 = vrot.slane %v1846, 1
    %v2091 = vsel %vm1976, %v2088, %v2090
    %v2092 = vrot.slane %v1847, 1
    %v2093 = vrot.slane %v1848, 1
    %v2094 = vsel %vm1976, %v2092, %v2093
    %v2095 = vrot.slane %v1849, 1
    %v2096 = vsel %vm1976, %v2093, %v2095
    %v2097 = vrot.slane %v1850, 1
    %v2098 = vrot.slane %v1851, 1
    %v2099 = vsel %vm1976, %v2097, %v2098
    %v2100 = vrot.slane %v1852, 1
    %v2101 = vsel %vm1976, %v2098, %v2100
    %v2102 = vrot.slane %v1853, 1
    %v2103 = vrot.slane %v1854, 1
    %v2104 = vsel %vm1976, %v2102, %v2103
    %v2105 = vrot.slane %v1855, 1
    %v2106 = vsel %vm1976, %v2103, %v2105
    %v2107 = vrot.slane %v1856, 1
    %v2108 = vrot.slane %v1857, 1
    %v2109 = vsel %vm1976, %v2107, %v2108
    %v2110 = vrot.slane %v1858, 1
    %v2111 = vsel %vm1976, %v2108, %v2110
    %v2112 = vrot.slane %v1859, 1
    %v2113 = vrot.slane %v1860, 1
    %v2114 = vsel %vm1976, %v2112, %v2113
    %v2115 = vrot.slane %v1861, 1
    %v2116 = vsel %vm1976, %v2113, %v2115
    %v2117 = vrot.slane %v1862, 1
    %v2118 = vrot.slane %v1863, 1
    %v2119 = vsel %vm1976, %v2117, %v2118
    %v2120 = vrot.slane %v1864, 1
    %v2121 = vsel %vm1976, %v2118, %v2120
    %v2122 = vrot.slane %v1865, 1
    %v2123 = vrot.slane %v1866, 1
    %v2124 = vsel %vm1976, %v2122, %v2123
    %v2125 = vrot.slane %v1867, 1
    %v2126 = vsel %vm1976, %v2123, %v2125
    %v2127 = vrot.slane %v1868, 1
    %v2128 = vrot.slane %v1869, 1
    %v2129 = vsel %vm1976, %v2127, %v2128
    %v2130 = vrot.slane %v1870, 1
    %v2131 = vsel %vm1976, %v2128, %v2130
    %v2132 = vrot.slane %v1871, 1
    %v2133 = vrot.slane %v1872, 1
    %v2134 = vsel %vm1976, %v2132, %v2133
    %v2135 = vrot.slane %v1873, 1
    %v2136 = vsel %vm1976, %v2133, %v2135
    %vm2201 = vcmask 1045504
    %v2202 = vrot.slane %v1772, 2
    %v2203 = vrot.slane %v1773, 2
    %v2204 = vsel %vm2201, %v2202, %v2203
    %v2205 = vrot.slane %v1774, 2
    %v2206 = vsel %vm2201, %v2203, %v2205
    %v2207 = vrot.slane %v1775, 2
    %v2208 = vrot.slane %v1776, 2
    %v2209 = vsel %vm2201, %v2207, %v2208
    %v2210 = vrot.slane %v1777, 2
    %v2211 = vsel %vm2201, %v2208, %v2210
    %v2212 = vrot.slane %v1778, 2
    %v2213 = vrot.slane %v1779, 2
    %v2214 = vsel %vm2201, %v2212, %v2213
    %v2215 = vrot.slane %v1780, 2
    %v2216 = vsel %vm2201, %v2213, %v2215
    %v2217 = vrot.slane %v1781, 2
    %v2218 = vrot.slane %v1782, 2
    %v2219 = vsel %vm2201, %v2217, %v2218
    %v2220 = vrot.slane %v1783, 2
    %v2221 = vsel %vm2201, %v2218, %v2220
    %v2222 = vrot.slane %v1784, 2
    %v2223 = vrot.slane %v1785, 2
    %v2224 = vsel %vm2201, %v2222, %v2223
    %v2225 = vrot.slane %v1786, 2
    %v2226 = vsel %vm2201, %v2223, %v2225
    %v2227 = vrot.slane %v1787, 2
    %v2228 = vrot.slane %v1788, 2
    %v2229 = vsel %vm2201, %v2227, %v2228
    %v2230 = vrot.slane %v1789, 2
    %v2231 = vsel %vm2201, %v2228, %v2230
    %v2232 = vrot.slane %v1790, 2
    %v2233 = vrot.slane %v1791, 2
    %v2234 = vsel %vm2201, %v2232, %v2233
    %v2235 = vrot.slane %v1792, 2
    %v2236 = vsel %vm2201, %v2233, %v2235
    %v2237 = vrot.slane %v1793, 2
    %v2238 = vrot.slane %v1794, 2
    %v2239 = vsel %vm2201, %v2237, %v2238
    %v2240 = vrot.slane %v1795, 2
    %v2241 = vsel %vm2201, %v2238, %v2240
    %v2242 = vrot.slane %v1796, 2
    %v2243 = vrot.slane %v1797, 2
    %v2244 = vsel %vm2201, %v2242, %v2243
    %v2245 = vrot.slane %v1798, 2
    %v2246 = vsel %vm2201, %v2243, %v2245
    %v2247 = vrot.slane %v1799, 2
    %v2248 = vrot.slane %v1800, 2
    %v2249 = vsel %vm2201, %v2247, %v2248
    %v2250 = vrot.slane %v1801, 2
    %v2251 = vsel %vm2201, %v2248, %v2250
    %v2252 = vrot.slane %v1802, 2
    %v2253 = vrot.slane %v1803, 2
    %v2254 = vsel %vm2201, %v2252, %v2253
    %v2255 = vrot.slane %v1804, 2
    %v2256 = vsel %vm2201, %v2253, %v2255
    %v2257 = vrot.slane %v1805, 2
    %v2258 = vrot.slane %v1806, 2
    %v2259 = vsel %vm2201, %v2257, %v2258
    %v2260 = vrot.slane %v1807, 2
    %v2261 = vsel %vm2201, %v2258, %v2260
    %v2262 = vrot.slane %v1808, 2
    %v2263 = vrot.slane %v1809, 2
    %v2264 = vsel %vm2201, %v2262, %v2263
    %v2265 = vrot.slane %v1810, 2
    %v2266 = vsel %vm2201, %v2263, %v2265
    %v2267 = vrot.slane %v1811, 2
    %v2268 = vrot.slane %v1812, 2
    %v2269 = vsel %vm2201, %v2267, %v2268
    %v2270 = vrot.slane %v1813, 2
    %v2271 = vsel %vm2201, %v2268, %v2270
    %v2272 = vrot.slane %v1814, 2
    %v2273 = vrot.slane %v1815, 2
    %v2274 = vsel %vm2201, %v2272, %v2273
    %v2275 = vrot.slane %v1816, 2
    %v2276 = vsel %vm2201, %v2273, %v2275
    %v2277 = vrot.slane %v1817, 2
    %v2278 = vrot.slane %v1818, 2
    %v2279 = vsel %vm2201, %v2277, %v2278
    %v2280 = vrot.slane %v1819, 2
    %v2281 = vsel %vm2201, %v2278, %v2280
    %v2282 = vrot.slane %v1826, 2
    %v2283 = vrot.slane %v1827, 2
    %v2284 = vsel %vm2201, %v2282, %v2283
    %v2285 = vrot.slane %v1828, 2
    %v2286 = vsel %vm2201, %v2283, %v2285
    %v2287 = vrot.slane %v1829, 2
    %v2288 = vrot.slane %v1830, 2
    %v2289 = vsel %vm2201, %v2287, %v2288
    %v2290 = vrot.slane %v1831, 2
    %v2291 = vsel %vm2201, %v2288, %v2290
    %v2292 = vrot.slane %v1832, 2
    %v2293 = vrot.slane %v1833, 2
    %v2294 = vsel %vm2201, %v2292, %v2293
    %v2295 = vrot.slane %v1834, 2
    %v2296 = vsel %vm2201, %v2293, %v2295
    %v2297 = vrot.slane %v1835, 2
    %v2298 = vrot.slane %v1836, 2
    %v2299 = vsel %vm2201, %v2297, %v2298
    %v2300 = vrot.slane %v1837, 2
    %v2301 = vsel %vm2201, %v2298, %v2300
    %v2302 = vrot.slane %v1838, 2
    %v2303 = vrot.slane %v1839, 2
    %v2304 = vsel %vm2201, %v2302, %v2303
    %v2305 = vrot.slane %v1840, 2
    %v2306 = vsel %vm2201, %v2303, %v2305
    %v2307 = vrot.slane %v1841, 2
    %v2308 = vrot.slane %v1842, 2
    %v2309 = vsel %vm2201, %v2307, %v2308
    %v2310 = vrot.slane %v1843, 2
    %v2311 = vsel %vm2201, %v2308, %v2310
    %v2312 = vrot.slane %v1844, 2
    %v2313 = vrot.slane %v1845, 2
    %v2314 = vsel %vm2201, %v2312, %v2313
    %v2315 = vrot.slane %v1846, 2
    %v2316 = vsel %vm2201, %v2313, %v2315
    %v2317 = vrot.slane %v1847, 2
    %v2318 = vrot.slane %v1848, 2
    %v2319 = vsel %vm2201, %v2317, %v2318
    %v2320 = vrot.slane %v1849, 2
    %v2321 = vsel %vm2201, %v2318, %v2320
    %v2322 = vrot.slane %v1850, 2
    %v2323 = vrot.slane %v1851, 2
    %v2324 = vsel %vm2201, %v2322, %v2323
    %v2325 = vrot.slane %v1852, 2
    %v2326 = vsel %vm2201, %v2323, %v2325
    %v2327 = vrot.slane %v1853, 2
    %v2328 = vrot.slane %v1854, 2
    %v2329 = vsel %vm2201, %v2327, %v2328
    %v2330 = vrot.slane %v1855, 2
    %v2331 = vsel %vm2201, %v2328, %v2330
    %v2332 = vrot.slane %v1856, 2
    %v2333 = vrot.slane %v1857, 2
    %v2334 = vsel %vm2201, %v2332, %v2333
    %v2335 = vrot.slane %v1858, 2
    %v2336 = vsel %vm2201, %v2333, %v2335
    %v2337 = vrot.slane %v1859, 2
    %v2338 = vrot.slane %v1860, 2
    %v2339 = vsel %vm2201, %v2337, %v2338
    %v2340 = vrot.slane %v1861, 2
    %v2341 = vsel %vm2201, %v2338, %v2340
    %v2342 = vrot.slane %v1862, 2
    %v2343 = vrot.slane %v1863, 2
    %v2344 = vsel %vm2201, %v2342, %v2343
    %v2345 = vrot.slane %v1864, 2
    %v2346 = vsel %vm2201, %v2343, %v2345
    %v2347 = vrot.slane %v1865, 2
    %v2348 = vrot.slane %v1866, 2
    %v2349 = vsel %vm2201, %v2347, %v2348
    %v2350 = vrot.slane %v1867, 2
    %v2351 = vsel %vm2201, %v2348, %v2350
    %v2352 = vrot.slane %v1868, 2
    %v2353 = vrot.slane %v1869, 2
    %v2354 = vsel %vm2201, %v2352, %v2353
    %v2355 = vrot.slane %v1870, 2
    %v2356 = vsel %vm2201, %v2353, %v2355
    %v2357 = vrot.slane %v1871, 2
    %v2358 = vrot.slane %v1872, 2
    %v2359 = vsel %vm2201, %v2357, %v2358
    %v2360 = vrot.slane %v1873, 2
    %v2361 = vsel %vm2201, %v2358, %v2360
    %v2432 = vrot.slane %v1820, 1
    %v2433 = vrot.slane %v1821, 1
    %v2434 = vsel %vm1976, %v2432, %v2433
    %v2435 = vrot.slane %v1822, 1
    %v2436 = vsel %vm1976, %v2433, %v2435
    %v2437 = vrot.slane %v1874, 1
    %v2438 = vrot.slane %v1875, 1
    %v2439 = vsel %vm1976, %v2437, %v2438
    %v2440 = vrot.slane %v1876, 1
    %v2441 = vsel %vm1976, %v2438, %v2440
    %v2446 = vrot.slane %v1820, 2
    %v2447 = vrot.slane %v1821, 2
    %v2448 = vsel %vm2201, %v2446, %v2447
    %v2449 = vrot.slane %v1822, 2
    %v2450 = vsel %vm2201, %v2447, %v2449
    %v2451 = vrot.slane %v1874, 2
    %v2452 = vrot.slane %v1875, 2
    %v2453 = vsel %vm2201, %v2451, %v2452
    %v2454 = vrot.slane %v1876, 2
    %v2455 = vsel %vm2201, %v2452, %v2454
    %v2466 = vrot.slane %v1823, 1
    %v2467 = vrot.slane %v1824, 1
    %v2468 = vsel %vm1976, %v2466, %v2467
    %v2469 = vrot.slane %v1825, 1
    %v2470 = vsel %vm1976, %v2467, %v2469
    %v2471 = vrot.slane %v1877, 1
    %v2472 = vrot.slane %v1878, 1
    %v2473 = vsel %vm1976, %v2471, %v2472
    %v2474 = vrot.slane %v1879, 1
    %v2475 = vsel %vm1976, %v2472, %v2474
    %v2480 = vrot.slane %v1823, 2
    %v2481 = vrot.slane %v1824, 2
    %v2482 = vsel %vm2201, %v2480, %v2481
    %v2483 = vrot.slane %v1825, 2
    %v2484 = vsel %vm2201, %v2481, %v2483
    %v2485 = vrot.slane %v1877, 2
    %v2486 = vrot.slane %v1878, 2
    %v2487 = vsel %vm2201, %v2485, %v2486
    %v2488 = vrot.slane %v1879, 2
    %v2489 = vsel %vm2201, %v2486, %v2488
    %v2494 = vld [vmem:[#allocation8] sm:$0xff]
    %v2495 = vld [vmem:[#allocation8 + $0x8] sm:$0xff]
    %v2496 = vld [vmem:[#allocation8 + $0x10] sm:$0xff]
    %v2497 = vld [vmem:[#allocation8 + $0x18] sm:$0xff]
    %v2498 = vld [vmem:[#allocation8 + $0x20] sm:$0xff]
    %v2499 = vld [vmem:[#allocation8 + $0x28] sm:$0xff]
    %v2500 = vld [vmem:[#allocation8 + $0x30] sm:$0xff]
    %v2501 = vld [vmem:[#allocation8 + $0x38] sm:$0xff]
    %v2502 = vld [vmem:[#allocation8 + $0x40] sm:$0xff]
    %v2503 = vld [vmem:[#allocation8 + $0x48] sm:$0xff]
    %v2504 = vld [vmem:[#allocation8 + $0x50] sm:$0xff]
    %v2505 = vld [vmem:[#allocation8 + $0x58] sm:$0xff]
    %v2506 = vld [vmem:[#allocation8 + $0x60] sm:$0xff]
    %v2507 = vld [vmem:[#allocation8 + $0x68] sm:$0xff]
    %v2508 = vld [vmem:[#allocation8 + $0x70] sm:$0xff]
    %v2509 = vld [vmem:[#allocation8 + $0x78] sm:$0xff]
    %v2510 = vld [vmem:[#allocation8 + $0x80] sm:$0xff]
    %v2511 = vld [vmem:[#allocation8 + $0x88] sm:$0xff]
    %v2512 = vld [vmem:[#allocation8 + $0x90] sm:$0xff]
    %v2513 = vld [vmem:[#allocation8 + $0x98] sm:$0xff]
    %v2514 = vld [vmem:[#allocation8 + $0xa0] sm:$0xff]
    %v2515 = vld [vmem:[#allocation8 + $0xa8] sm:$0xff]
    %v2516 = vld [vmem:[#allocation8 + $0xb0] sm:$0xff]
    %v2517 = vld [vmem:[#allocation8 + $0xb8] sm:$0xff]
    %v2518 = vld [vmem:[#allocation8 + $0xc0] sm:$0xff]
    %v2519 = vld [vmem:[#allocation8 + $0xc8] sm:$0xff]
    %v2520 = vld [vmem:[#allocation8 + $0xd0] sm:$0xff]
    %v2521 = vld [vmem:[#allocation8 + $0xd8] sm:$0xff]
    %v2522 = vld [vmem:[#allocation8 + $0xe0] sm:$0xff]
    %v2523 = vld [vmem:[#allocation8 + $0xe8] sm:$0xff]
    %v2524 = vld [vmem:[#allocation8 + $0xf0] sm:$0xff]
    %v2525 = vld [vmem:[#allocation8 + $0xf8] sm:$0xff]
    %v2526 = vld [vmem:[#allocation8 + $0x100] sm:$0xff]
    %v2527 = vld [vmem:[#allocation8 + $0x108] sm:$0xff]
    %v2528 = vld [vmem:[#allocation8 + $0x110] sm:$0xff]
    %v2529 = vld [vmem:[#allocation8 + $0x118] sm:$0xff]
    %v2530 = vld [vmem:[#allocation8 + $0x120] sm:$0xff]
    %v2531 = vld [vmem:[#allocation8 + $0x128] sm:$0xff]
    %v2532 = vld [vmem:[#allocation8 + $0x130] sm:$0xff]
    %v2533 = vld [vmem:[#allocation8 + $0x138] sm:$0xff]
    %v2534 = vld [vmem:[#allocation8 + $0x140] sm:$0xff]
    %v2535 = vld [vmem:[#allocation8 + $0x148] sm:$0xff]
    %v2536 = vld [vmem:[#allocation8 + $0x150] sm:$0xff]
    %v2537 = vld [vmem:[#allocation8 + $0x158] sm:$0xff]
    %v2538 = vld [vmem:[#allocation8 + $0x160] sm:$0xff]
    %v2539 = vld [vmem:[#allocation8 + $0x168] sm:$0xff]
    %v2540 = vld [vmem:[#allocation8 + $0x170] sm:$0xff]
    %v2541 = vld [vmem:[#allocation8 + $0x178] sm:$0xff]
    %v2542 = vld [vmem:[#allocation8 + $0x180] sm:$0xff]
    %v2543 = vld [vmem:[#allocation8 + $0x188] sm:$0xff]
    %v2544 = vld [vmem:[#allocation8 + $0x190] sm:$0xff]
    %v2545 = vld [vmem:[#allocation8 + $0x198] sm:$0xff]
    %v2546 = vld [vmem:[#allocation8 + $0x1a0] sm:$0xff]
    %v2547 = vld [vmem:[#allocation8 + $0x1a8] sm:$0xff]
    %v2548 = vld [vmem:[#allocation8 + $0x1b0] sm:$0xff]
    %v2549 = vld [vmem:[#allocation8 + $0x1b8] sm:$0xff]
    %v2550 = vld [vmem:[#allocation8 + $0x1c0] sm:$0xff]
    %v2551 = vld [vmem:[#allocation8 + $0x1c8] sm:$0xff]
    %v2552 = vld [vmem:[#allocation8 + $0x1d0] sm:$0xff]
    %v2553 = vld [vmem:[#allocation8 + $0x1d8] sm:$0xff]
    %v2554 = vld [vmem:[#allocation8 + $0x1e0] sm:$0xff]
    %v2555 = vld [vmem:[#allocation8 + $0x1e8] sm:$0xff]
    %v2556 = vld [vmem:[#allocation8 + $0x1f0] sm:$0xff]
    %v2557 = vld [vmem:[#allocation8 + $0x1f8] sm:$0xff]
    %v2558 = vld [vmem:[#allocation8 + $0x200] sm:$0xff]
    %v2559 = vld [vmem:[#allocation8 + $0x208] sm:$0xff]
    %v2560 = vld [vmem:[#allocation8 + $0x210] sm:$0xff]
    %v2561 = vld [vmem:[#allocation8 + $0x218] sm:$0xff]
    %v2562 = vld [vmem:[#allocation8 + $0x220] sm:$0xff]
    %v2563 = vld [vmem:[#allocation8 + $0x228] sm:$0xff]
    %v2564 = vld [vmem:[#allocation8 + $0x230] sm:$0xff]
    %v2565 = vld [vmem:[#allocation8 + $0x238] sm:$0xff]
    %v2566 = vld [vmem:[#allocation8 + $0x240] sm:$0xff]
    %v2567 = vld [vmem:[#allocation8 + $0x248] sm:$0xff]
    %v2568 = vld [vmem:[#allocation8 + $0x250] sm:$0xff]
    %v2569 = vld [vmem:[#allocation8 + $0x258] sm:$0xff]
    %v2570 = vld [vmem:[#allocation8 + $0x260] sm:$0xff]
    %v2571 = vld [vmem:[#allocation8 + $0x268] sm:$0xff]
    %v2572 = vld [vmem:[#allocation8 + $0x270] sm:$0xff]
    %v2573 = vld [vmem:[#allocation8 + $0x278] sm:$0xff]
    %v2574 = vld [vmem:[#allocation8 + $0x280] sm:$0xff]
    %v2575 = vld [vmem:[#allocation8 + $0x288] sm:$0xff]
    %v2576 = vld [vmem:[#allocation8 + $0x290] sm:$0xff]
    %v2577 = vld [vmem:[#allocation8 + $0x298] sm:$0xff]
    %v2578 = vld [vmem:[#allocation8 + $0x2a0] sm:$0xff]
    %v2579 = vld [vmem:[#allocation8 + $0x2a8] sm:$0xff]
    %v2580 = vld [vmem:[#allocation8 + $0x2b0] sm:$0xff]
    %v2581 = vld [vmem:[#allocation8 + $0x2b8] sm:$0xff]
    %v2582 = vld [vmem:[#allocation8 + $0x2c0] sm:$0xff]
    %v2583 = vld [vmem:[#allocation8 + $0x2c8] sm:$0xff]
    %v2584 = vld [vmem:[#allocation8 + $0x2d0] sm:$0xff]
    %v2585 = vld [vmem:[#allocation8 + $0x2d8] sm:$0xff]
    %v2586 = vld [vmem:[#allocation8 + $0x2e0] sm:$0xff]
    %v2587 = vld [vmem:[#allocation8 + $0x2e8] sm:$0xff]
    %v2588 = vld [vmem:[#allocation8 + $0x2f0] sm:$0xff]
    %v2589 = vld [vmem:[#allocation8 + $0x2f8] sm:$0xff]
    %v2590 = vld [vmem:[#allocation8 + $0x300] sm:$0xff]
    %v2591 = vld [vmem:[#allocation8 + $0x308] sm:$0xff]
    %v2592 = vld [vmem:[#allocation8 + $0x310] sm:$0xff]
    %v2593 = vld [vmem:[#allocation8 + $0x318] sm:$0xff]
    %v2594 = vld [vmem:[#allocation8 + $0x320] sm:$0xff]
    %v2595 = vld [vmem:[#allocation8 + $0x328] sm:$0xff]
    %v2596 = vld [vmem:[#allocation8 + $0x330] sm:$0xff]
    %v2597 = vld [vmem:[#allocation8 + $0x338] sm:$0xff]
    %v2598 = vld [vmem:[#allocation8 + $0x340] sm:$0xff]
    %v2599 = vld [vmem:[#allocation8 + $0x348] sm:$0xff]
    %v2600 = vld [vmem:[#allocation8 + $0x350] sm:$0xff]
    %v2601 = vld [vmem:[#allocation8 + $0x358] sm:$0xff]
    %v2602 = vld [vmem:[#allocation8 + $0x360] sm:$0xff]
    %v2603 = vld [vmem:[#allocation8 + $0x368] sm:$0xff]
    %v2604 = vld [vmem:[#allocation8 + $0x370] sm:$0xff]
    %v2605 = vld [vmem:[#allocation8 + $0x378] sm:$0xff]
    %v2606 = vld [vmem:[#allocation8 + $0x380] sm:$0xff]
    %v2607 = vld [vmem:[#allocation8 + $0x388] sm:$0xff]
    %v2608 = vld [vmem:[#allocation8 + $0x390] sm:$0xff]
    %v2609 = vld [vmem:[#allocation8 + $0x398] sm:$0xff]
    %v2610 = vld [vmem:[#allocation8 + $0x3a0] sm:$0xff]
    %v2611 = vld [vmem:[#allocation8 + $0x3a8] sm:$0xff]
    %v2612 = vld [vmem:[#allocation8 + $0x3b0] sm:$0xff]
    %v2613 = vld [vmem:[#allocation8 + $0x3b8] sm:$0xff]
    %v2614 = vld [vmem:[#allocation8 + $0x3c0] sm:$0xff]
    %v2615 = vld [vmem:[#allocation8 + $0x3c8] sm:$0xff]
    %v2616 = vld [vmem:[#allocation8 + $0x3d0] sm:$0xff]
    %v2617 = vld [vmem:[#allocation8 + $0x3d8] sm:$0xff]
    %v2618 = vld [vmem:[#allocation8 + $0x3e0] sm:$0xff]
    %v2619 = vld [vmem:[#allocation8 + $0x3e8] sm:$0xff]
    %v2620 = vld [vmem:[#allocation8 + $0x3f0] sm:$0xff]
    %v2621 = vld [vmem:[#allocation8 + $0x3f8] sm:$0xff]
    %v2622 = vld [vmem:[#allocation8 + $0x400] sm:$0xff]
    %v2623 = vld [vmem:[#allocation8 + $0x408] sm:$0xff]
    %v2624 = vld [vmem:[#allocation8 + $0x410] sm:$0xff]
    %v2625 = vld [vmem:[#allocation8 + $0x418] sm:$0xff]
    %v2626 = vld [vmem:[#allocation8 + $0x420] sm:$0xff]
    %v2627 = vld [vmem:[#allocation8 + $0x428] sm:$0xff]
    %v2628 = vld [vmem:[#allocation8 + $0x430] sm:$0xff]
    %v2629 = vld [vmem:[#allocation8 + $0x438] sm:$0xff]
    %v2630 = vld [vmem:[#allocation8 + $0x440] sm:$0xff]
    %v2631 = vld [vmem:[#allocation8 + $0x448] sm:$0xff]
    %v2632 = vld [vmem:[#allocation8 + $0x450] sm:$0xff]
    %v2633 = vld [vmem:[#allocation8 + $0x458] sm:$0xff]
    %v2634 = vld [vmem:[#allocation8 + $0x460] sm:$0xff]
    %v2635 = vld [vmem:[#allocation8 + $0x468] sm:$0xff]
    %v2636 = vld [vmem:[#allocation8 + $0x470] sm:$0xff]
    %v2637 = vld [vmem:[#allocation8 + $0x478] sm:$0xff]
    %2638 = vmatpush.msra.mxu0 %v2509
    %2639 = vmatpush.msra.mxu0 %v2508
    %2640 = vmatpush.msra.mxu0 %v2507
    %2641 = vmatpush.msra.mxu0 %v2506
    %2642 = vmatpush.msra.mxu0 %v2505
    %2643 = vmatpush.msra.mxu0 %v2504
    %2644 = vmatpush.msra.mxu0 %v2503
    %2645 = vmatpush.msra.mxu0 %v2502
    %2646 = vmatpush.msra.mxu0 %v2501
    %2647 = vmatpush.msra.mxu0 %v2500
    %2648 = vmatpush.msra.mxu0 %v2499
    %2649 = vmatpush.msra.mxu0 %v2498
    %2650 = vmatpush.msra.mxu0 %v2497
    %2651 = vmatpush.msra.mxu0 %v2496
    %2652 = vmatpush.msra.mxu0 %v2495
    %2653 = vmatpush.msra.mxu0 %v2494
    %2654 = vmatmul.f32.gmra.mxu0 %v1772
    %v2655 = vpop.f32.mrf.mxu0
    %v2656 = vadd.f32 0.0, %v2655
    %2657 = vmatmul.f32.gmra.mxu0 %v1773
    %v2658 = vpop.f32.mrf.mxu0
    %v2659 = vadd.f32 0.0, %v2658
    %2660 = vmatmul.f32.gmra.mxu0 %v1775
    %v2661 = vpop.f32.mrf.mxu0
    %v2662 = vadd.f32 0.0, %v2661
    %2663 = vmatmul.f32.gmra.mxu0 %v1776
    %v2664 = vpop.f32.mrf.mxu0
    %v2665 = vadd.f32 0.0, %v2664
    %2666 = vmatmul.f32.gmra.mxu0 %v1778
    %v2667 = vpop.f32.mrf.mxu0
    %v2668 = vadd.f32 0.0, %v2667
    %2669 = vmatmul.f32.gmra.mxu0 %v1779
    %v2670 = vpop.f32.mrf.mxu0
    %v2671 = vadd.f32 0.0, %v2670
    %2672 = vmatmul.f32.gmra.mxu0 %v1781
    %v2673 = vpop.f32.mrf.mxu0
    %v2674 = vadd.f32 0.0, %v2673
    %2675 = vmatmul.f32.gmra.mxu0 %v1782
    %v2676 = vpop.f32.mrf.mxu0
    %v2677 = vadd.f32 0.0, %v2676
    %2678 = vmatmul.f32.gmra.mxu0 %v1784
    %v2679 = vpop.f32.mrf.mxu0
    %v2680 = vadd.f32 0.0, %v2679
    %2681 = vmatmul.f32.gmra.mxu0 %v1785
    %v2682 = vpop.f32.mrf.mxu0
    %v2683 = vadd.f32 0.0, %v2682
    %2684 = vmatmul.f32.gmra.mxu0 %v1787
    %v2685 = vpop.f32.mrf.mxu0
    %v2686 = vadd.f32 0.0, %v2685
    %2687 = vmatmul.f32.gmra.mxu0 %v1788
    %v2688 = vpop.f32.mrf.mxu0
    %v2689 = vadd.f32 0.0, %v2688
    %2690 = vmatmul.f32.gmra.mxu0 %v1790
    %v2691 = vpop.f32.mrf.mxu0
    %v2692 = vadd.f32 0.0, %v2691
    %2693 = vmatmul.f32.gmra.mxu0 %v1791
    %v2694 = vpop.f32.mrf.mxu0
    %v2695 = vadd.f32 0.0, %v2694
    %2696 = vmatmul.f32.gmra.mxu0 %v1793
    %v2697 = vpop.f32.mrf.mxu0
    %v2698 = vadd.f32 0.0, %v2697
    %2699 = vmatmul.f32.gmra.mxu0 %v1794
    %v2700 = vpop.f32.mrf.mxu0
    %v2701 = vadd.f32 0.0, %v2700
    %2702 = vmatmul.f32.gmra.mxu0 %v1796
    %v2703 = vpop.f32.mrf.mxu0
    %v2704 = vadd.f32 0.0, %v2703
    %2705 = vmatmul.f32.gmra.mxu0 %v1797
    %v2706 = vpop.f32.mrf.mxu0
    %v2707 = vadd.f32 0.0, %v2706
    %2708 = vmatmul.f32.gmra.mxu0 %v1799
    %v2709 = vpop.f32.mrf.mxu0
    %v2710 = vadd.f32 0.0, %v2709
    %2711 = vmatmul.f32.gmra.mxu0 %v1800
    %v2712 = vpop.f32.mrf.mxu0
    %v2713 = vadd.f32 0.0, %v2712
    %2714 = vmatmul.f32.gmra.mxu0 %v1802
    %v2715 = vpop.f32.mrf.mxu0
    %v2716 = vadd.f32 0.0, %v2715
    %2717 = vmatmul.f32.gmra.mxu0 %v1803
    %v2718 = vpop.f32.mrf.mxu0
    %v2719 = vadd.f32 0.0, %v2718
    %2720 = vmatmul.f32.gmra.mxu0 %v1805
    %v2721 = vpop.f32.mrf.mxu0
    %v2722 = vadd.f32 0.0, %v2721
    %2723 = vmatmul.f32.gmra.mxu0 %v1806
    %v2724 = vpop.f32.mrf.mxu0
    %v2725 = vadd.f32 0.0, %v2724
    %2726 = vmatmul.f32.gmra.mxu0 %v1808
    %v2727 = vpop.f32.mrf.mxu0
    %v2728 = vadd.f32 0.0, %v2727
    %2729 = vmatmul.f32.gmra.mxu0 %v1809
    %v2730 = vpop.f32.mrf.mxu0
    %v2731 = vadd.f32 0.0, %v2730
    %2732 = vmatmul.f32.gmra.mxu0 %v1811
    %v2733 = vpop.f32.mrf.mxu0
    %v2734 = vadd.f32 0.0, %v2733
    %2735 = vmatmul.f32.gmra.mxu0 %v1812
    %v2736 = vpop.f32.mrf.mxu0
    %v2737 = vadd.f32 0.0, %v2736
    %2738 = vmatmul.f32.gmra.mxu0 %v1814
    %v2739 = vpop.f32.mrf.mxu0
    %v2740 = vadd.f32 0.0, %v2739
    %2741 = vmatmul.f32.gmra.mxu0 %v1815
    %v2742 = vpop.f32.mrf.mxu0
    %v2743 = vadd.f32 0.0, %v2742
    %2744 = vmatmul.f32.gmra.mxu0 %v1817
    %v2745 = vpop.f32.mrf.mxu0
    %v2746 = vadd.f32 0.0, %v2745
    %2747 = vmatmul.f32.gmra.mxu0 %v1818
    %v2748 = vpop.f32.mrf.mxu0
    %v2749 = vadd.f32 0.0, %v2748
    %2750 = vmatmul.f32.gmra.mxu0 %v1826
    %v2751 = vpop.f32.mrf.mxu0
    %v2752 = vadd.f32 0.0, %v2751
    %2753 = vmatmul.f32.gmra.mxu0 %v1827
    %v2754 = vpop.f32.mrf.mxu0
    %v2755 = vadd.f32 0.0, %v2754
    %2756 = vmatmul.f32.gmra.mxu0 %v1829
    %v2757 = vpop.f32.mrf.mxu0
    %v2758 = vadd.f32 0.0, %v2757
    %2759 = vmatmul.f32.gmra.mxu0 %v1830
    %v2760 = vpop.f32.mrf.mxu0
    %v2761 = vadd.f32 0.0, %v2760
    %2762 = vmatmul.f32.gmra.mxu0 %v1832
    %v2763 = vpop.f32.mrf.mxu0
    %v2764 = vadd.f32 0.0, %v2763
    %2765 = vmatmul.f32.gmra.mxu0 %v1833
    %v2766 = vpop.f32.mrf.mxu0
    %v2767 = vadd.f32 0.0, %v2766
    %2768 = vmatmul.f32.gmra.mxu0 %v1835
    %v2769 = vpop.f32.mrf.mxu0
    %v2770 = vadd.f32 0.0, %v2769
    %2771 = vmatmul.f32.gmra.mxu0 %v1836
    %v2772 = vpop.f32.mrf.mxu0
    %v2773 = vadd.f32 0.0, %v2772
    %2774 = vmatmul.f32.gmra.mxu0 %v1838
    %v2775 = vpop.f32.mrf.mxu0
    %v2776 = vadd.f32 0.0, %v2775
    %2777 = vmatmul.f32.gmra.mxu0 %v1839
    %v2778 = vpop.f32.mrf.mxu0
    %v2779 = vadd.f32 0.0, %v2778
    %2780 = vmatmul.f32.gmra.mxu0 %v1841
    %v2781 = vpop.f32.mrf.mxu0
    %v2782 = vadd.f32 0.0, %v2781
    %2783 = vmatmul.f32.gmra.mxu0 %v1842
    %v2784 = vpop.f32.mrf.mxu0
    %v2785 = vadd.f32 0.0, %v2784
    %2786 = vmatmul.f32.gmra.mxu0 %v1844
    %v2787 = vpop.f32.mrf.mxu0
    %v2788 = vadd.f32 0.0, %v2787
    %2789 = vmatmul.f32.gmra.mxu0 %v1845
    %v2790 = vpop.f32.mrf.mxu0
    %v2791 = vadd.f32 0.0, %v2790
    %2792 = vmatmul.f32.gmra.mxu0 %v1847
    %v2793 = vpop.f32.mrf.mxu0
    %v2794 = vadd.f32 0.0, %v2793
    %2795 = vmatmul.f32.gmra.mxu0 %v1848
    %v2796 = vpop.f32.mrf.mxu0
    %v2797 = vadd.f32 0.0, %v2796
    %2798 = vmatmul.f32.gmra.mxu0 %v1850
    %v2799 = vpop.f32.mrf.mxu0
    %v2800 = vadd.f32 0.0, %v2799
    %2801 = vmatmul.f32.gmra.mxu0 %v1851
    %v2802 = vpop.f32.mrf.mxu0
    %v2803 = vadd.f32 0.0, %v2802
    %2804 = vmatmul.f32.gmra.mxu0 %v1853
    %v2805 = vpop.f32.mrf.mxu0
    %v2806 = vadd.f32 0.0, %v2805
    %2807 = vmatmul.f32.gmra.mxu0 %v1854
    %v2808 = vpop.f32.mrf.mxu0
    %v2809 = vadd.f32 0.0, %v2808
    %2810 = vmatmul.f32.gmra.mxu0 %v1856
    %v2811 = vpop.f32.mrf.mxu0
    %v2812 = vadd.f32 0.0, %v2811
    %2813 = vmatmul.f32.gmra.mxu0 %v1857
    %v2814 = vpop.f32.mrf.mxu0
    %v2815 = vadd.f32 0.0, %v2814
    %2816 = vmatmul.f32.gmra.mxu0 %v1859
    %v2817 = vpop.f32.mrf.mxu0
    %v2818 = vadd.f32 0.0, %v2817
    %2819 = vmatmul.f32.gmra.mxu0 %v1860
    %v2820 = vpop.f32.mrf.mxu0
    %v2821 = vadd.f32 0.0, %v2820
    %2822 = vmatmul.f32.gmra.mxu0 %v1862
    %v2823 = vpop.f32.mrf.mxu0
    %v2824 = vadd.f32 0.0, %v2823
    %2825 = vmatmul.f32.gmra.mxu0 %v1863
    %v2826 = vpop.f32.mrf.mxu0
    %v2827 = vadd.f32 0.0, %v2826
    %2828 = vmatmul.f32.gmra.mxu0 %v1865
    %v2829 = vpop.f32.mrf.mxu0
    %v2830 = vadd.f32 0.0, %v2829
    %2831 = vmatmul.f32.gmra.mxu0 %v1866
    %v2832 = vpop.f32.mrf.mxu0
    %v2833 = vadd.f32 0.0, %v2832
    %2834 = vmatmul.f32.gmra.mxu0 %v1868
    %v2835 = vpop.f32.mrf.mxu0
    %v2836 = vadd.f32 0.0, %v2835
    %2837 = vmatmul.f32.gmra.mxu0 %v1869
    %v2838 = vpop.f32.mrf.mxu0
    %v2839 = vadd.f32 0.0, %v2838
    %2840 = vmatmul.f32.gmra.mxu0 %v1871
    %v2841 = vpop.f32.mrf.mxu0
    %v2842 = vadd.f32 0.0, %v2841
    %2843 = vmatmul.f32.gmra.mxu0 %v1872
    %v2844 = vpop.f32.mrf.mxu0
    %v2845 = vadd.f32 0.0, %v2844
    %2846 = vdwg.mxu0
    %2847 = vmatpush.msra.mxu0 %v2525
    %2848 = vmatpush.msra.mxu0 %v2524
    %2849 = vmatpush.msra.mxu0 %v2523
    %2850 = vmatpush.msra.mxu0 %v2522
    %2851 = vmatpush.msra.mxu0 %v2521
    %2852 = vmatpush.msra.mxu0 %v2520
    %2853 = vmatpush.msra.mxu0 %v2519
    %2854 = vmatpush.msra.mxu0 %v2518
    %2855 = vmatpush.msra.mxu0 %v2517
    %2856 = vmatpush.msra.mxu0 %v2516
    %2857 = vmatpush.msra.mxu0 %v2515
    %2858 = vmatpush.msra.mxu0 %v2514
    %2859 = vmatpush.msra.mxu0 %v2513
    %2860 = vmatpush.msra.mxu0 %v2512
    %2861 = vmatpush.msra.mxu0 %v2511
    %2862 = vmatpush.msra.mxu0 %v2510
    %2863 = vmatmul.f32.gmra.mxu0 %v1979
    %v2864 = vpop.f32.mrf.mxu0
    %v2865 = vadd.f32 %v2656, %v2864
    %2866 = vmatmul.f32.gmra.mxu0 %v1981
    %v2867 = vpop.f32.mrf.mxu0
    %v2868 = vadd.f32 %v2659, %v2867
    %2869 = vmatmul.f32.gmra.mxu0 %v1984
    %v2870 = vpop.f32.mrf.mxu0
    %v2871 = vadd.f32 %v2662, %v2870
    %2872 = vmatmul.f32.gmra.mxu0 %v1986
    %v2873 = vpop.f32.mrf.mxu0
    %v2874 = vadd.f32 %v2665, %v2873
    %2875 = vmatmul.f32.gmra.mxu0 %v1989
    %v2876 = vpop.f32.mrf.mxu0
    %v2877 = vadd.f32 %v2668, %v2876
    %2878 = vmatmul.f32.gmra.mxu0 %v1991
    %v2879 = vpop.f32.mrf.mxu0
    %v2880 = vadd.f32 %v2671, %v2879
    %2881 = vmatmul.f32.gmra.mxu0 %v1994
    %v2882 = vpop.f32.mrf.mxu0
    %v2883 = vadd.f32 %v2674, %v2882
    %2884 = vmatmul.f32.gmra.mxu0 %v1996
    %v2885 = vpop.f32.mrf.mxu0
    %v2886 = vadd.f32 %v2677, %v2885
    %2887 = vmatmul.f32.gmra.mxu0 %v1999
    %v2888 = vpop.f32.mrf.mxu0
    %v2889 = vadd.f32 %v2680, %v2888
    %2890 = vmatmul.f32.gmra.mxu0 %v2001
    %v2891 = vpop.f32.mrf.mxu0
    %v2892 = vadd.f32 %v2683, %v2891
    %2893 = vmatmul.f32.gmra.mxu0 %v2004
    %v2894 = vpop.f32.mrf.mxu0
    %v2895 = vadd.f32 %v2686, %v2894
    %2896 = vmatmul.f32.gmra.mxu0 %v2006
    %v2897 = vpop.f32.mrf.mxu0
    %v2898 = vadd.f32 %v2689, %v2897
    %2899 = vmatmul.f32.gmra.mxu0 %v2009
    %v2900 = vpop.f32.mrf.mxu0
    %v2901 = vadd.f32 %v2692, %v2900
    %2902 = vmatmul.f32.gmra.mxu0 %v2011
    %v2903 = vpop.f32.mrf.mxu0
    %v2904 = vadd.f32 %v2695, %v2903
    %2905 = vmatmul.f32.gmra.mxu0 %v2014
    %v2906 = vpop.f32.mrf.mxu0
    %v2907 = vadd.f32 %v2698, %v2906
    %2908 = vmatmul.f32.gmra.mxu0 %v2016
    %v2909 = vpop.f32.mrf.mxu0
    %v2910 = vadd.f32 %v2701, %v2909
    %2911 = vmatmul.f32.gmra.mxu0 %v2019
    %v2912 = vpop.f32.mrf.mxu0
    %v2913 = vadd.f32 %v2704, %v2912
    %2914 = vmatmul.f32.gmra.mxu0 %v2021
    %v2915 = vpop.f32.mrf.mxu0
    %v2916 = vadd.f32 %v2707, %v2915
    %2917 = vmatmul.f32.gmra.mxu0 %v2024
    %v2918 = vpop.f32.mrf.mxu0
    %v2919 = vadd.f32 %v2710, %v2918
    %2920 = vmatmul.f32.gmra.mxu0 %v2026
    %v2921 = vpop.f32.mrf.mxu0
    %v2922 = vadd.f32 %v2713, %v2921
    %2923 = vmatmul.f32.gmra.mxu0 %v2029
    %v2924 = vpop.f32.mrf.mxu0
    %v2925 = vadd.f32 %v2716, %v2924
    %2926 = vmatmul.f32.gmra.mxu0 %v2031
    %v2927 = vpop.f32.mrf.mxu0
    %v2928 = vadd.f32 %v2719, %v2927
    %2929 = vmatmul.f32.gmra.mxu0 %v2034
    %v2930 = vpop.f32.mrf.mxu0
    %v2931 = vadd.f32 %v2722, %v2930
    %2932 = vmatmul.f32.gmra.mxu0 %v2036
    %v2933 = vpop.f32.mrf.mxu0
    %v2934 = vadd.f32 %v2725, %v2933
    %2935 = vmatmul.f32.gmra.mxu0 %v2039
    %v2936 = vpop.f32.mrf.mxu0
    %v2937 = vadd.f32 %v2728, %v2936
    %2938 = vmatmul.f32.gmra.mxu0 %v2041
    %v2939 = vpop.f32.mrf.mxu0
    %v2940 = vadd.f32 %v2731, %v2939
    %2941 = vmatmul.f32.gmra.mxu0 %v2044
    %v2942 = vpop.f32.mrf.mxu0
    %v2943 = vadd.f32 %v2734, %v2942
    %2944 = vmatmul.f32.gmra.mxu0 %v2046
    %v2945 = vpop.f32.mrf.mxu0
    %v2946 = vadd.f32 %v2737, %v2945
    %2947 = vmatmul.f32.gmra.mxu0 %v2049
    %v2948 = vpop.f32.mrf.mxu0
    %v2949 = vadd.f32 %v2740, %v2948
    %2950 = vmatmul.f32.gmra.mxu0 %v2051
    %v2951 = vpop.f32.mrf.mxu0
    %v2952 = vadd.f32 %v2743, %v2951
    %2953 = vmatmul.f32.gmra.mxu0 %v2054
    %v2954 = vpop.f32.mrf.mxu0
    %v2955 = vadd.f32 %v2746, %v2954
    %2956 = vmatmul.f32.gmra.mxu0 %v2056
    %v2957 = vpop.f32.mrf.mxu0
    %v2958 = vadd.f32 %v2749, %v2957
    %2959 = vmatmul.f32.gmra.mxu0 %v2059
    %v2960 = vpop.f32.mrf.mxu0
    %v2961 = vadd.f32 %v2752, %v2960
    %2962 = vmatmul.f32.gmra.mxu0 %v2061
    %v2963 = vpop.f32.mrf.mxu0
    %v2964 = vadd.f32 %v2755, %v2963
    %2965 = vmatmul.f32.gmra.mxu0 %v2064
    %v2966 = vpop.f32.mrf.mxu0
    %v2967 = vadd.f32 %v2758, %v2966
    %2968 = vmatmul.f32.gmra.mxu0 %v2066
    %v2969 = vpop.f32.mrf.mxu0
    %v2970 = vadd.f32 %v2761, %v2969
    %2971 = vmatmul.f32.gmra.mxu0 %v2069
    %v2972 = vpop.f32.mrf.mxu0
    %v2973 = vadd.f32 %v2764, %v2972
    %2974 = vmatmul.f32.gmra.mxu0 %v2071
    %v2975 = vpop.f32.mrf.mxu0
    %v2976 = vadd.f32 %v2767, %v2975
    %2977 = vmatmul.f32.gmra.mxu0 %v2074
    %v2978 = vpop.f32.mrf.mxu0
    %v2979 = vadd.f32 %v2770, %v2978
    %2980 = vmatmul.f32.gmra.mxu0 %v2076
    %v2981 = vpop.f32.mrf.mxu0
    %v2982 = vadd.f32 %v2773, %v2981
    %2983 = vmatmul.f32.gmra.mxu0 %v2079
    %v2984 = vpop.f32.mrf.mxu0
    %v2985 = vadd.f32 %v2776, %v2984
    %2986 = vmatmul.f32.gmra.mxu0 %v2081
    %v2987 = vpop.f32.mrf.mxu0
    %v2988 = vadd.f32 %v2779, %v2987
    %2989 = vmatmul.f32.gmra.mxu0 %v2084
    %v2990 = vpop.f32.mrf.mxu0
    %v2991 = vadd.f32 %v2782, %v2990
    %2992 = vmatmul.f32.gmra.mxu0 %v2086
    %v2993 = vpop.f32.mrf.mxu0
    %v2994 = vadd.f32 %v2785, %v2993
    %2995 = vmatmul.f32.gmra.mxu0 %v2089
    %v2996 = vpop.f32.mrf.mxu0
    %v2997 = vadd.f32 %v2788, %v2996
    %2998 = vmatmul.f32.gmra.mxu0 %v2091
    %v2999 = vpop.f32.mrf.mxu0
    %v3000 = vadd.f32 %v2791, %v2999
    %3001 = vmatmul.f32.gmra.mxu0 %v2094
    %v3002 = vpop.f32.mrf.mxu0
    %v3003 = vadd.f32 %v2794, %v3002
    %3004 = vmatmul.f32.gmra.mxu0 %v2096
    %v3005 = vpop.f32.mrf.mxu0
    %v3006 = vadd.f32 %v2797, %v3005
    %3007 = vmatmul.f32.gmra.mxu0 %v2099
    %v3008 = vpop.f32.mrf.mxu0
    %v3009 = vadd.f32 %v2800, %v3008
    %3010 = vmatmul.f32.gmra.mxu0 %v2101
    %v3011 = vpop.f32.mrf.mxu0
    %v3012 = vadd.f32 %v2803, %v3011
    %3013 = vmatmul.f32.gmra.mxu0 %v2104
    %v3014 = vpop.f32.mrf.mxu0
    %v3015 = vadd.f32 %v2806, %v3014
    %3016 = vmatmul.f32.gmra.mxu0 %v2106
    %v3017 = vpop.f32.mrf.mxu0
    %v3018 = vadd.f32 %v2809, %v3017
    %3019 = vmatmul.f32.gmra.mxu0 %v2109
    %v3020 = vpop.f32.mrf.mxu0
    %v3021 = vadd.f32 %v2812, %v3020
    %3022 = vmatmul.f32.gmra.mxu0 %v2111
    %v3023 = vpop.f32.mrf.mxu0
    %v3024 = vadd.f32 %v2815, %v3023
    %3025 = vmatmul.f32.gmra.mxu0 %v2114
    %v3026 = vpop.f32.mrf.mxu0
    %v3027 = vadd.f32 %v2818, %v3026
    %3028 = vmatmul.f32.gmra.mxu0 %v2116
    %v3029 = vpop.f32.mrf.mxu0
    %v3030 = vadd.f32 %v2821, %v3029
    %3031 = vmatmul.f32.gmra.mxu0 %v2119
    %v3032 = vpop.f32.mrf.mxu0
    %v3033 = vadd.f32 %v2824, %v3032
    %3034 = vmatmul.f32.gmra.mxu0 %v2121
    %v3035 = vpop.f32.mrf.mxu0
    %v3036 = vadd.f32 %v2827, %v3035
    %3037 = vmatmul.f32.gmra.mxu0 %v2124
    %v3038 = vpop.f32.mrf.mxu0
    %v3039 = vadd.f32 %v2830, %v3038
    %3040 = vmatmul.f32.gmra.mxu0 %v2126
    %v3041 = vpop.f32.mrf.mxu0
    %v3042 = vadd.f32 %v2833, %v3041
    %3043 = vmatmul.f32.gmra.mxu0 %v2129
    %v3044 = vpop.f32.mrf.mxu0
    %v3045 = vadd.f32 %v2836, %v3044
    %3046 = vmatmul.f32.gmra.mxu0 %v2131
    %v3047 = vpop.f32.mrf.mxu0
    %v3048 = vadd.f32 %v2839, %v3047
    %3049 = vmatmul.f32.gmra.mxu0 %v2134
    %v3050 = vpop.f32.mrf.mxu0
    %v3051 = vadd.f32 %v2842, %v3050
    %3052 = vmatmul.f32.gmra.mxu0 %v2136
    %v3053 = vpop.f32.mrf.mxu0
    %v3054 = vadd.f32 %v2845, %v3053
    %3055 = vdwg.mxu0
    %3056 = vmatpush.msra.mxu0 %v2541
    %3057 = vmatpush.msra.mxu0 %v2540
    %3058 = vmatpush.msra.mxu0 %v2539
    %3059 = vmatpush.msra.mxu0 %v2538
    %3060 = vmatpush.msra.mxu0 %v2537
    %3061 = vmatpush.msra.mxu0 %v2536
    %3062 = vmatpush.msra.mxu0 %v2535
    %3063 = vmatpush.msra.mxu0 %v2534
    %3064 = vmatpush.msra.mxu0 %v2533
    %3065 = vmatpush.msra.mxu0 %v2532
    %3066 = vmatpush.msra.mxu0 %v2531
    %3067 = vmatpush.msra.mxu0 %v2530
    %3068 = vmatpush.msra.mxu0 %v2529
    %3069 = vmatpush.msra.mxu0 %v2528
    %3070 = vmatpush.msra.mxu0 %v2527
    %3071 = vmatpush.msra.mxu0 %v2526
    %3072 = vmatmul.f32.gmra.mxu0 %v2204
    %v3073 = vpop.f32.mrf.mxu0
    %v3074 = vadd.f32 %v2865, %v3073
    %3075 = vmatmul.f32.gmra.mxu0 %v2206
    %v3076 = vpop.f32.mrf.mxu0
    %v3077 = vadd.f32 %v2868, %v3076
    %3078 = vmatmul.f32.gmra.mxu0 %v2209
    %v3079 = vpop.f32.mrf.mxu0
    %v3080 = vadd.f32 %v2871, %v3079
    %3081 = vmatmul.f32.gmra.mxu0 %v2211
    %v3082 = vpop.f32.mrf.mxu0
    %v3083 = vadd.f32 %v2874, %v3082
    %3084 = vmatmul.f32.gmra.mxu0 %v2214
    %v3085 = vpop.f32.mrf.mxu0
    %v3086 = vadd.f32 %v2877, %v3085
    %3087 = vmatmul.f32.gmra.mxu0 %v2216
    %v3088 = vpop.f32.mrf.mxu0
    %v3089 = vadd.f32 %v2880, %v3088
    %3090 = vmatmul.f32.gmra.mxu0 %v2219
    %v3091 = vpop.f32.mrf.mxu0
    %v3092 = vadd.f32 %v2883, %v3091
    %3093 = vmatmul.f32.gmra.mxu0 %v2221
    %v3094 = vpop.f32.mrf.mxu0
    %v3095 = vadd.f32 %v2886, %v3094
    %3096 = vmatmul.f32.gmra.mxu0 %v2224
    %v3097 = vpop.f32.mrf.mxu0
    %v3098 = vadd.f32 %v2889, %v3097
    %3099 = vmatmul.f32.gmra.mxu0 %v2226
    %v3100 = vpop.f32.mrf.mxu0
    %v3101 = vadd.f32 %v2892, %v3100
    %3102 = vmatmul.f32.gmra.mxu0 %v2229
    %v3103 = vpop.f32.mrf.mxu0
    %v3104 = vadd.f32 %v2895, %v3103
    %3105 = vmatmul.f32.gmra.mxu0 %v2231
    %v3106 = vpop.f32.mrf.mxu0
    %v3107 = vadd.f32 %v2898, %v3106
    %3108 = vmatmul.f32.gmra.mxu0 %v2234
    %v3109 = vpop.f32.mrf.mxu0
    %v3110 = vadd.f32 %v2901, %v3109
    %3111 = vmatmul.f32.gmra.mxu0 %v2236
    %v3112 = vpop.f32.mrf.mxu0
    %v3113 = vadd.f32 %v2904, %v3112
    %3114 = vmatmul.f32.gmra.mxu0 %v2239
    %v3115 = vpop.f32.mrf.mxu0
    %v3116 = vadd.f32 %v2907, %v3115
    %3117 = vmatmul.f32.gmra.mxu0 %v2241
    %v3118 = vpop.f32.mrf.mxu0
    %v3119 = vadd.f32 %v2910, %v3118
    %3120 = vmatmul.f32.gmra.mxu0 %v2244
    %v3121 = vpop.f32.mrf.mxu0
    %v3122 = vadd.f32 %v2913, %v3121
    %3123 = vmatmul.f32.gmra.mxu0 %v2246
    %v3124 = vpop.f32.mrf.mxu0
    %v3125 = vadd.f32 %v2916, %v3124
    %3126 = vmatmul.f32.gmra.mxu0 %v2249
    %v3127 = vpop.f32.mrf.mxu0
    %v3128 = vadd.f32 %v2919, %v3127
    %3129 = vmatmul.f32.gmra.mxu0 %v2251
    %v3130 = vpop.f32.mrf.mxu0
    %v3131 = vadd.f32 %v2922, %v3130
    %3132 = vmatmul.f32.gmra.mxu0 %v2254
    %v3133 = vpop.f32.mrf.mxu0
    %v3134 = vadd.f32 %v2925, %v3133
    %3135 = vmatmul.f32.gmra.mxu0 %v2256
    %v3136 = vpop.f32.mrf.mxu0
    %v3137 = vadd.f32 %v2928, %v3136
    %3138 = vmatmul.f32.gmra.mxu0 %v2259
    %v3139 = vpop.f32.mrf.mxu0
    %v3140 = vadd.f32 %v2931, %v3139
    %3141 = vmatmul.f32.gmra.mxu0 %v2261
    %v3142 = vpop.f32.mrf.mxu0
    %v3143 = vadd.f32 %v2934, %v3142
    %3144 = vmatmul.f32.gmra.mxu0 %v2264
    %v3145 = vpop.f32.mrf.mxu0
    %v3146 = vadd.f32 %v2937, %v3145
    %3147 = vmatmul.f32.gmra.mxu0 %v2266
    %v3148 = vpop.f32.mrf.mxu0
    %v3149 = vadd.f32 %v2940, %v3148
    %3150 = vmatmul.f32.gmra.mxu0 %v2269
    %v3151 = vpop.f32.mrf.mxu0
    %v3152 = vadd.f32 %v2943, %v3151
    %3153 = vmatmul.f32.gmra.mxu0 %v2271
    %v3154 = vpop.f32.mrf.mxu0
    %v3155 = vadd.f32 %v2946, %v3154
    %3156 = vmatmul.f32.gmra.mxu0 %v2274
    %v3157 = vpop.f32.mrf.mxu0
    %v3158 = vadd.f32 %v2949, %v3157
    %3159 = vmatmul.f32.gmra.mxu0 %v2276
    %v3160 = vpop.f32.mrf.mxu0
    %v3161 = vadd.f32 %v2952, %v3160
    %3162 = vmatmul.f32.gmra.mxu0 %v2279
    %v3163 = vpop.f32.mrf.mxu0
    %v3164 = vadd.f32 %v2955, %v3163
    %3165 = vmatmul.f32.gmra.mxu0 %v2281
    %v3166 = vpop.f32.mrf.mxu0
    %v3167 = vadd.f32 %v2958, %v3166
    %3168 = vmatmul.f32.gmra.mxu0 %v2284
    %v3169 = vpop.f32.mrf.mxu0
    %v3170 = vadd.f32 %v2961, %v3169
    %3171 = vmatmul.f32.gmra.mxu0 %v2286
    %v3172 = vpop.f32.mrf.mxu0
    %v3173 = vadd.f32 %v2964, %v3172
    %3174 = vmatmul.f32.gmra.mxu0 %v2289
    %v3175 = vpop.f32.mrf.mxu0
    %v3176 = vadd.f32 %v2967, %v3175
    %3177 = vmatmul.f32.gmra.mxu0 %v2291
    %v3178 = vpop.f32.mrf.mxu0
    %v3179 = vadd.f32 %v2970, %v3178
    %3180 = vmatmul.f32.gmra.mxu0 %v2294
    %v3181 = vpop.f32.mrf.mxu0
    %v3182 = vadd.f32 %v2973, %v3181
    %3183 = vmatmul.f32.gmra.mxu0 %v2296
    %v3184 = vpop.f32.mrf.mxu0
    %v3185 = vadd.f32 %v2976, %v3184
    %3186 = vmatmul.f32.gmra.mxu0 %v2299
    %v3187 = vpop.f32.mrf.mxu0
    %v3188 = vadd.f32 %v2979, %v3187
    %3189 = vmatmul.f32.gmra.mxu0 %v2301
    %v3190 = vpop.f32.mrf.mxu0
    %v3191 = vadd.f32 %v2982, %v3190
    %3192 = vmatmul.f32.gmra.mxu0 %v2304
    %v3193 = vpop.f32.mrf.mxu0
    %v3194 = vadd.f32 %v2985, %v3193
    %3195 = vmatmul.f32.gmra.mxu0 %v2306
    %v3196 = vpop.f32.mrf.mxu0
    %v3197 = vadd.f32 %v2988, %v3196
    %3198 = vmatmul.f32.gmra.mxu0 %v2309
    %v3199 = vpop.f32.mrf.mxu0
    %v3200 = vadd.f32 %v2991, %v3199
    %3201 = vmatmul.f32.gmra.mxu0 %v2311
    %v3202 = vpop.f32.mrf.mxu0
    %v3203 = vadd.f32 %v2994, %v3202
    %3204 = vmatmul.f32.gmra.mxu0 %v2314
    %v3205 = vpop.f32.mrf.mxu0
    %v3206 = vadd.f32 %v2997, %v3205
    %3207 = vmatmul.f32.gmra.mxu0 %v2316
    %v3208 = vpop.f32.mrf.mxu0
    %v3209 = vadd.f32 %v3000, %v3208
    %3210 = vmatmul.f32.gmra.mxu0 %v2319
    %v3211 = vpop.f32.mrf.mxu0
    %v3212 = vadd.f32 %v3003, %v3211
    %3213 = vmatmul.f32.gmra.mxu0 %v2321
    %v3214 = vpop.f32.mrf.mxu0
    %v3215 = vadd.f32 %v3006, %v3214
    %3216 = vmatmul.f32.gmra.mxu0 %v2324
    %v3217 = vpop.f32.mrf.mxu0
    %v3218 = vadd.f32 %v3009, %v3217
    %3219 = vmatmul.f32.gmra.mxu0 %v2326
    %v3220 = vpop.f32.mrf.mxu0
    %v3221 = vadd.f32 %v3012, %v3220
    %3222 = vmatmul.f32.gmra.mxu0 %v2329
    %v3223 = vpop.f32.mrf.mxu0
    %v3224 = vadd.f32 %v3015, %v3223
    %3225 = vmatmul.f32.gmra.mxu0 %v2331
    %v3226 = vpop.f32.mrf.mxu0
    %v3227 = vadd.f32 %v3018, %v3226
    %3228 = vmatmul.f32.gmra.mxu0 %v2334
    %v3229 = vpop.f32.mrf.mxu0
    %v3230 = vadd.f32 %v3021, %v3229
    %3231 = vmatmul.f32.gmra.mxu0 %v2336
    %v3232 = vpop.f32.mrf.mxu0
    %v3233 = vadd.f32 %v3024, %v3232
    %3234 = vmatmul.f32.gmra.mxu0 %v2339
    %v3235 = vpop.f32.mrf.mxu0
    %v3236 = vadd.f32 %v3027, %v3235
    %3237 = vmatmul.f32.gmra.mxu0 %v2341
    %v3238 = vpop.f32.mrf.mxu0
    %v3239 = vadd.f32 %v3030, %v3238
    %3240 = vmatmul.f32.gmra.mxu0 %v2344
    %v3241 = vpop.f32.mrf.mxu0
    %v3242 = vadd.f32 %v3033, %v3241
    %3243 = vmatmul.f32.gmra.mxu0 %v2346
    %v3244 = vpop.f32.mrf.mxu0
    %v3245 = vadd.f32 %v3036, %v3244
    %3246 = vmatmul.f32.gmra.mxu0 %v2349
    %v3247 = vpop.f32.mrf.mxu0
    %v3248 = vadd.f32 %v3039, %v3247
    %3249 = vmatmul.f32.gmra.mxu0 %v2351
    %v3250 = vpop.f32.mrf.mxu0
    %v3251 = vadd.f32 %v3042, %v3250
    %3252 = vmatmul.f32.gmra.mxu0 %v2354
    %v3253 = vpop.f32.mrf.mxu0
    %v3254 = vadd.f32 %v3045, %v3253
    %3255 = vmatmul.f32.gmra.mxu0 %v2356
    %v3256 = vpop.f32.mrf.mxu0
    %v3257 = vadd.f32 %v3048, %v3256
    %3258 = vmatmul.f32.gmra.mxu0 %v2359
    %v3259 = vpop.f32.mrf.mxu0
    %v3260 = vadd.f32 %v3051, %v3259
    %3261 = vmatmul.f32.gmra.mxu0 %v2361
    %v3262 = vpop.f32.mrf.mxu0
    %v3263 = vadd.f32 %v3054, %v3262
    %3264 = vdwg.mxu0
    %3265 = vmatpush.msra.mxu0 %v2557
    %3266 = vmatpush.msra.mxu0 %v2556
    %3267 = vmatpush.msra.mxu0 %v2555
    %3268 = vmatpush.msra.mxu0 %v2554
    %3269 = vmatpush.msra.mxu0 %v2553
    %3270 = vmatpush.msra.mxu0 %v2552
    %3271 = vmatpush.msra.mxu0 %v2551
    %3272 = vmatpush.msra.mxu0 %v2550
    %3273 = vmatpush.msra.mxu0 %v2549
    %3274 = vmatpush.msra.mxu0 %v2548
    %3275 = vmatpush.msra.mxu0 %v2547
    %3276 = vmatpush.msra.mxu0 %v2546
    %3277 = vmatpush.msra.mxu0 %v2545
    %3278 = vmatpush.msra.mxu0 %v2544
    %3279 = vmatpush.msra.mxu0 %v2543
    %3280 = vmatpush.msra.mxu0 %v2542
    %3281 = vmatmul.f32.gmra.mxu0 %v1775
    %v3282 = vpop.f32.mrf.mxu0
    %v3283 = vadd.f32 %v3074, %v3282
    %3284 = vmatmul.f32.gmra.mxu0 %v1776
    %v3285 = vpop.f32.mrf.mxu0
    %v3286 = vadd.f32 %v3077, %v3285
    %3287 = vmatmul.f32.gmra.mxu0 %v1778
    %v3288 = vpop.f32.mrf.mxu0
    %v3289 = vadd.f32 %v3080, %v3288
    %3290 = vmatmul.f32.gmra.mxu0 %v1779
    %v3291 = vpop.f32.mrf.mxu0
    %v3292 = vadd.f32 %v3083, %v3291
    %3293 = vmatmul.f32.gmra.mxu0 %v1781
    %v3294 = vpop.f32.mrf.mxu0
    %v3295 = vadd.f32 %v3086, %v3294
    %3296 = vmatmul.f32.gmra.mxu0 %v1782
    %v3297 = vpop.f32.mrf.mxu0
    %v3298 = vadd.f32 %v3089, %v3297
    %3299 = vmatmul.f32.gmra.mxu0 %v1784
    %v3300 = vpop.f32.mrf.mxu0
    %v3301 = vadd.f32 %v3092, %v3300
    %3302 = vmatmul.f32.gmra.mxu0 %v1785
    %v3303 = vpop.f32.mrf.mxu0
    %v3304 = vadd.f32 %v3095, %v3303
    %3305 = vmatmul.f32.gmra.mxu0 %v1787
    %v3306 = vpop.f32.mrf.mxu0
    %v3307 = vadd.f32 %v3098, %v3306
    %3308 = vmatmul.f32.gmra.mxu0 %v1788
    %v3309 = vpop.f32.mrf.mxu0
    %v3310 = vadd.f32 %v3101, %v3309
    %3311 = vmatmul.f32.gmra.mxu0 %v1790
    %v3312 = vpop.f32.mrf.mxu0
    %v3313 = vadd.f32 %v3104, %v3312
    %3314 = vmatmul.f32.gmra.mxu0 %v1791
    %v3315 = vpop.f32.mrf.mxu0
    %v3316 = vadd.f32 %v3107, %v3315
    %3317 = vmatmul.f32.gmra.mxu0 %v1793
    %v3318 = vpop.f32.mrf.mxu0
    %v3319 = vadd.f32 %v3110, %v3318
    %3320 = vmatmul.f32.gmra.mxu0 %v1794
    %v3321 = vpop.f32.mrf.mxu0
    %v3322 = vadd.f32 %v3113, %v3321
    %3323 = vmatmul.f32.gmra.mxu0 %v1796
    %v3324 = vpop.f32.mrf.mxu0
    %v3325 = vadd.f32 %v3116, %v3324
    %3326 = vmatmul.f32.gmra.mxu0 %v1797
    %v3327 = vpop.f32.mrf.mxu0
    %v3328 = vadd.f32 %v3119, %v3327
    %3329 = vmatmul.f32.gmra.mxu0 %v1799
    %v3330 = vpop.f32.mrf.mxu0
    %v3331 = vadd.f32 %v3122, %v3330
    %3332 = vmatmul.f32.gmra.mxu0 %v1800
    %v3333 = vpop.f32.mrf.mxu0
    %v3334 = vadd.f32 %v3125, %v3333
    %3335 = vmatmul.f32.gmra.mxu0 %v1802
    %v3336 = vpop.f32.mrf.mxu0
    %v3337 = vadd.f32 %v3128, %v3336
    %3338 = vmatmul.f32.gmra.mxu0 %v1803
    %v3339 = vpop.f32.mrf.mxu0
    %v3340 = vadd.f32 %v3131, %v3339
    %3341 = vmatmul.f32.gmra.mxu0 %v1805
    %v3342 = vpop.f32.mrf.mxu0
    %v3343 = vadd.f32 %v3134, %v3342
    %3344 = vmatmul.f32.gmra.mxu0 %v1806
    %v3345 = vpop.f32.mrf.mxu0
    %v3346 = vadd.f32 %v3137, %v3345
    %3347 = vmatmul.f32.gmra.mxu0 %v1808
    %v3348 = vpop.f32.mrf.mxu0
    %v3349 = vadd.f32 %v3140, %v3348
    %3350 = vmatmul.f32.gmra.mxu0 %v1809
    %v3351 = vpop.f32.mrf.mxu0
    %v3352 = vadd.f32 %v3143, %v3351
    %3353 = vmatmul.f32.gmra.mxu0 %v1811
    %v3354 = vpop.f32.mrf.mxu0
    %v3355 = vadd.f32 %v3146, %v3354
    %3356 = vmatmul.f32.gmra.mxu0 %v1812
    %v3357 = vpop.f32.mrf.mxu0
    %v3358 = vadd.f32 %v3149, %v3357
    %3359 = vmatmul.f32.gmra.mxu0 %v1814
    %v3360 = vpop.f32.mrf.mxu0
    %v3361 = vadd.f32 %v3152, %v3360
    %3362 = vmatmul.f32.gmra.mxu0 %v1815
    %v3363 = vpop.f32.mrf.mxu0
    %v3364 = vadd.f32 %v3155, %v3363
    %3365 = vmatmul.f32.gmra.mxu0 %v1817
    %v3366 = vpop.f32.mrf.mxu0
    %v3367 = vadd.f32 %v3158, %v3366
    %3368 = vmatmul.f32.gmra.mxu0 %v1818
    %v3369 = vpop.f32.mrf.mxu0
    %v3370 = vadd.f32 %v3161, %v3369
    %3371 = vmatmul.f32.gmra.mxu0 %v1820
    %v3372 = vpop.f32.mrf.mxu0
    %v3373 = vadd.f32 %v3164, %v3372
    %3374 = vmatmul.f32.gmra.mxu0 %v1821
    %v3375 = vpop.f32.mrf.mxu0
    %v3376 = vadd.f32 %v3167, %v3375
    %3377 = vmatmul.f32.gmra.mxu0 %v1829
    %v3378 = vpop.f32.mrf.mxu0
    %v3379 = vadd.f32 %v3170, %v3378
    %3380 = vmatmul.f32.gmra.mxu0 %v1830
    %v3381 = vpop.f32.mrf.mxu0
    %v3382 = vadd.f32 %v3173, %v3381
    %3383 = vmatmul.f32.gmra.mxu0 %v1832
    %v3384 = vpop.f32.mrf.mxu0
    %v3385 = vadd.f32 %v3176, %v3384
    %3386 = vmatmul.f32.gmra.mxu0 %v1833
    %v3387 = vpop.f32.mrf.mxu0
    %v3388 = vadd.f32 %v3179, %v3387
    %3389 = vmatmul.f32.gmra.mxu0 %v1835
    %v3390 = vpop.f32.mrf.mxu0
    %v3391 = vadd.f32 %v3182, %v3390
    %3392 = vmatmul.f32.gmra.mxu0 %v1836
    %v3393 = vpop.f32.mrf.mxu0
    %v3394 = vadd.f32 %v3185, %v3393
    %3395 = vmatmul.f32.gmra.mxu0 %v1838
    %v3396 = vpop.f32.mrf.mxu0
    %v3397 = vadd.f32 %v3188, %v3396
    %3398 = vmatmul.f32.gmra.mxu0 %v1839
    %v3399 = vpop.f32.mrf.mxu0
    %v3400 = vadd.f32 %v3191, %v3399
    %3401 = vmatmul.f32.gmra.mxu0 %v1841
    %v3402 = vpop.f32.mrf.mxu0
    %v3403 = vadd.f32 %v3194, %v3402
    %3404 = vmatmul.f32.gmra.mxu0 %v1842
    %v3405 = vpop.f32.mrf.mxu0
    %v3406 = vadd.f32 %v3197, %v3405
    %3407 = vmatmul.f32.gmra.mxu0 %v1844
    %v3408 = vpop.f32.mrf.mxu0
    %v3409 = vadd.f32 %v3200, %v3408
    %3410 = vmatmul.f32.gmra.mxu0 %v1845
    %v3411 = vpop.f32.mrf.mxu0
    %v3412 = vadd.f32 %v3203, %v3411
    %3413 = vmatmul.f32.gmra.mxu0 %v1847
    %v3414 = vpop.f32.mrf.mxu0
    %v3415 = vadd.f32 %v3206, %v3414
    %3416 = vmatmul.f32.gmra.mxu0 %v1848
    %v3417 = vpop.f32.mrf.mxu0
    %v3418 = vadd.f32 %v3209, %v3417
    %3419 = vmatmul.f32.gmra.mxu0 %v1850
    %v3420 = vpop.f32.mrf.mxu0
    %v3421 = vadd.f32 %v3212, %v3420
    %3422 = vmatmul.f32.gmra.mxu0 %v1851
    %v3423 = vpop.f32.mrf.mxu0
    %v3424 = vadd.f32 %v3215, %v3423
    %3425 = vmatmul.f32.gmra.mxu0 %v1853
    %v3426 = vpop.f32.mrf.mxu0
    %v3427 = vadd.f32 %v3218, %v3426
    %3428 = vmatmul.f32.gmra.mxu0 %v1854
    %v3429 = vpop.f32.mrf.mxu0
    %v3430 = vadd.f32 %v3221, %v3429
    %3431 = vmatmul.f32.gmra.mxu0 %v1856
    %v3432 = vpop.f32.mrf.mxu0
    %v3433 = vadd.f32 %v3224, %v3432
    %3434 = vmatmul.f32.gmra.mxu0 %v1857
    %v3435 = vpop.f32.mrf.mxu0
    %v3436 = vadd.f32 %v3227, %v3435
    %3437 = vmatmul.f32.gmra.mxu0 %v1859
    %v3438 = vpop.f32.mrf.mxu0
    %v3439 = vadd.f32 %v3230, %v3438
    %3440 = vmatmul.f32.gmra.mxu0 %v1860
    %v3441 = vpop.f32.mrf.mxu0
    %v3442 = vadd.f32 %v3233, %v3441
    %3443 = vmatmul.f32.gmra.mxu0 %v1862
    %v3444 = vpop.f32.mrf.mxu0
    %v3445 = vadd.f32 %v3236, %v3444
    %3446 = vmatmul.f32.gmra.mxu0 %v1863
    %v3447 = vpop.f32.mrf.mxu0
    %v3448 = vadd.f32 %v3239, %v3447
    %3449 = vmatmul.f32.gmra.mxu0 %v1865
    %v3450 = vpop.f32.mrf.mxu0
    %v3451 = vadd.f32 %v3242, %v3450
    %3452 = vmatmul.f32.gmra.mxu0 %v1866
    %v3453 = vpop.f32.mrf.mxu0
    %v3454 = vadd.f32 %v3245, %v3453
    %3455 = vmatmul.f32.gmra.mxu0 %v1868
    %v3456 = vpop.f32.mrf.mxu0
    %v3457 = vadd.f32 %v3248, %v3456
    %3458 = vmatmul.f32.gmra.mxu0 %v1869
    %v3459 = vpop.f32.mrf.mxu0
    %v3460 = vadd.f32 %v3251, %v3459
    %3461 = vmatmul.f32.gmra.mxu0 %v1871
    %v3462 = vpop.f32.mrf.mxu0
    %v3463 = vadd.f32 %v3254, %v3462
    %3464 = vmatmul.f32.gmra.mxu0 %v1872
    %v3465 = vpop.f32.mrf.mxu0
    %v3466 = vadd.f32 %v3257, %v3465
    %3467 = vmatmul.f32.gmra.mxu0 %v1874
    %v3468 = vpop.f32.mrf.mxu0
    %v3469 = vadd.f32 %v3260, %v3468
    %3470 = vmatmul.f32.gmra.mxu0 %v1875
    %v3471 = vpop.f32.mrf.mxu0
    %v3472 = vadd.f32 %v3263, %v3471
    %3473 = vdwg.mxu0
    %3474 = vmatpush.msra.mxu0 %v2573
    %3475 = vmatpush.msra.mxu0 %v2572
    %3476 = vmatpush.msra.mxu0 %v2571
    %3477 = vmatpush.msra.mxu0 %v2570
    %3478 = vmatpush.msra.mxu0 %v2569
    %3479 = vmatpush.msra.mxu0 %v2568
    %3480 = vmatpush.msra.mxu0 %v2567
    %3481 = vmatpush.msra.mxu0 %v2566
    %3482 = vmatpush.msra.mxu0 %v2565
    %3483 = vmatpush.msra.mxu0 %v2564
    %3484 = vmatpush.msra.mxu0 %v2563
    %3485 = vmatpush.msra.mxu0 %v2562
    %3486 = vmatpush.msra.mxu0 %v2561
    %3487 = vmatpush.msra.mxu0 %v2560
    %3488 = vmatpush.msra.mxu0 %v2559
    %3489 = vmatpush.msra.mxu0 %v2558
    %3490 = vmatmul.f32.gmra.mxu0 %v1984
    %v3491 = vpop.f32.mrf.mxu0
    %v3492 = vadd.f32 %v3283, %v3491
    %3493 = vmatmul.f32.gmra.mxu0 %v1986
    %v3494 = vpop.f32.mrf.mxu0
    %v3495 = vadd.f32 %v3286, %v3494
    %3496 = vmatmul.f32.gmra.mxu0 %v1989
    %v3497 = vpop.f32.mrf.mxu0
    %v3498 = vadd.f32 %v3289, %v3497
    %3499 = vmatmul.f32.gmra.mxu0 %v1991
    %v3500 = vpop.f32.mrf.mxu0
    %v3501 = vadd.f32 %v3292, %v3500
    %3502 = vmatmul.f32.gmra.mxu0 %v1994
    %v3503 = vpop.f32.mrf.mxu0
    %v3504 = vadd.f32 %v3295, %v3503
    %3505 = vmatmul.f32.gmra.mxu0 %v1996
    %v3506 = vpop.f32.mrf.mxu0
    %v3507 = vadd.f32 %v3298, %v3506
    %3508 = vmatmul.f32.gmra.mxu0 %v1999
    %v3509 = vpop.f32.mrf.mxu0
    %v3510 = vadd.f32 %v3301, %v3509
    %3511 = vmatmul.f32.gmra.mxu0 %v2001
    %v3512 = vpop.f32.mrf.mxu0
    %v3513 = vadd.f32 %v3304, %v3512
    %3514 = vmatmul.f32.gmra.mxu0 %v2004
    %v3515 = vpop.f32.mrf.mxu0
    %v3516 = vadd.f32 %v3307, %v3515
    %3517 = vmatmul.f32.gmra.mxu0 %v2006
    %v3518 = vpop.f32.mrf.mxu0
    %v3519 = vadd.f32 %v3310, %v3518
    %3520 = vmatmul.f32.gmra.mxu0 %v2009
    %v3521 = vpop.f32.mrf.mxu0
    %v3522 = vadd.f32 %v3313, %v3521
    %3523 = vmatmul.f32.gmra.mxu0 %v2011
    %v3524 = vpop.f32.mrf.mxu0
    %v3525 = vadd.f32 %v3316, %v3524
    %3526 = vmatmul.f32.gmra.mxu0 %v2014
    %v3527 = vpop.f32.mrf.mxu0
    %v3528 = vadd.f32 %v3319, %v3527
    %3529 = vmatmul.f32.gmra.mxu0 %v2016
    %v3530 = vpop.f32.mrf.mxu0
    %v3531 = vadd.f32 %v3322, %v3530
    %3532 = vmatmul.f32.gmra.mxu0 %v2019
    %v3533 = vpop.f32.mrf.mxu0
    %v3534 = vadd.f32 %v3325, %v3533
    %3535 = vmatmul.f32.gmra.mxu0 %v2021
    %v3536 = vpop.f32.mrf.mxu0
    %v3537 = vadd.f32 %v3328, %v3536
    %3538 = vmatmul.f32.gmra.mxu0 %v2024
    %v3539 = vpop.f32.mrf.mxu0
    %v3540 = vadd.f32 %v3331, %v3539
    %3541 = vmatmul.f32.gmra.mxu0 %v2026
    %v3542 = vpop.f32.mrf.mxu0
    %v3543 = vadd.f32 %v3334, %v3542
    %3544 = vmatmul.f32.gmra.mxu0 %v2029
    %v3545 = vpop.f32.mrf.mxu0
    %v3546 = vadd.f32 %v3337, %v3545
    %3547 = vmatmul.f32.gmra.mxu0 %v2031
    %v3548 = vpop.f32.mrf.mxu0
    %v3549 = vadd.f32 %v3340, %v3548
    %3550 = vmatmul.f32.gmra.mxu0 %v2034
    %v3551 = vpop.f32.mrf.mxu0
    %v3552 = vadd.f32 %v3343, %v3551
    %3553 = vmatmul.f32.gmra.mxu0 %v2036
    %v3554 = vpop.f32.mrf.mxu0
    %v3555 = vadd.f32 %v3346, %v3554
    %3556 = vmatmul.f32.gmra.mxu0 %v2039
    %v3557 = vpop.f32.mrf.mxu0
    %v3558 = vadd.f32 %v3349, %v3557
    %3559 = vmatmul.f32.gmra.mxu0 %v2041
    %v3560 = vpop.f32.mrf.mxu0
    %v3561 = vadd.f32 %v3352, %v3560
    %3562 = vmatmul.f32.gmra.mxu0 %v2044
    %v3563 = vpop.f32.mrf.mxu0
    %v3564 = vadd.f32 %v3355, %v3563
    %3565 = vmatmul.f32.gmra.mxu0 %v2046
    %v3566 = vpop.f32.mrf.mxu0
    %v3567 = vadd.f32 %v3358, %v3566
    %3568 = vmatmul.f32.gmra.mxu0 %v2049
    %v3569 = vpop.f32.mrf.mxu0
    %v3570 = vadd.f32 %v3361, %v3569
    %3571 = vmatmul.f32.gmra.mxu0 %v2051
    %v3572 = vpop.f32.mrf.mxu0
    %v3573 = vadd.f32 %v3364, %v3572
    %3574 = vmatmul.f32.gmra.mxu0 %v2054
    %v3575 = vpop.f32.mrf.mxu0
    %v3576 = vadd.f32 %v3367, %v3575
    %3577 = vmatmul.f32.gmra.mxu0 %v2056
    %v3578 = vpop.f32.mrf.mxu0
    %v3579 = vadd.f32 %v3370, %v3578
    %3580 = vmatmul.f32.gmra.mxu0 %v2434
    %v3581 = vpop.f32.mrf.mxu0
    %v3582 = vadd.f32 %v3373, %v3581
    %3583 = vmatmul.f32.gmra.mxu0 %v2436
    %v3584 = vpop.f32.mrf.mxu0
    %v3585 = vadd.f32 %v3376, %v3584
    %3586 = vmatmul.f32.gmra.mxu0 %v2064
    %v3587 = vpop.f32.mrf.mxu0
    %v3588 = vadd.f32 %v3379, %v3587
    %3589 = vmatmul.f32.gmra.mxu0 %v2066
    %v3590 = vpop.f32.mrf.mxu0
    %v3591 = vadd.f32 %v3382, %v3590
    %3592 = vmatmul.f32.gmra.mxu0 %v2069
    %v3593 = vpop.f32.mrf.mxu0
    %v3594 = vadd.f32 %v3385, %v3593
    %3595 = vmatmul.f32.gmra.mxu0 %v2071
    %v3596 = vpop.f32.mrf.mxu0
    %v3597 = vadd.f32 %v3388, %v3596
    %3598 = vmatmul.f32.gmra.mxu0 %v2074
    %v3599 = vpop.f32.mrf.mxu0
    %v3600 = vadd.f32 %v3391, %v3599
    %3601 = vmatmul.f32.gmra.mxu0 %v2076
    %v3602 = vpop.f32.mrf.mxu0
    %v3603 = vadd.f32 %v3394, %v3602
    %3604 = vmatmul.f32.gmra.mxu0 %v2079
    %v3605 = vpop.f32.mrf.mxu0
    %v3606 = vadd.f32 %v3397, %v3605
    %3607 = vmatmul.f32.gmra.mxu0 %v2081
    %v3608 = vpop.f32.mrf.mxu0
    %v3609 = vadd.f32 %v3400, %v3608
    %3610 = vmatmul.f32.gmra.mxu0 %v2084
    %v3611 = vpop.f32.mrf.mxu0
    %v3612 = vadd.f32 %v3403, %v3611
    %3613 = vmatmul.f32.gmra.mxu0 %v2086
    %v3614 = vpop.f32.mrf.mxu0
    %v3615 = vadd.f32 %v3406, %v3614
    %3616 = vmatmul.f32.gmra.mxu0 %v2089
    %v3617 = vpop.f32.mrf.mxu0
    %v3618 = vadd.f32 %v3409, %v3617
    %3619 = vmatmul.f32.gmra.mxu0 %v2091
    %v3620 = vpop.f32.mrf.mxu0
    %v3621 = vadd.f32 %v3412, %v3620
    %3622 = vmatmul.f32.gmra.mxu0 %v2094
    %v3623 = vpop.f32.mrf.mxu0
    %v3624 = vadd.f32 %v3415, %v3623
    %3625 = vmatmul.f32.gmra.mxu0 %v2096
    %v3626 = vpop.f32.mrf.mxu0
    %v3627 = vadd.f32 %v3418, %v3626
    %3628 = vmatmul.f32.gmra.mxu0 %v2099
    %v3629 = vpop.f32.mrf.mxu0
    %v3630 = vadd.f32 %v3421, %v3629
    %3631 = vmatmul.f32.gmra.mxu0 %v2101
    %v3632 = vpop.f32.mrf.mxu0
    %v3633 = vadd.f32 %v3424, %v3632
    %3634 = vmatmul.f32.gmra.mxu0 %v2104
    %v3635 = vpop.f32.mrf.mxu0
    %v3636 = vadd.f32 %v3427, %v3635
    %3637 = vmatmul.f32.gmra.mxu0 %v2106
    %v3638 = vpop.f32.mrf.mxu0
    %v3639 = vadd.f32 %v3430, %v3638
    %3640 = vmatmul.f32.gmra.mxu0 %v2109
    %v3641 = vpop.f32.mrf.mxu0
    %v3642 = vadd.f32 %v3433, %v3641
    %3643 = vmatmul.f32.gmra.mxu0 %v2111
    %v3644 = vpop.f32.mrf.mxu0
    %v3645 = vadd.f32 %v3436, %v3644
    %3646 = vmatmul.f32.gmra.mxu0 %v2114
    %v3647 = vpop.f32.mrf.mxu0
    %v3648 = vadd.f32 %v3439, %v3647
    %3649 = vmatmul.f32.gmra.mxu0 %v2116
    %v3650 = vpop.f32.mrf.mxu0
    %v3651 = vadd.f32 %v3442, %v3650
    %3652 = vmatmul.f32.gmra.mxu0 %v2119
    %v3653 = vpop.f32.mrf.mxu0
    %v3654 = vadd.f32 %v3445, %v3653
    %3655 = vmatmul.f32.gmra.mxu0 %v2121
    %v3656 = vpop.f32.mrf.mxu0
    %v3657 = vadd.f32 %v3448, %v3656
    %3658 = vmatmul.f32.gmra.mxu0 %v2124
    %v3659 = vpop.f32.mrf.mxu0
    %v3660 = vadd.f32 %v3451, %v3659
    %3661 = vmatmul.f32.gmra.mxu0 %v2126
    %v3662 = vpop.f32.mrf.mxu0
    %v3663 = vadd.f32 %v3454, %v3662
    %3664 = vmatmul.f32.gmra.mxu0 %v2129
    %v3665 = vpop.f32.mrf.mxu0
    %v3666 = vadd.f32 %v3457, %v3665
    %3667 = vmatmul.f32.gmra.mxu0 %v2131
    %v3668 = vpop.f32.mrf.mxu0
    %v3669 = vadd.f32 %v3460, %v3668
    %3670 = vmatmul.f32.gmra.mxu0 %v2134
    %v3671 = vpop.f32.mrf.mxu0
    %v3672 = vadd.f32 %v3463, %v3671
    %3673 = vmatmul.f32.gmra.mxu0 %v2136
    %v3674 = vpop.f32.mrf.mxu0
    %v3675 = vadd.f32 %v3466, %v3674
    %3676 = vmatmul.f32.gmra.mxu0 %v2439
    %v3677 = vpop.f32.mrf.mxu0
    %v3678 = vadd.f32 %v3469, %v3677
    %3679 = vmatmul.f32.gmra.mxu0 %v2441
    %v3680 = vpop.f32.mrf.mxu0
    %v3681 = vadd.f32 %v3472, %v3680
    %3682 = vdwg.mxu0
    %3683 = vmatpush.msra.mxu0 %v2589
    %3684 = vmatpush.msra.mxu0 %v2588
    %3685 = vmatpush.msra.mxu0 %v2587
    %3686 = vmatpush.msra.mxu0 %v2586
    %3687 = vmatpush.msra.mxu0 %v2585
    %3688 = vmatpush.msra.mxu0 %v2584
    %3689 = vmatpush.msra.mxu0 %v2583
    %3690 = vmatpush.msra.mxu0 %v2582
    %3691 = vmatpush.msra.mxu0 %v2581
    %3692 = vmatpush.msra.mxu0 %v2580
    %3693 = vmatpush.msra.mxu0 %v2579
    %3694 = vmatpush.msra.mxu0 %v2578
    %3695 = vmatpush.msra.mxu0 %v2577
    %3696 = vmatpush.msra.mxu0 %v2576
    %3697 = vmatpush.msra.mxu0 %v2575
    %3698 = vmatpush.msra.mxu0 %v2574
    %3699 = vmatmul.f32.gmra.mxu0 %v2209
    %v3700 = vpop.f32.mrf.mxu0
    %v3701 = vadd.f32 %v3492, %v3700
    %3702 = vmatmul.f32.gmra.mxu0 %v2211
    %v3703 = vpop.f32.mrf.mxu0
    %v3704 = vadd.f32 %v3495, %v3703
    %3705 = vmatmul.f32.gmra.mxu0 %v2214
    %v3706 = vpop.f32.mrf.mxu0
    %v3707 = vadd.f32 %v3498, %v3706
    %3708 = vmatmul.f32.gmra.mxu0 %v2216
    %v3709 = vpop.f32.mrf.mxu0
    %v3710 = vadd.f32 %v3501, %v3709
    %3711 = vmatmul.f32.gmra.mxu0 %v2219
    %v3712 = vpop.f32.mrf.mxu0
    %v3713 = vadd.f32 %v3504, %v3712
    %3714 = vmatmul.f32.gmra.mxu0 %v2221
    %v3715 = vpop.f32.mrf.mxu0
    %v3716 = vadd.f32 %v3507, %v3715
    %3717 = vmatmul.f32.gmra.mxu0 %v2224
    %v3718 = vpop.f32.mrf.mxu0
    %v3719 = vadd.f32 %v3510, %v3718
    %3720 = vmatmul.f32.gmra.mxu0 %v2226
    %v3721 = vpop.f32.mrf.mxu0
    %v3722 = vadd.f32 %v3513, %v3721
    %3723 = vmatmul.f32.gmra.mxu0 %v2229
    %v3724 = vpop.f32.mrf.mxu0
    %v3725 = vadd.f32 %v3516, %v3724
    %3726 = vmatmul.f32.gmra.mxu0 %v2231
    %v3727 = vpop.f32.mrf.mxu0
    %v3728 = vadd.f32 %v3519, %v3727
    %3729 = vmatmul.f32.gmra.mxu0 %v2234
    %v3730 = vpop.f32.mrf.mxu0
    %v3731 = vadd.f32 %v3522, %v3730
    %3732 = vmatmul.f32.gmra.mxu0 %v2236
    %v3733 = vpop.f32.mrf.mxu0
    %v3734 = vadd.f32 %v3525, %v3733
    %3735 = vmatmul.f32.gmra.mxu0 %v2239
    %v3736 = vpop.f32.mrf.mxu0
    %v3737 = vadd.f32 %v3528, %v3736
    %3738 = vmatmul.f32.gmra.mxu0 %v2241
    %v3739 = vpop.f32.mrf.mxu0
    %v3740 = vadd.f32 %v3531, %v3739
    %3741 = vmatmul.f32.gmra.mxu0 %v2244
    %v3742 = vpop.f32.mrf.mxu0
    %v3743 = vadd.f32 %v3534, %v3742
    %3744 = vmatmul.f32.gmra.mxu0 %v2246
    %v3745 = vpop.f32.mrf.mxu0
    %v3746 = vadd.f32 %v3537, %v3745
    %3747 = vmatmul.f32.gmra.mxu0 %v2249
    %v3748 = vpop.f32.mrf.mxu0
    %v3749 = vadd.f32 %v3540, %v3748
    %3750 = vmatmul.f32.gmra.mxu0 %v2251
    %v3751 = vpop.f32.mrf.mxu0
    %v3752 = vadd.f32 %v3543, %v3751
    %3753 = vmatmul.f32.gmra.mxu0 %v2254
    %v3754 = vpop.f32.mrf.mxu0
    %v3755 = vadd.f32 %v3546, %v3754
    %3756 = vmatmul.f32.gmra.mxu0 %v2256
    %v3757 = vpop.f32.mrf.mxu0
    %v3758 = vadd.f32 %v3549, %v3757
    %3759 = vmatmul.f32.gmra.mxu0 %v2259
    %v3760 = vpop.f32.mrf.mxu0
    %v3761 = vadd.f32 %v3552, %v3760
    %3762 = vmatmul.f32.gmra.mxu0 %v2261
    %v3763 = vpop.f32.mrf.mxu0
    %v3764 = vadd.f32 %v3555, %v3763
    %3765 = vmatmul.f32.gmra.mxu0 %v2264
    %v3766 = vpop.f32.mrf.mxu0
    %v3767 = vadd.f32 %v3558, %v3766
    %3768 = vmatmul.f32.gmra.mxu0 %v2266
    %v3769 = vpop.f32.mrf.mxu0
    %v3770 = vadd.f32 %v3561, %v3769
    %3771 = vmatmul.f32.gmra.mxu0 %v2269
    %v3772 = vpop.f32.mrf.mxu0
    %v3773 = vadd.f32 %v3564, %v3772
    %3774 = vmatmul.f32.gmra.mxu0 %v2271
    %v3775 = vpop.f32.mrf.mxu0
    %v3776 = vadd.f32 %v3567, %v3775
    %3777 = vmatmul.f32.gmra.mxu0 %v2274
    %v3778 = vpop.f32.mrf.mxu0
    %v3779 = vadd.f32 %v3570, %v3778
    %3780 = vmatmul.f32.gmra.mxu0 %v2276
    %v3781 = vpop.f32.mrf.mxu0
    %v3782 = vadd.f32 %v3573, %v3781
    %3783 = vmatmul.f32.gmra.mxu0 %v2279
    %v3784 = vpop.f32.mrf.mxu0
    %v3785 = vadd.f32 %v3576, %v3784
    %3786 = vmatmul.f32.gmra.mxu0 %v2281
    %v3787 = vpop.f32.mrf.mxu0
    %v3788 = vadd.f32 %v3579, %v3787
    %3789 = vmatmul.f32.gmra.mxu0 %v2448
    %v3790 = vpop.f32.mrf.mxu0
    %v3791 = vadd.f32 %v3582, %v3790
    %3792 = vmatmul.f32.gmra.mxu0 %v2450
    %v3793 = vpop.f32.mrf.mxu0
    %v3794 = vadd.f32 %v3585, %v3793
    %3795 = vmatmul.f32.gmra.mxu0 %v2289
    %v3796 = vpop.f32.mrf.mxu0
    %v3797 = vadd.f32 %v3588, %v3796
    %3798 = vmatmul.f32.gmra.mxu0 %v2291
    %v3799 = vpop.f32.mrf.mxu0
    %v3800 = vadd.f32 %v3591, %v3799
    %3801 = vmatmul.f32.gmra.mxu0 %v2294
    %v3802 = vpop.f32.mrf.mxu0
    %v3803 = vadd.f32 %v3594, %v3802
    %3804 = vmatmul.f32.gmra.mxu0 %v2296
    %v3805 = vpop.f32.mrf.mxu0
    %v3806 = vadd.f32 %v3597, %v3805
    %3807 = vmatmul.f32.gmra.mxu0 %v2299
    %v3808 = vpop.f32.mrf.mxu0
    %v3809 = vadd.f32 %v3600, %v3808
    %3810 = vmatmul.f32.gmra.mxu0 %v2301
    %v3811 = vpop.f32.mrf.mxu0
    %v3812 = vadd.f32 %v3603, %v3811
    %3813 = vmatmul.f32.gmra.mxu0 %v2304
    %v3814 = vpop.f32.mrf.mxu0
    %v3815 = vadd.f32 %v3606, %v3814
    %3816 = vmatmul.f32.gmra.mxu0 %v2306
    %v3817 = vpop.f32.mrf.mxu0
    %v3818 = vadd.f32 %v3609, %v3817
    %3819 = vmatmul.f32.gmra.mxu0 %v2309
    %v3820 = vpop.f32.mrf.mxu0
    %v3821 = vadd.f32 %v3612, %v3820
    %3822 = vmatmul.f32.gmra.mxu0 %v2311
    %v3823 = vpop.f32.mrf.mxu0
    %v3824 = vadd.f32 %v3615, %v3823
    %3825 = vmatmul.f32.gmra.mxu0 %v2314
    %v3826 = vpop.f32.mrf.mxu0
    %v3827 = vadd.f32 %v3618, %v3826
    %3828 = vmatmul.f32.gmra.mxu0 %v2316
    %v3829 = vpop.f32.mrf.mxu0
    %v3830 = vadd.f32 %v3621, %v3829
    %3831 = vmatmul.f32.gmra.mxu0 %v2319
    %v3832 = vpop.f32.mrf.mxu0
    %v3833 = vadd.f32 %v3624, %v3832
    %3834 = vmatmul.f32.gmra.mxu0 %v2321
    %v3835 = vpop.f32.mrf.mxu0
    %v3836 = vadd.f32 %v3627, %v3835
    %3837 = vmatmul.f32.gmra.mxu0 %v2324
    %v3838 = vpop.f32.mrf.mxu0
    %v3839 = vadd.f32 %v3630, %v3838
    %3840 = vmatmul.f32.gmra.mxu0 %v2326
    %v3841 = vpop.f32.mrf.mxu0
    %v3842 = vadd.f32 %v3633, %v3841
    %3843 = vmatmul.f32.gmra.mxu0 %v2329
    %v3844 = vpop.f32.mrf.mxu0
    %v3845 = vadd.f32 %v3636, %v3844
    %3846 = vmatmul.f32.gmra.mxu0 %v2331
    %v3847 = vpop.f32.mrf.mxu0
    %v3848 = vadd.f32 %v3639, %v3847
    %3849 = vmatmul.f32.gmra.mxu0 %v2334
    %v3850 = vpop.f32.mrf.mxu0
    %v3851 = vadd.f32 %v3642, %v3850
    %3852 = vmatmul.f32.gmra.mxu0 %v2336
    %v3853 = vpop.f32.mrf.mxu0
    %v3854 = vadd.f32 %v3645, %v3853
    %3855 = vmatmul.f32.gmra.mxu0 %v2339
    %v3856 = vpop.f32.mrf.mxu0
    %v3857 = vadd.f32 %v3648, %v3856
    %3858 = vmatmul.f32.gmra.mxu0 %v2341
    %v3859 = vpop.f32.mrf.mxu0
    %v3860 = vadd.f32 %v3651, %v3859
    %3861 = vmatmul.f32.gmra.mxu0 %v2344
    %v3862 = vpop.f32.mrf.mxu0
    %v3863 = vadd.f32 %v3654, %v3862
    %3864 = vmatmul.f32.gmra.mxu0 %v2346
    %v3865 = vpop.f32.mrf.mxu0
    %v3866 = vadd.f32 %v3657, %v3865
    %3867 = vmatmul.f32.gmra.mxu0 %v2349
    %v3868 = vpop.f32.mrf.mxu0
    %v3869 = vadd.f32 %v3660, %v3868
    %3870 = vmatmul.f32.gmra.mxu0 %v2351
    %v3871 = vpop.f32.mrf.mxu0
    %v3872 = vadd.f32 %v3663, %v3871
    %3873 = vmatmul.f32.gmra.mxu0 %v2354
    %v3874 = vpop.f32.mrf.mxu0
    %v3875 = vadd.f32 %v3666, %v3874
    %3876 = vmatmul.f32.gmra.mxu0 %v2356
    %v3877 = vpop.f32.mrf.mxu0
    %v3878 = vadd.f32 %v3669, %v3877
    %3879 = vmatmul.f32.gmra.mxu0 %v2359
    %v3880 = vpop.f32.mrf.mxu0
    %v3881 = vadd.f32 %v3672, %v3880
    %3882 = vmatmul.f32.gmra.mxu0 %v2361
    %v3883 = vpop.f32.mrf.mxu0
    %v3884 = vadd.f32 %v3675, %v3883
    %3885 = vmatmul.f32.gmra.mxu0 %v2453
    %v3886 = vpop.f32.mrf.mxu0
    %v3887 = vadd.f32 %v3678, %v3886
    %3888 = vmatmul.f32.gmra.mxu0 %v2455
    %v3889 = vpop.f32.mrf.mxu0
    %v3890 = vadd.f32 %v3681, %v3889
    %3891 = vdwg.mxu0
    %3892 = vmatpush.msra.mxu0 %v2605
    %3893 = vmatpush.msra.mxu0 %v2604
    %3894 = vmatpush.msra.mxu0 %v2603
    %3895 = vmatpush.msra.mxu0 %v2602
    %3896 = vmatpush.msra.mxu0 %v2601
    %3897 = vmatpush.msra.mxu0 %v2600
    %3898 = vmatpush.msra.mxu0 %v2599
    %3899 = vmatpush.msra.mxu0 %v2598
    %3900 = vmatpush.msra.mxu0 %v2597
    %3901 = vmatpush.msra.mxu0 %v2596
    %3902 = vmatpush.msra.mxu0 %v2595
    %3903 = vmatpush.msra.mxu0 %v2594
    %3904 = vmatpush.msra.mxu0 %v2593
    %3905 = vmatpush.msra.mxu0 %v2592
    %3906 = vmatpush.msra.mxu0 %v2591
    %3907 = vmatpush.msra.mxu0 %v2590
    %3908 = vmatmul.f32.gmra.mxu0 %v1778
    %v3909 = vpop.f32.mrf.mxu0
    %v3910 = vadd.f32 %v3701, %v3909
    %3911 = vmatmul.f32.gmra.mxu0 %v1779
    %v3912 = vpop.f32.mrf.mxu0
    %v3913 = vadd.f32 %v3704, %v3912
    %3914 = vmatmul.f32.gmra.mxu0 %v1781
    %v3915 = vpop.f32.mrf.mxu0
    %v3916 = vadd.f32 %v3707, %v3915
    %3917 = vmatmul.f32.gmra.mxu0 %v1782
    %v3918 = vpop.f32.mrf.mxu0
    %v3919 = vadd.f32 %v3710, %v3918
    %3920 = vmatmul.f32.gmra.mxu0 %v1784
    %v3921 = vpop.f32.mrf.mxu0
    %v3922 = vadd.f32 %v3713, %v3921
    %3923 = vmatmul.f32.gmra.mxu0 %v1785
    %v3924 = vpop.f32.mrf.mxu0
    %v3925 = vadd.f32 %v3716, %v3924
    %3926 = vmatmul.f32.gmra.mxu0 %v1787
    %v3927 = vpop.f32.mrf.mxu0
    %v3928 = vadd.f32 %v3719, %v3927
    %3929 = vmatmul.f32.gmra.mxu0 %v1788
    %v3930 = vpop.f32.mrf.mxu0
    %v3931 = vadd.f32 %v3722, %v3930
    %3932 = vmatmul.f32.gmra.mxu0 %v1790
    %v3933 = vpop.f32.mrf.mxu0
    %v3934 = vadd.f32 %v3725, %v3933
    %3935 = vmatmul.f32.gmra.mxu0 %v1791
    %v3936 = vpop.f32.mrf.mxu0
    %v3937 = vadd.f32 %v3728, %v3936
    %3938 = vmatmul.f32.gmra.mxu0 %v1793
    %v3939 = vpop.f32.mrf.mxu0
    %v3940 = vadd.f32 %v3731, %v3939
    %3941 = vmatmul.f32.gmra.mxu0 %v1794
    %v3942 = vpop.f32.mrf.mxu0
    %v3943 = vadd.f32 %v3734, %v3942
    %3944 = vmatmul.f32.gmra.mxu0 %v1796
    %v3945 = vpop.f32.mrf.mxu0
    %v3946 = vadd.f32 %v3737, %v3945
    %3947 = vmatmul.f32.gmra.mxu0 %v1797
    %v3948 = vpop.f32.mrf.mxu0
    %v3949 = vadd.f32 %v3740, %v3948
    %3950 = vmatmul.f32.gmra.mxu0 %v1799
    %v3951 = vpop.f32.mrf.mxu0
    %v3952 = vadd.f32 %v3743, %v3951
    %3953 = vmatmul.f32.gmra.mxu0 %v1800
    %v3954 = vpop.f32.mrf.mxu0
    %v3955 = vadd.f32 %v3746, %v3954
    %3956 = vmatmul.f32.gmra.mxu0 %v1802
    %v3957 = vpop.f32.mrf.mxu0
    %v3958 = vadd.f32 %v3749, %v3957
    %3959 = vmatmul.f32.gmra.mxu0 %v1803
    %v3960 = vpop.f32.mrf.mxu0
    %v3961 = vadd.f32 %v3752, %v3960
    %3962 = vmatmul.f32.gmra.mxu0 %v1805
    %v3963 = vpop.f32.mrf.mxu0
    %v3964 = vadd.f32 %v3755, %v3963
    %3965 = vmatmul.f32.gmra.mxu0 %v1806
    %v3966 = vpop.f32.mrf.mxu0
    %v3967 = vadd.f32 %v3758, %v3966
    %3968 = vmatmul.f32.gmra.mxu0 %v1808
    %v3969 = vpop.f32.mrf.mxu0
    %v3970 = vadd.f32 %v3761, %v3969
    %3971 = vmatmul.f32.gmra.mxu0 %v1809
    %v3972 = vpop.f32.mrf.mxu0
    %v3973 = vadd.f32 %v3764, %v3972
    %3974 = vmatmul.f32.gmra.mxu0 %v1811
    %v3975 = vpop.f32.mrf.mxu0
    %v3976 = vadd.f32 %v3767, %v3975
    %3977 = vmatmul.f32.gmra.mxu0 %v1812
    %v3978 = vpop.f32.mrf.mxu0
    %v3979 = vadd.f32 %v3770, %v3978
    %3980 = vmatmul.f32.gmra.mxu0 %v1814
    %v3981 = vpop.f32.mrf.mxu0
    %v3982 = vadd.f32 %v3773, %v3981
    %3983 = vmatmul.f32.gmra.mxu0 %v1815
    %v3984 = vpop.f32.mrf.mxu0
    %v3985 = vadd.f32 %v3776, %v3984
    %3986 = vmatmul.f32.gmra.mxu0 %v1817
    %v3987 = vpop.f32.mrf.mxu0
    %v3988 = vadd.f32 %v3779, %v3987
    %3989 = vmatmul.f32.gmra.mxu0 %v1818
    %v3990 = vpop.f32.mrf.mxu0
    %v3991 = vadd.f32 %v3782, %v3990
    %3992 = vmatmul.f32.gmra.mxu0 %v1820
    %v3993 = vpop.f32.mrf.mxu0
    %v3994 = vadd.f32 %v3785, %v3993
    %3995 = vmatmul.f32.gmra.mxu0 %v1821
    %v3996 = vpop.f32.mrf.mxu0
    %v3997 = vadd.f32 %v3788, %v3996
    %3998 = vmatmul.f32.gmra.mxu0 %v1823
    %v3999 = vpop.f32.mrf.mxu0
    %v4000 = vadd.f32 %v3791, %v3999
    %4001 = vmatmul.f32.gmra.mxu0 %v1824
    %v4002 = vpop.f32.mrf.mxu0
    %v4003 = vadd.f32 %v3794, %v4002
    %4004 = vmatmul.f32.gmra.mxu0 %v1832
    %v4005 = vpop.f32.mrf.mxu0
    %v4006 = vadd.f32 %v3797, %v4005
    %4007 = vmatmul.f32.gmra.mxu0 %v1833
    %v4008 = vpop.f32.mrf.mxu0
    %v4009 = vadd.f32 %v3800, %v4008
    %4010 = vmatmul.f32.gmra.mxu0 %v1835
    %v4011 = vpop.f32.mrf.mxu0
    %v4012 = vadd.f32 %v3803, %v4011
    %4013 = vmatmul.f32.gmra.mxu0 %v1836
    %v4014 = vpop.f32.mrf.mxu0
    %v4015 = vadd.f32 %v3806, %v4014
    %4016 = vmatmul.f32.gmra.mxu0 %v1838
    %v4017 = vpop.f32.mrf.mxu0
    %v4018 = vadd.f32 %v3809, %v4017
    %4019 = vmatmul.f32.gmra.mxu0 %v1839
    %v4020 = vpop.f32.mrf.mxu0
    %v4021 = vadd.f32 %v3812, %v4020
    %4022 = vmatmul.f32.gmra.mxu0 %v1841
    %v4023 = vpop.f32.mrf.mxu0
    %v4024 = vadd.f32 %v3815, %v4023
    %4025 = vmatmul.f32.gmra.mxu0 %v1842
    %v4026 = vpop.f32.mrf.mxu0
    %v4027 = vadd.f32 %v3818, %v4026
    %4028 = vmatmul.f32.gmra.mxu0 %v1844
    %v4029 = vpop.f32.mrf.mxu0
    %v4030 = vadd.f32 %v3821, %v4029
    %4031 = vmatmul.f32.gmra.mxu0 %v1845
    %v4032 = vpop.f32.mrf.mxu0
    %v4033 = vadd.f32 %v3824, %v4032
    %4034 = vmatmul.f32.gmra.mxu0 %v1847
    %v4035 = vpop.f32.mrf.mxu0
    %v4036 = vadd.f32 %v3827, %v4035
    %4037 = vmatmul.f32.gmra.mxu0 %v1848
    %v4038 = vpop.f32.mrf.mxu0
    %v4039 = vadd.f32 %v3830, %v4038
    %4040 = vmatmul.f32.gmra.mxu0 %v1850
    %v4041 = vpop.f32.mrf.mxu0
    %v4042 = vadd.f32 %v3833, %v4041
    %4043 = vmatmul.f32.gmra.mxu0 %v1851
    %v4044 = vpop.f32.mrf.mxu0
    %v4045 = vadd.f32 %v3836, %v4044
    %4046 = vmatmul.f32.gmra.mxu0 %v1853
    %v4047 = vpop.f32.mrf.mxu0
    %v4048 = vadd.f32 %v3839, %v4047
    %4049 = vmatmul.f32.gmra.mxu0 %v1854
    %v4050 = vpop.f32.mrf.mxu0
    %v4051 = vadd.f32 %v3842, %v4050
    %4052 = vmatmul.f32.gmra.mxu0 %v1856
    %v4053 = vpop.f32.mrf.mxu0
    %v4054 = vadd.f32 %v3845, %v4053
    %4055 = vmatmul.f32.gmra.mxu0 %v1857
    %v4056 = vpop.f32.mrf.mxu0
    %v4057 = vadd.f32 %v3848, %v4056
    %4058 = vmatmul.f32.gmra.mxu0 %v1859
    %v4059 = vpop.f32.mrf.mxu0
    %v4060 = vadd.f32 %v3851, %v4059
    %4061 = vmatmul.f32.gmra.mxu0 %v1860
    %v4062 = vpop.f32.mrf.mxu0
    %v4063 = vadd.f32 %v3854, %v4062
    %4064 = vmatmul.f32.gmra.mxu0 %v1862
    %v4065 = vpop.f32.mrf.mxu0
    %v4066 = vadd.f32 %v3857, %v4065
    %4067 = vmatmul.f32.gmra.mxu0 %v1863
    %v4068 = vpop.f32.mrf.mxu0
    %v4069 = vadd.f32 %v3860, %v4068
    %4070 = vmatmul.f32.gmra.mxu0 %v1865
    %v4071 = vpop.f32.mrf.mxu0
    %v4072 = vadd.f32 %v3863, %v4071
    %4073 = vmatmul.f32.gmra.mxu0 %v1866
    %v4074 = vpop.f32.mrf.mxu0
    %v4075 = vadd.f32 %v3866, %v4074
    %4076 = vmatmul.f32.gmra.mxu0 %v1868
    %v4077 = vpop.f32.mrf.mxu0
    %v4078 = vadd.f32 %v3869, %v4077
    %4079 = vmatmul.f32.gmra.mxu0 %v1869
    %v4080 = vpop.f32.mrf.mxu0
    %v4081 = vadd.f32 %v3872, %v4080
    %4082 = vmatmul.f32.gmra.mxu0 %v1871
    %v4083 = vpop.f32.mrf.mxu0
    %v4084 = vadd.f32 %v3875, %v4083
    %4085 = vmatmul.f32.gmra.mxu0 %v1872
    %v4086 = vpop.f32.mrf.mxu0
    %v4087 = vadd.f32 %v3878, %v4086
    %4088 = vmatmul.f32.gmra.mxu0 %v1874
    %v4089 = vpop.f32.mrf.mxu0
    %v4090 = vadd.f32 %v3881, %v4089
    %4091 = vmatmul.f32.gmra.mxu0 %v1875
    %v4092 = vpop.f32.mrf.mxu0
    %v4093 = vadd.f32 %v3884, %v4092
    %4094 = vmatmul.f32.gmra.mxu0 %v1877
    %v4095 = vpop.f32.mrf.mxu0
    %v4096 = vadd.f32 %v3887, %v4095
    %4097 = vmatmul.f32.gmra.mxu0 %v1878
    %v4098 = vpop.f32.mrf.mxu0
    %v4099 = vadd.f32 %v3890, %v4098
    %4100 = vdwg.mxu0
    %4101 = vmatpush.msra.mxu0 %v2621
    %4102 = vmatpush.msra.mxu0 %v2620
    %4103 = vmatpush.msra.mxu0 %v2619
    %4104 = vmatpush.msra.mxu0 %v2618
    %4105 = vmatpush.msra.mxu0 %v2617
    %4106 = vmatpush.msra.mxu0 %v2616
    %4107 = vmatpush.msra.mxu0 %v2615
    %4108 = vmatpush.msra.mxu0 %v2614
    %4109 = vmatpush.msra.mxu0 %v2613
    %4110 = vmatpush.msra.mxu0 %v2612
    %4111 = vmatpush.msra.mxu0 %v2611
    %4112 = vmatpush.msra.mxu0 %v2610
    %4113 = vmatpush.msra.mxu0 %v2609
    %4114 = vmatpush.msra.mxu0 %v2608
    %4115 = vmatpush.msra.mxu0 %v2607
    %4116 = vmatpush.msra.mxu0 %v2606
    %4117 = vmatmul.f32.gmra.mxu0 %v1989
    %v4118 = vpop.f32.mrf.mxu0
    %v4119 = vadd.f32 %v3910, %v4118
    %4120 = vmatmul.f32.gmra.mxu0 %v1991
    %v4121 = vpop.f32.mrf.mxu0
    %v4122 = vadd.f32 %v3913, %v4121
    %4123 = vmatmul.f32.gmra.mxu0 %v1994
    %v4124 = vpop.f32.mrf.mxu0
    %v4125 = vadd.f32 %v3916, %v4124
    %4126 = vmatmul.f32.gmra.mxu0 %v1996
    %v4127 = vpop.f32.mrf.mxu0
    %v4128 = vadd.f32 %v3919, %v4127
    %4129 = vmatmul.f32.gmra.mxu0 %v1999
    %v4130 = vpop.f32.mrf.mxu0
    %v4131 = vadd.f32 %v3922, %v4130
    %4132 = vmatmul.f32.gmra.mxu0 %v2001
    %v4133 = vpop.f32.mrf.mxu0
    %v4134 = vadd.f32 %v3925, %v4133
    %4135 = vmatmul.f32.gmra.mxu0 %v2004
    %v4136 = vpop.f32.mrf.mxu0
    %v4137 = vadd.f32 %v3928, %v4136
    %4138 = vmatmul.f32.gmra.mxu0 %v2006
    %v4139 = vpop.f32.mrf.mxu0
    %v4140 = vadd.f32 %v3931, %v4139
    %4141 = vmatmul.f32.gmra.mxu0 %v2009
    %v4142 = vpop.f32.mrf.mxu0
    %v4143 = vadd.f32 %v3934, %v4142
    %4144 = vmatmul.f32.gmra.mxu0 %v2011
    %v4145 = vpop.f32.mrf.mxu0
    %v4146 = vadd.f32 %v3937, %v4145
    %4147 = vmatmul.f32.gmra.mxu0 %v2014
    %v4148 = vpop.f32.mrf.mxu0
    %v4149 = vadd.f32 %v3940, %v4148
    %4150 = vmatmul.f32.gmra.mxu0 %v2016
    %v4151 = vpop.f32.mrf.mxu0
    %v4152 = vadd.f32 %v3943, %v4151
    %4153 = vmatmul.f32.gmra.mxu0 %v2019
    %v4154 = vpop.f32.mrf.mxu0
    %v4155 = vadd.f32 %v3946, %v4154
    %4156 = vmatmul.f32.gmra.mxu0 %v2021
    %v4157 = vpop.f32.mrf.mxu0
    %v4158 = vadd.f32 %v3949, %v4157
    %4159 = vmatmul.f32.gmra.mxu0 %v2024
    %v4160 = vpop.f32.mrf.mxu0
    %v4161 = vadd.f32 %v3952, %v4160
    %4162 = vmatmul.f32.gmra.mxu0 %v2026
    %v4163 = vpop.f32.mrf.mxu0
    %v4164 = vadd.f32 %v3955, %v4163
    %4165 = vmatmul.f32.gmra.mxu0 %v2029
    %v4166 = vpop.f32.mrf.mxu0
    %v4167 = vadd.f32 %v3958, %v4166
    %4168 = vmatmul.f32.gmra.mxu0 %v2031
    %v4169 = vpop.f32.mrf.mxu0
    %v4170 = vadd.f32 %v3961, %v4169
    %4171 = vmatmul.f32.gmra.mxu0 %v2034
    %v4172 = vpop.f32.mrf.mxu0
    %v4173 = vadd.f32 %v3964, %v4172
    %4174 = vmatmul.f32.gmra.mxu0 %v2036
    %v4175 = vpop.f32.mrf.mxu0
    %v4176 = vadd.f32 %v3967, %v4175
    %4177 = vmatmul.f32.gmra.mxu0 %v2039
    %v4178 = vpop.f32.mrf.mxu0
    %v4179 = vadd.f32 %v3970, %v4178
    %4180 = vmatmul.f32.gmra.mxu0 %v2041
    %v4181 = vpop.f32.mrf.mxu0
    %v4182 = vadd.f32 %v3973, %v4181
    %4183 = vmatmul.f32.gmra.mxu0 %v2044
    %v4184 = vpop.f32.mrf.mxu0
    %v4185 = vadd.f32 %v3976, %v4184
    %4186 = vmatmul.f32.gmra.mxu0 %v2046
    %v4187 = vpop.f32.mrf.mxu0
    %v4188 = vadd.f32 %v3979, %v4187
    %4189 = vmatmul.f32.gmra.mxu0 %v2049
    %v4190 = vpop.f32.mrf.mxu0
    %v4191 = vadd.f32 %v3982, %v4190
    %4192 = vmatmul.f32.gmra.mxu0 %v2051
    %v4193 = vpop.f32.mrf.mxu0
    %v4194 = vadd.f32 %v3985, %v4193
    %4195 = vmatmul.f32.gmra.mxu0 %v2054
    %v4196 = vpop.f32.mrf.mxu0
    %v4197 = vadd.f32 %v3988, %v4196
    %4198 = vmatmul.f32.gmra.mxu0 %v2056
    %v4199 = vpop.f32.mrf.mxu0
    %v4200 = vadd.f32 %v3991, %v4199
    %4201 = vmatmul.f32.gmra.mxu0 %v2434
    %v4202 = vpop.f32.mrf.mxu0
    %v4203 = vadd.f32 %v3994, %v4202
    %4204 = vmatmul.f32.gmra.mxu0 %v2436
    %v4205 = vpop.f32.mrf.mxu0
    %v4206 = vadd.f32 %v3997, %v4205
    %4207 = vmatmul.f32.gmra.mxu0 %v2468
    %v4208 = vpop.f32.mrf.mxu0
    %v4209 = vadd.f32 %v4000, %v4208
    %4210 = vmatmul.f32.gmra.mxu0 %v2470
    %v4211 = vpop.f32.mrf.mxu0
    %v4212 = vadd.f32 %v4003, %v4211
    %4213 = vmatmul.f32.gmra.mxu0 %v2069
    %v4214 = vpop.f32.mrf.mxu0
    %v4215 = vadd.f32 %v4006, %v4214
    %4216 = vmatmul.f32.gmra.mxu0 %v2071
    %v4217 = vpop.f32.mrf.mxu0
    %v4218 = vadd.f32 %v4009, %v4217
    %4219 = vmatmul.f32.gmra.mxu0 %v2074
    %v4220 = vpop.f32.mrf.mxu0
    %v4221 = vadd.f32 %v4012, %v4220
    %4222 = vmatmul.f32.gmra.mxu0 %v2076
    %v4223 = vpop.f32.mrf.mxu0
    %v4224 = vadd.f32 %v4015, %v4223
    %4225 = vmatmul.f32.gmra.mxu0 %v2079
    %v4226 = vpop.f32.mrf.mxu0
    %v4227 = vadd.f32 %v4018, %v4226
    %4228 = vmatmul.f32.gmra.mxu0 %v2081
    %v4229 = vpop.f32.mrf.mxu0
    %v4230 = vadd.f32 %v4021, %v4229
    %4231 = vmatmul.f32.gmra.mxu0 %v2084
    %v4232 = vpop.f32.mrf.mxu0
    %v4233 = vadd.f32 %v4024, %v4232
    %4234 = vmatmul.f32.gmra.mxu0 %v2086
    %v4235 = vpop.f32.mrf.mxu0
    %v4236 = vadd.f32 %v4027, %v4235
    %4237 = vmatmul.f32.gmra.mxu0 %v2089
    %v4238 = vpop.f32.mrf.mxu0
    %v4239 = vadd.f32 %v4030, %v4238
    %4240 = vmatmul.f32.gmra.mxu0 %v2091
    %v4241 = vpop.f32.mrf.mxu0
    %v4242 = vadd.f32 %v4033, %v4241
    %4243 = vmatmul.f32.gmra.mxu0 %v2094
    %v4244 = vpop.f32.mrf.mxu0
    %v4245 = vadd.f32 %v4036, %v4244
    %4246 = vmatmul.f32.gmra.mxu0 %v2096
    %v4247 = vpop.f32.mrf.mxu0
    %v4248 = vadd.f32 %v4039, %v4247
    %4249 = vmatmul.f32.gmra.mxu0 %v2099
    %v4250 = vpop.f32.mrf.mxu0
    %v4251 = vadd.f32 %v4042, %v4250
    %4252 = vmatmul.f32.gmra.mxu0 %v2101
    %v4253 = vpop.f32.mrf.mxu0
    %v4254 = vadd.f32 %v4045, %v4253
    %4255 = vmatmul.f32.gmra.mxu0 %v2104
    %v4256 = vpop.f32.mrf.mxu0
    %v4257 = vadd.f32 %v4048, %v4256
    %4258 = vmatmul.f32.gmra.mxu0 %v2106
    %v4259 = vpop.f32.mrf.mxu0
    %v4260 = vadd.f32 %v4051, %v4259
    %4261 = vmatmul.f32.gmra.mxu0 %v2109
    %v4262 = vpop.f32.mrf.mxu0
    %v4263 = vadd.f32 %v4054, %v4262
    %4264 = vmatmul.f32.gmra.mxu0 %v2111
    %v4265 = vpop.f32.mrf.mxu0
    %v4266 = vadd.f32 %v4057, %v4265
    %4267 = vmatmul.f32.gmra.mxu0 %v2114
    %v4268 = vpop.f32.mrf.mxu0
    %v4269 = vadd.f32 %v4060, %v4268
    %4270 = vmatmul.f32.gmra.mxu0 %v2116
    %v4271 = vpop.f32.mrf.mxu0
    %v4272 = vadd.f32 %v4063, %v4271
    %4273 = vmatmul.f32.gmra.mxu0 %v2119
    %v4274 = vpop.f32.mrf.mxu0
    %v4275 = vadd.f32 %v4066, %v4274
    %4276 = vmatmul.f32.gmra.mxu0 %v2121
    %v4277 = vpop.f32.mrf.mxu0
    %v4278 = vadd.f32 %v4069, %v4277
    %4279 = vmatmul.f32.gmra.mxu0 %v2124
    %v4280 = vpop.f32.mrf.mxu0
    %v4281 = vadd.f32 %v4072, %v4280
    %4282 = vmatmul.f32.gmra.mxu0 %v2126
    %v4283 = vpop.f32.mrf.mxu0
    %v4284 = vadd.f32 %v4075, %v4283
    %4285 = vmatmul.f32.gmra.mxu0 %v2129
    %v4286 = vpop.f32.mrf.mxu0
    %v4287 = vadd.f32 %v4078, %v4286
    %4288 = vmatmul.f32.gmra.mxu0 %v2131
    %v4289 = vpop.f32.mrf.mxu0
    %v4290 = vadd.f32 %v4081, %v4289
    %4291 = vmatmul.f32.gmra.mxu0 %v2134
    %v4292 = vpop.f32.mrf.mxu0
    %v4293 = vadd.f32 %v4084, %v4292
    %4294 = vmatmul.f32.gmra.mxu0 %v2136
    %v4295 = vpop.f32.mrf.mxu0
    %v4296 = vadd.f32 %v4087, %v4295
    %4297 = vmatmul.f32.gmra.mxu0 %v2439
    %v4298 = vpop.f32.mrf.mxu0
    %v4299 = vadd.f32 %v4090, %v4298
    %4300 = vmatmul.f32.gmra.mxu0 %v2441
    %v4301 = vpop.f32.mrf.mxu0
    %v4302 = vadd.f32 %v4093, %v4301
    %4303 = vmatmul.f32.gmra.mxu0 %v2473
    %v4304 = vpop.f32.mrf.mxu0
    %v4305 = vadd.f32 %v4096, %v4304
    %4306 = vmatmul.f32.gmra.mxu0 %v2475
    %v4307 = vpop.f32.mrf.mxu0
    %v4308 = vadd.f32 %v4099, %v4307
    %4309 = vdwg.mxu0
    %4310 = vmatpush.msra.mxu0 %v2637
    %4311 = vmatpush.msra.mxu0 %v2636
    %4312 = vmatpush.msra.mxu0 %v2635
    %4313 = vmatpush.msra.mxu0 %v2634
    %4314 = vmatpush.msra.mxu0 %v2633
    %4315 = vmatpush.msra.mxu0 %v2632
    %4316 = vmatpush.msra.mxu0 %v2631
    %4317 = vmatpush.msra.mxu0 %v2630
    %4318 = vmatpush.msra.mxu0 %v2629
    %4319 = vmatpush.msra.mxu0 %v2628
    %4320 = vmatpush.msra.mxu0 %v2627
    %4321 = vmatpush.msra.mxu0 %v2626
    %4322 = vmatpush.msra.mxu0 %v2625
    %4323 = vmatpush.msra.mxu0 %v2624
    %4324 = vmatpush.msra.mxu0 %v2623
    %4325 = vmatpush.msra.mxu0 %v2622
    %4326 = vmatmul.f32.gmra.mxu0 %v2214
    %v4327 = vpop.f32.mrf.mxu0
    %v4328 = vadd.f32 %v4119, %v4327
    %4329 = vmatmul.f32.gmra.mxu0 %v2216
    %v4330 = vpop.f32.mrf.mxu0
    %v4331 = vadd.f32 %v4122, %v4330
    %4332 = vmatmul.f32.gmra.mxu0 %v2219
    %v4333 = vpop.f32.mrf.mxu0
    %v4334 = vadd.f32 %v4125, %v4333
    %4335 = vmatmul.f32.gmra.mxu0 %v2221
    %v4336 = vpop.f32.mrf.mxu0
    %v4337 = vadd.f32 %v4128, %v4336
    %4338 = vmatmul.f32.gmra.mxu0 %v2224
    %v4339 = vpop.f32.mrf.mxu0
    %v4340 = vadd.f32 %v4131, %v4339
    %4341 = vmatmul.f32.gmra.mxu0 %v2226
    %v4342 = vpop.f32.mrf.mxu0
    %v4343 = vadd.f32 %v4134, %v4342
    %4344 = vmatmul.f32.gmra.mxu0 %v2229
    %v4345 = vpop.f32.mrf.mxu0
    %v4346 = vadd.f32 %v4137, %v4345
    %4347 = vmatmul.f32.gmra.mxu0 %v2231
    %v4348 = vpop.f32.mrf.mxu0
    %v4349 = vadd.f32 %v4140, %v4348
    %4350 = vmatmul.f32.gmra.mxu0 %v2234
    %v4351 = vpop.f32.mrf.mxu0
    %v4352 = vadd.f32 %v4143, %v4351
    %4353 = vmatmul.f32.gmra.mxu0 %v2236
    %v4354 = vpop.f32.mrf.mxu0
    %v4355 = vadd.f32 %v4146, %v4354
    %4356 = vmatmul.f32.gmra.mxu0 %v2239
    %v4357 = vpop.f32.mrf.mxu0
    %v4358 = vadd.f32 %v4149, %v4357
    %4359 = vmatmul.f32.gmra.mxu0 %v2241
    %v4360 = vpop.f32.mrf.mxu0
    %v4361 = vadd.f32 %v4152, %v4360
    %4362 = vmatmul.f32.gmra.mxu0 %v2244
    %v4363 = vpop.f32.mrf.mxu0
    %v4364 = vadd.f32 %v4155, %v4363
    %4365 = vmatmul.f32.gmra.mxu0 %v2246
    %v4366 = vpop.f32.mrf.mxu0
    %v4367 = vadd.f32 %v4158, %v4366
    %4368 = vmatmul.f32.gmra.mxu0 %v2249
    %v4369 = vpop.f32.mrf.mxu0
    %v4370 = vadd.f32 %v4161, %v4369
    %4371 = vmatmul.f32.gmra.mxu0 %v2251
    %v4372 = vpop.f32.mrf.mxu0
    %v4373 = vadd.f32 %v4164, %v4372
    %4374 = vmatmul.f32.gmra.mxu0 %v2254
    %v4375 = vpop.f32.mrf.mxu0
    %v4376 = vadd.f32 %v4167, %v4375
    %4377 = vmatmul.f32.gmra.mxu0 %v2256
    %v4378 = vpop.f32.mrf.mxu0
    %v4379 = vadd.f32 %v4170, %v4378
    %4380 = vmatmul.f32.gmra.mxu0 %v2259
    %v4381 = vpop.f32.mrf.mxu0
    %v4382 = vadd.f32 %v4173, %v4381
    %4383 = vmatmul.f32.gmra.mxu0 %v2261
    %v4384 = vpop.f32.mrf.mxu0
    %v4385 = vadd.f32 %v4176, %v4384
    %4386 = vmatmul.f32.gmra.mxu0 %v2264
    %v4387 = vpop.f32.mrf.mxu0
    %v4388 = vadd.f32 %v4179, %v4387
    %4389 = vmatmul.f32.gmra.mxu0 %v2266
    %v4390 = vpop.f32.mrf.mxu0
    %v4391 = vadd.f32 %v4182, %v4390
    %4392 = vmatmul.f32.gmra.mxu0 %v2269
    %v4393 = vpop.f32.mrf.mxu0
    %v4394 = vadd.f32 %v4185, %v4393
    %4395 = vmatmul.f32.gmra.mxu0 %v2271
    %v4396 = vpop.f32.mrf.mxu0
    %v4397 = vadd.f32 %v4188, %v4396
    %4398 = vmatmul.f32.gmra.mxu0 %v2274
    %v4399 = vpop.f32.mrf.mxu0
    %v4400 = vadd.f32 %v4191, %v4399
    %4401 = vmatmul.f32.gmra.mxu0 %v2276
    %v4402 = vpop.f32.mrf.mxu0
    %v4403 = vadd.f32 %v4194, %v4402
    %4404 = vmatmul.f32.gmra.mxu0 %v2279
    %v4405 = vpop.f32.mrf.mxu0
    %v4406 = vadd.f32 %v4197, %v4405
    %4407 = vmatmul.f32.gmra.mxu0 %v2281
    %v4408 = vpop.f32.mrf.mxu0
    %v4409 = vadd.f32 %v4200, %v4408
    %4410 = vmatmul.f32.gmra.mxu0 %v2448
    %v4411 = vpop.f32.mrf.mxu0
    %v4412 = vadd.f32 %v4203, %v4411
    %4413 = vmatmul.f32.gmra.mxu0 %v2450
    %v4414 = vpop.f32.mrf.mxu0
    %v4415 = vadd.f32 %v4206, %v4414
    %4416 = vmatmul.f32.gmra.mxu0 %v2482
    %v4417 = vpop.f32.mrf.mxu0
    %v4418 = vadd.f32 %v4209, %v4417
    %4419 = vmatmul.f32.gmra.mxu0 %v2484
    %v4420 = vpop.f32.mrf.mxu0
    %v4421 = vadd.f32 %v4212, %v4420
    %4422 = vmatmul.f32.gmra.mxu0 %v2294
    %v4423 = vpop.f32.mrf.mxu0
    %v4424 = vadd.f32 %v4215, %v4423
    %4425 = vmatmul.f32.gmra.mxu0 %v2296
    %v4426 = vpop.f32.mrf.mxu0
    %v4427 = vadd.f32 %v4218, %v4426
    %4428 = vmatmul.f32.gmra.mxu0 %v2299
    %v4429 = vpop.f32.mrf.mxu0
    %v4430 = vadd.f32 %v4221, %v4429
    %4431 = vmatmul.f32.gmra.mxu0 %v2301
    %v4432 = vpop.f32.mrf.mxu0
    %v4433 = vadd.f32 %v4224, %v4432
    %4434 = vmatmul.f32.gmra.mxu0 %v2304
    %v4435 = vpop.f32.mrf.mxu0
    %v4436 = vadd.f32 %v4227, %v4435
    %4437 = vmatmul.f32.gmra.mxu0 %v2306
    %v4438 = vpop.f32.mrf.mxu0
    %v4439 = vadd.f32 %v4230, %v4438
    %4440 = vmatmul.f32.gmra.mxu0 %v2309
    %v4441 = vpop.f32.mrf.mxu0
    %v4442 = vadd.f32 %v4233, %v4441
    %4443 = vmatmul.f32.gmra.mxu0 %v2311
    %v4444 = vpop.f32.mrf.mxu0
    %v4445 = vadd.f32 %v4236, %v4444
    %4446 = vmatmul.f32.gmra.mxu0 %v2314
    %v4447 = vpop.f32.mrf.mxu0
    %v4448 = vadd.f32 %v4239, %v4447
    %4449 = vmatmul.f32.gmra.mxu0 %v2316
    %v4450 = vpop.f32.mrf.mxu0
    %v4451 = vadd.f32 %v4242, %v4450
    %4452 = vmatmul.f32.gmra.mxu0 %v2319
    %v4453 = vpop.f32.mrf.mxu0
    %v4454 = vadd.f32 %v4245, %v4453
    %4455 = vmatmul.f32.gmra.mxu0 %v2321
    %v4456 = vpop.f32.mrf.mxu0
    %v4457 = vadd.f32 %v4248, %v4456
    %4458 = vmatmul.f32.gmra.mxu0 %v2324
    %v4459 = vpop.f32.mrf.mxu0
    %v4460 = vadd.f32 %v4251, %v4459
    %4461 = vmatmul.f32.gmra.mxu0 %v2326
    %v4462 = vpop.f32.mrf.mxu0
    %v4463 = vadd.f32 %v4254, %v4462
    %4464 = vmatmul.f32.gmra.mxu0 %v2329
    %v4465 = vpop.f32.mrf.mxu0
    %v4466 = vadd.f32 %v4257, %v4465
    %4467 = vmatmul.f32.gmra.mxu0 %v2331
    %v4468 = vpop.f32.mrf.mxu0
    %v4469 = vadd.f32 %v4260, %v4468
    %4470 = vmatmul.f32.gmra.mxu0 %v2334
    %v4471 = vpop.f32.mrf.mxu0
    %v4472 = vadd.f32 %v4263, %v4471
    %4473 = vmatmul.f32.gmra.mxu0 %v2336
    %v4474 = vpop.f32.mrf.mxu0
    %v4475 = vadd.f32 %v4266, %v4474
    %4476 = vmatmul.f32.gmra.mxu0 %v2339
    %v4477 = vpop.f32.mrf.mxu0
    %v4478 = vadd.f32 %v4269, %v4477
    %4479 = vmatmul.f32.gmra.mxu0 %v2341
    %v4480 = vpop.f32.mrf.mxu0
    %v4481 = vadd.f32 %v4272, %v4480
    %4482 = vmatmul.f32.gmra.mxu0 %v2344
    %v4483 = vpop.f32.mrf.mxu0
    %v4484 = vadd.f32 %v4275, %v4483
    %4485 = vmatmul.f32.gmra.mxu0 %v2346
    %v4486 = vpop.f32.mrf.mxu0
    %v4487 = vadd.f32 %v4278, %v4486
    %4488 = vmatmul.f32.gmra.mxu0 %v2349
    %v4489 = vpop.f32.mrf.mxu0
    %v4490 = vadd.f32 %v4281, %v4489
    %4491 = vmatmul.f32.gmra.mxu0 %v2351
    %v4492 = vpop.f32.mrf.mxu0
    %v4493 = vadd.f32 %v4284, %v4492
    %4494 = vmatmul.f32.gmra.mxu0 %v2354
    %v4495 = vpop.f32.mrf.mxu0
    %v4496 = vadd.f32 %v4287, %v4495
    %4497 = vmatmul.f32.gmra.mxu0 %v2356
    %v4498 = vpop.f32.mrf.mxu0
    %v4499 = vadd.f32 %v4290, %v4498
    %4500 = vmatmul.f32.gmra.mxu0 %v2359
    %v4501 = vpop.f32.mrf.mxu0
    %v4502 = vadd.f32 %v4293, %v4501
    %4503 = vmatmul.f32.gmra.mxu0 %v2361
    %v4504 = vpop.f32.mrf.mxu0
    %v4505 = vadd.f32 %v4296, %v4504
    %4506 = vmatmul.f32.gmra.mxu0 %v2453
    %v4507 = vpop.f32.mrf.mxu0
    %v4508 = vadd.f32 %v4299, %v4507
    %4509 = vmatmul.f32.gmra.mxu0 %v2455
    %v4510 = vpop.f32.mrf.mxu0
    %v4511 = vadd.f32 %v4302, %v4510
    %4512 = vmatmul.f32.gmra.mxu0 %v2487
    %v4513 = vpop.f32.mrf.mxu0
    %v4514 = vadd.f32 %v4305, %v4513
    %4515 = vmatmul.f32.gmra.mxu0 %v2489
    %v4516 = vpop.f32.mrf.mxu0
    %v4517 = vadd.f32 %v4308, %v4516
    %4518 = vdwg.mxu0
    %v4519 = vld [vmem:[%s5] sm:$0x1]
    %v4520 = vld [vmem:[%s6] sm:$0x1]
    %v4521 = vadd.f32 %v4328, %v4331
    %v4522 = vadd.f32 %v4521, %v4334
    %v4523 = vadd.f32 %v4522, %v4337
    %v4524 = vadd.f32 %v4523, %v4340
    %v4525 = vadd.f32 %v4524, %v4343
    %v4526 = vadd.f32 %v4525, %v4346
    %v4527 = vadd.f32 %v4526, %v4349
    %v4528 = vadd.f32 %v4527, %v4352
    %v4529 = vadd.f32 %v4528, %v4355
    %v4530 = vadd.f32 %v4529, %v4358
    %v4531 = vadd.f32 %v4530, %v4361
    %v4532 = vadd.f32 %v4531, %v4364
    %v4533 = vadd.f32 %v4532, %v4367
    %v4534 = vadd.f32 %v4533, %v4370
    %v4535 = vadd.f32 %v4534, %v4373
    %v4536 = vadd.f32 %v4535, %v4376
    %v4537 = vadd.f32 %v4536, %v4379
    %v4538 = vadd.f32 %v4537, %v4382
    %v4539 = vadd.f32 %v4538, %v4385
    %v4540 = vadd.f32 %v4539, %v4388
    %v4541 = vadd.f32 %v4540, %v4391
    %v4542 = vadd.f32 %v4541, %v4394
    %v4543 = vadd.f32 %v4542, %v4397
    %v4544 = vadd.f32 %v4543, %v4400
    %v4545 = vadd.f32 %v4544, %v4403
    %v4546 = vadd.f32 %v4545, %v4406
    %v4547 = vadd.f32 %v4546, %v4409
    %v4548 = vadd.f32 %v4547, %v4412
    %v4549 = vadd.f32 %v4548, %v4415
    %v4550 = vadd.f32 %v4549, %v4418
    %v4551 = vadd.f32 %v4550, %v4421
    %v4552 = vadd.f32 %v4551, %v4424
    %v4553 = vadd.f32 %v4552, %v4427
    %v4554 = vadd.f32 %v4553, %v4430
    %v4555 = vadd.f32 %v4554, %v4433
    %v4556 = vadd.f32 %v4555, %v4436
    %v4557 = vadd.f32 %v4556, %v4439
    %v4558 = vadd.f32 %v4557, %v4442
    %v4559 = vadd.f32 %v4558, %v4445
    %v4560 = vadd.f32 %v4559, %v4448
    %v4561 = vadd.f32 %v4560, %v4451
    %v4562 = vadd.f32 %v4561, %v4454
    %v4563 = vadd.f32 %v4562, %v4457
    %v4564 = vadd.f32 %v4563, %v4460
    %v4565 = vadd.f32 %v4564, %v4463
    %v4566 = vadd.f32 %v4565, %v4466
    %v4567 = vadd.f32 %v4566, %v4469
    %v4568 = vadd.f32 %v4567, %v4472
    %v4569 = vadd.f32 %v4568, %v4475
    %v4570 = vadd.f32 %v4569, %v4478
    %v4571 = vadd.f32 %v4570, %v4481
    %v4572 = vadd.f32 %v4571, %v4484
    %v4573 = vadd.f32 %v4572, %v4487
    %v4574 = vadd.f32 %v4573, %v4490
    %v4575 = vadd.f32 %v4574, %v4493
    %v4576 = vadd.f32 %v4575, %v4496
    %v4577 = vadd.f32 %v4576, %v4499
    %v4578 = vadd.f32 %v4577, %v4502
    %v4579 = vadd.f32 %v4578, %v4505
    %v4580 = vadd.f32 %v4579, %v4508
    %v4581 = vadd.f32 %v4580, %v4511
    %v4582 = vadd.f32 %v4581, %v4514
    %v4583 = vadd.f32 %v4582, %v4517
    %v4584 = vrot.slane %v4583, 4
    %v4585 = vadd.f32 %v4583, %v4584
    %v4586 = vrot.slane %v4585, 2
    %v4587 = vadd.f32 %v4585, %v4586
    %v4588 = vrot.slane %v4587, 1
    %v4589 = vadd.f32 %v4587, %v4588
    %v4590 = vmul.f32 %v4589, %v747
    %v4591 = vmul.f32 %v4328, %v4328
    %v4592 = vmul.f32 %v4331, %v4331
    %v4593 = vmul.f32 %v4334, %v4334
    %v4594 = vmul.f32 %v4337, %v4337
    %v4595 = vmul.f32 %v4340, %v4340
    %v4596 = vmul.f32 %v4343, %v4343
    %v4597 = vmul.f32 %v4346, %v4346
    %v4598 = vmul.f32 %v4349, %v4349
    %v4599 = vmul.f32 %v4352, %v4352
    %v4600 = vmul.f32 %v4355, %v4355
    %v4601 = vmul.f32 %v4358, %v4358
    %v4602 = vmul.f32 %v4361, %v4361
    %v4603 = vmul.f32 %v4364, %v4364
    %v4604 = vmul.f32 %v4367, %v4367
    %v4605 = vmul.f32 %v4370, %v4370
    %v4606 = vmul.f32 %v4373, %v4373
    %v4607 = vmul.f32 %v4376, %v4376
    %v4608 = vmul.f32 %v4379, %v4379
    %v4609 = vmul.f32 %v4382, %v4382
    %v4610 = vmul.f32 %v4385, %v4385
    %v4611 = vmul.f32 %v4388, %v4388
    %v4612 = vmul.f32 %v4391, %v4391
    %v4613 = vmul.f32 %v4394, %v4394
    %v4614 = vmul.f32 %v4397, %v4397
    %v4615 = vmul.f32 %v4400, %v4400
    %v4616 = vmul.f32 %v4403, %v4403
    %v4617 = vmul.f32 %v4406, %v4406
    %v4618 = vmul.f32 %v4409, %v4409
    %v4619 = vmul.f32 %v4412, %v4412
    %v4620 = vmul.f32 %v4415, %v4415
    %v4621 = vmul.f32 %v4418, %v4418
    %v4622 = vmul.f32 %v4421, %v4421
    %v4623 = vmul.f32 %v4424, %v4424
    %v4624 = vmul.f32 %v4427, %v4427
    %v4625 = vmul.f32 %v4430, %v4430
    %v4626 = vmul.f32 %v4433, %v4433
    %v4627 = vmul.f32 %v4436, %v4436
    %v4628 = vmul.f32 %v4439, %v4439
    %v4629 = vmul.f32 %v4442, %v4442
    %v4630 = vmul.f32 %v4445, %v4445
    %v4631 = vmul.f32 %v4448, %v4448
    %v4632 = vmul.f32 %v4451, %v4451
    %v4633 = vmul.f32 %v4454, %v4454
    %v4634 = vmul.f32 %v4457, %v4457
    %v4635 = vmul.f32 %v4460, %v4460
    %v4636 = vmul.f32 %v4463, %v4463
    %v4637 = vmul.f32 %v4466, %v4466
    %v4638 = vmul.f32 %v4469, %v4469
    %v4639 = vmul.f32 %v4472, %v4472
    %v4640 = vmul.f32 %v4475, %v4475
    %v4641 = vmul.f32 %v4478, %v4478
    %v4642 = vmul.f32 %v4481, %v4481
    %v4643 = vmul.f32 %v4484, %v4484
    %v4644 = vmul.f32 %v4487, %v4487
    %v4645 = vmul.f32 %v4490, %v4490
    %v4646 = vmul.f32 %v4493, %v4493
    %v4647 = vmul.f32 %v4496, %v4496
    %v4648 = vmul.f32 %v4499, %v4499
    %v4649 = vmul.f32 %v4502, %v4502
    %v4650 = vmul.f32 %v4505, %v4505
    %v4651 = vmul.f32 %v4508, %v4508
    %v4652 = vmul.f32 %v4511, %v4511
    %v4653 = vmul.f32 %v4514, %v4514
    %v4654 = vmul.f32 %v4517, %v4517
    %v4655 = vadd.f32 %v4591, %v4592
    %v4656 = vadd.f32 %v4655, %v4593
    %v4657 = vadd.f32 %v4656, %v4594
    %v4658 = vadd.f32 %v4657, %v4595
    %v4659 = vadd.f32 %v4658, %v4596
    %v4660 = vadd.f32 %v4659, %v4597
    %v4661 = vadd.f32 %v4660, %v4598
    %v4662 = vadd.f32 %v4661, %v4599
    %v4663 = vadd.f32 %v4662, %v4600
    %v4664 = vadd.f32 %v4663, %v4601
    %v4665 = vadd.f32 %v4664, %v4602
    %v4666 = vadd.f32 %v4665, %v4603
    %v4667 = vadd.f32 %v4666, %v4604
    %v4668 = vadd.f32 %v4667, %v4605
    %v4669 = vadd.f32 %v4668, %v4606
    %v4670 = vadd.f32 %v4669, %v4607
    %v4671 = vadd.f32 %v4670, %v4608
    %v4672 = vadd.f32 %v4671, %v4609
    %v4673 = vadd.f32 %v4672, %v4610
    %v4674 = vadd.f32 %v4673, %v4611
    %v4675 = vadd.f32 %v4674, %v4612
    %v4676 = vadd.f32 %v4675, %v4613
    %v4677 = vadd.f32 %v4676, %v4614
    %v4678 = vadd.f32 %v4677, %v4615
    %v4679 = vadd.f32 %v4678, %v4616
    %v4680 = vadd.f32 %v4679, %v4617
    %v4681 = vadd.f32 %v4680, %v4618
    %v4682 = vadd.f32 %v4681, %v4619
    %v4683 = vadd.f32 %v4682, %v4620
    %v4684 = vadd.f32 %v4683, %v4621
    %v4685 = vadd.f32 %v4684, %v4622
    %v4686 = vadd.f32 %v4685, %v4623
    %v4687 = vadd.f32 %v4686, %v4624
    %v4688 = vadd.f32 %v4687, %v4625
    %v4689 = vadd.f32 %v4688, %v4626
    %v4690 = vadd.f32 %v4689, %v4627
    %v4691 = vadd.f32 %v4690, %v4628
    %v4692 = vadd.f32 %v4691, %v4629
    %v4693 = vadd.f32 %v4692, %v4630
    %v4694 = vadd.f32 %v4693, %v4631
    %v4695 = vadd.f32 %v4694, %v4632
    %v4696 = vadd.f32 %v4695, %v4633
    %v4697 = vadd.f32 %v4696, %v4634
    %v4698 = vadd.f32 %v4697, %v4635
    %v4699 = vadd.f32 %v4698, %v4636
    %v4700 = vadd.f32 %v4699, %v4637
    %v4701 = vadd.f32 %v4700, %v4638
    %v4702 = vadd.f32 %v4701, %v4639
    %v4703 = vadd.f32 %v4702, %v4640
    %v4704 = vadd.f32 %v4703, %v4641
    %v4705 = vadd.f32 %v4704, %v4642
    %v4706 = vadd.f32 %v4705, %v4643
    %v4707 = vadd.f32 %v4706, %v4644
    %v4708 = vadd.f32 %v4707, %v4645
    %v4709 = vadd.f32 %v4708, %v4646
    %v4710 = vadd.f32 %v4709, %v4647
    %v4711 = vadd.f32 %v4710, %v4648
    %v4712 = vadd.f32 %v4711, %v4649
    %v4713 = vadd.f32 %v4712, %v4650
    %v4714 = vadd.f32 %v4713, %v4651
    %v4715 = vadd.f32 %v4714, %v4652
    %v4716 = vadd.f32 %v4715, %v4653
    %v4717 = vadd.f32 %v4716, %v4654
    %v4718 = vrot.slane %v4717, 4
    %v4719 = vadd.f32 %v4717, %v4718
    %v4720 = vrot.slane %v4719, 2
    %v4721 = vadd.f32 %v4719, %v4720
    %v4722 = vrot.slane %v4721, 1
    %v4723 = vadd.f32 %v4721, %v4722
    %v4724 = vmul.f32 %v4723, %v747
    %v4725 = vmul.f32 %v4590, %v4590
    %v4726 = vsub.f32 %v4724, %v4725
    %v4727 = vsub.f32 %v4328, %v4590
    %v4728 = vsub.f32 %v4331, %v4590
    %v4729 = vsub.f32 %v4334, %v4590
    %v4730 = vsub.f32 %v4337, %v4590
    %v4731 = vsub.f32 %v4340, %v4590
    %v4732 = vsub.f32 %v4343, %v4590
    %v4733 = vsub.f32 %v4346, %v4590
    %v4734 = vsub.f32 %v4349, %v4590
    %v4735 = vsub.f32 %v4352, %v4590
    %v4736 = vsub.f32 %v4355, %v4590
    %v4737 = vsub.f32 %v4358, %v4590
    %v4738 = vsub.f32 %v4361, %v4590
    %v4739 = vsub.f32 %v4364, %v4590
    %v4740 = vsub.f32 %v4367, %v4590
    %v4741 = vsub.f32 %v4370, %v4590
    %v4742 = vsub.f32 %v4373, %v4590
    %v4743 = vsub.f32 %v4376, %v4590
    %v4744 = vsub.f32 %v4379, %v4590
    %v4745 = vsub.f32 %v4382, %v4590
    %v4746 = vsub.f32 %v4385, %v4590
    %v4747 = vsub.f32 %v4388, %v4590
    %v4748 = vsub.f32 %v4391, %v4590
    %v4749 = vsub.f32 %v4394, %v4590
    %v4750 = vsub.f32 %v4397, %v4590
    %v4751 = vsub.f32 %v4400, %v4590
    %v4752 = vsub.f32 %v4403, %v4590
    %v4753 = vsub.f32 %v4406, %v4590
    %v4754 = vsub.f32 %v4409, %v4590
    %v4755 = vsub.f32 %v4412, %v4590
    %v4756 = vsub.f32 %v4415, %v4590
    %v4757 = vsub.f32 %v4418, %v4590
    %v4758 = vsub.f32 %v4421, %v4590
    %v4759 = vsub.f32 %v4424, %v4590
    %v4760 = vsub.f32 %v4427, %v4590
    %v4761 = vsub.f32 %v4430, %v4590
    %v4762 = vsub.f32 %v4433, %v4590
    %v4763 = vsub.f32 %v4436, %v4590
    %v4764 = vsub.f32 %v4439, %v4590
    %v4765 = vsub.f32 %v4442, %v4590
    %v4766 = vsub.f32 %v4445, %v4590
    %v4767 = vsub.f32 %v4448, %v4590
    %v4768 = vsub.f32 %v4451, %v4590
    %v4769 = vsub.f32 %v4454, %v4590
    %v4770 = vsub.f32 %v4457, %v4590
    %v4771 = vsub.f32 %v4460, %v4590
    %v4772 = vsub.f32 %v4463, %v4590
    %v4773 = vsub.f32 %v4466, %v4590
    %v4774 = vsub.f32 %v4469, %v4590
    %v4775 = vsub.f32 %v4472, %v4590
    %v4776 = vsub.f32 %v4475, %v4590
    %v4777 = vsub.f32 %v4478, %v4590
    %v4778 = vsub.f32 %v4481, %v4590
    %v4779 = vsub.f32 %v4484, %v4590
    %v4780 = vsub.f32 %v4487, %v4590
    %v4781 = vsub.f32 %v4490, %v4590
    %v4782 = vsub.f32 %v4493, %v4590
    %v4783 = vsub.f32 %v4496, %v4590
    %v4784 = vsub.f32 %v4499, %v4590
    %v4785 = vsub.f32 %v4502, %v4590
    %v4786 = vsub.f32 %v4505, %v4590
    %v4787 = vsub.f32 %v4508, %v4590
    %v4788 = vsub.f32 %v4511, %v4590
    %v4789 = vsub.f32 %v4514, %v4590
    %v4790 = vsub.f32 %v4517, %v4590
    %v4791 = vadd.f32 %v4726, 1e-05
    %v4792 = vrsqrt.pop %v4791
    %v4793 = vmul.f32 %v4792, %v4791
    %v4794 = vmul.f32 %v4793, %v4792
    %v4795 = vmul.f32 0.5, %v4794
    %v4796 = vsub.f32 1.5, %v4795
    %v4797 = vmul.f32 %v4792, %v4796
    %vm4798 = vweird.f32 %v4791
    %vm4799 = vweird.f32 %v4792
    %vm4800 = vmor %vm4798, %vm4799
    %v4801 = vsel %vm4800, %v4792, %v4797
    %v4802 = vmul.f32 %v4727, %v4801
    %v4803 = vmul.f32 %v4728, %v4801
    %v4804 = vmul.f32 %v4729, %v4801
    %v4805 = vmul.f32 %v4730, %v4801
    %v4806 = vmul.f32 %v4731, %v4801
    %v4807 = vmul.f32 %v4732, %v4801
    %v4808 = vmul.f32 %v4733, %v4801
    %v4809 = vmul.f32 %v4734, %v4801
    %v4810 = vmul.f32 %v4735, %v4801
    %v4811 = vmul.f32 %v4736, %v4801
    %v4812 = vmul.f32 %v4737, %v4801
    %v4813 = vmul.f32 %v4738, %v4801
    %v4814 = vmul.f32 %v4739, %v4801
    %v4815 = vmul.f32 %v4740, %v4801
    %v4816 = vmul.f32 %v4741, %v4801
    %v4817 = vmul.f32 %v4742, %v4801
    %v4818 = vmul.f32 %v4743, %v4801
    %v4819 = vmul.f32 %v4744, %v4801
    %v4820 = vmul.f32 %v4745, %v4801
    %v4821 = vmul.f32 %v4746, %v4801
    %v4822 = vmul.f32 %v4747, %v4801
    %v4823 = vmul.f32 %v4748, %v4801
    %v4824 = vmul.f32 %v4749, %v4801
    %v4825 = vmul.f32 %v4750, %v4801
    %v4826 = vmul.f32 %v4751, %v4801
    %v4827 = vmul.f32 %v4752, %v4801
    %v4828 = vmul.f32 %v4753, %v4801
    %v4829 = vmul.f32 %v4754, %v4801
    %v4830 = vmul.f32 %v4755, %v4801
    %v4831 = vmul.f32 %v4756, %v4801
    %v4832 = vmul.f32 %v4757, %v4801
    %v4833 = vmul.f32 %v4758, %v4801
    %v4834 = vmul.f32 %v4759, %v4801
    %v4835 = vmul.f32 %v4760, %v4801
    %v4836 = vmul.f32 %v4761, %v4801
    %v4837 = vmul.f32 %v4762, %v4801
    %v4838 = vmul.f32 %v4763, %v4801
    %v4839 = vmul.f32 %v4764, %v4801
    %v4840 = vmul.f32 %v4765, %v4801
    %v4841 = vmul.f32 %v4766, %v4801
    %v4842 = vmul.f32 %v4767, %v4801
    %v4843 = vmul.f32 %v4768, %v4801
    %v4844 = vmul.f32 %v4769, %v4801
    %v4845 = vmul.f32 %v4770, %v4801
    %v4846 = vmul.f32 %v4771, %v4801
    %v4847 = vmul.f32 %v4772, %v4801
    %v4848 = vmul.f32 %v4773, %v4801
    %v4849 = vmul.f32 %v4774, %v4801
    %v4850 = vmul.f32 %v4775, %v4801
    %v4851 = vmul.f32 %v4776, %v4801
    %v4852 = vmul.f32 %v4777, %v4801
    %v4853 = vmul.f32 %v4778, %v4801
    %v4854 = vmul.f32 %v4779, %v4801
    %v4855 = vmul.f32 %v4780, %v4801
    %v4856 = vmul.f32 %v4781, %v4801
    %v4857 = vmul.f32 %v4782, %v4801
    %v4858 = vmul.f32 %v4783, %v4801
    %v4859 = vmul.f32 %v4784, %v4801
    %v4860 = vmul.f32 %v4785, %v4801
    %v4861 = vmul.f32 %v4786, %v4801
    %v4862 = vmul.f32 %v4787, %v4801
    %v4863 = vmul.f32 %v4788, %v4801
    %v4864 = vmul.f32 %v4789, %v4801
    %v4865 = vmul.f32 %v4790, %v4801
    %v4867 = vperm.slane %v4519, 0
    %v4869 = vmul.f32 %v4802, %v4867
    %v4870 = vmul.f32 %v4803, %v4867
    %v4871 = vmul.f32 %v4804, %v4867
    %v4872 = vmul.f32 %v4805, %v4867
    %v4873 = vmul.f32 %v4806, %v4867
    %v4874 = vmul.f32 %v4807, %v4867
    %v4875 = vmul.f32 %v4808, %v4867
    %v4876 = vmul.f32 %v4809, %v4867
    %v4877 = vmul.f32 %v4810, %v4867
    %v4878 = vmul.f32 %v4811, %v4867
    %v4879 = vmul.f32 %v4812, %v4867
    %v4880 = vmul.f32 %v4813, %v4867
    %v4881 = vmul.f32 %v4814, %v4867
    %v4882 = vmul.f32 %v4815, %v4867
    %v4883 = vmul.f32 %v4816, %v4867
    %v4884 = vmul.f32 %v4817, %v4867
    %v4885 = vmul.f32 %v4818, %v4867
    %v4886 = vmul.f32 %v4819, %v4867
    %v4887 = vmul.f32 %v4820, %v4867
    %v4888 = vmul.f32 %v4821, %v4867
    %v4889 = vmul.f32 %v4822, %v4867
    %v4890 = vmul.f32 %v4823, %v4867
    %v4891 = vmul.f32 %v4824, %v4867
    %v4892 = vmul.f32 %v4825, %v4867
    %v4893 = vmul.f32 %v4826, %v4867
    %v4894 = vmul.f32 %v4827, %v4867
    %v4895 = vmul.f32 %v4828, %v4867
    %v4896 = vmul.f32 %v4829, %v4867
    %v4897 = vmul.f32 %v4830, %v4867
    %v4898 = vmul.f32 %v4831, %v4867
    %v4899 = vmul.f32 %v4832, %v4867
    %v4900 = vmul.f32 %v4833, %v4867
    %v4901 = vmul.f32 %v4834, %v4867
    %v4902 = vmul.f32 %v4835, %v4867
    %v4903 = vmul.f32 %v4836, %v4867
    %v4904 = vmul.f32 %v4837, %v4867
    %v4905 = vmul.f32 %v4838, %v4867
    %v4906 = vmul.f32 %v4839, %v4867
    %v4907 = vmul.f32 %v4840, %v4867
    %v4908 = vmul.f32 %v4841, %v4867
    %v4909 = vmul.f32 %v4842, %v4867
    %v4910 = vmul.f32 %v4843, %v4867
    %v4911 = vmul.f32 %v4844, %v4867
    %v4912 = vmul.f32 %v4845, %v4867
    %v4913 = vmul.f32 %v4846, %v4867
    %v4914 = vmul.f32 %v4847, %v4867
    %v4915 = vmul.f32 %v4848, %v4867
    %v4916 = vmul.f32 %v4849, %v4867
    %v4917 = vmul.f32 %v4850, %v4867
    %v4918 = vmul.f32 %v4851, %v4867
    %v4919 = vmul.f32 %v4852, %v4867
    %v4920 = vmul.f32 %v4853, %v4867
    %v4921 = vmul.f32 %v4854, %v4867
    %v4922 = vmul.f32 %v4855, %v4867
    %v4923 = vmul.f32 %v4856, %v4867
    %v4924 = vmul.f32 %v4857, %v4867
    %v4925 = vmul.f32 %v4858, %v4867
    %v4926 = vmul.f32 %v4859, %v4867
    %v4927 = vmul.f32 %v4860, %v4867
    %v4928 = vmul.f32 %v4861, %v4867
    %v4929 = vmul.f32 %v4862, %v4867
    %v4930 = vmul.f32 %v4863, %v4867
    %v4931 = vmul.f32 %v4864, %v4867
    %v4932 = vmul.f32 %v4865, %v4867
    %v4934 = vperm.slane %v4520, 0
    %v4936 = vadd.f32 %v4869, %v4934
    %v4937 = vadd.f32 %v4870, %v4934
    %v4938 = vadd.f32 %v4871, %v4934
    %v4939 = vadd.f32 %v4872, %v4934
    %v4940 = vadd.f32 %v4873, %v4934
    %v4941 = vadd.f32 %v4874, %v4934
    %v4942 = vadd.f32 %v4875, %v4934
    %v4943 = vadd.f32 %v4876, %v4934
    %v4944 = vadd.f32 %v4877, %v4934
    %v4945 = vadd.f32 %v4878, %v4934
    %v4946 = vadd.f32 %v4879, %v4934
    %v4947 = vadd.f32 %v4880, %v4934
    %v4948 = vadd.f32 %v4881, %v4934
    %v4949 = vadd.f32 %v4882, %v4934
    %v4950 = vadd.f32 %v4883, %v4934
    %v4951 = vadd.f32 %v4884, %v4934
    %v4952 = vadd.f32 %v4885, %v4934
    %v4953 = vadd.f32 %v4886, %v4934
    %v4954 = vadd.f32 %v4887, %v4934
    %v4955 = vadd.f32 %v4888, %v4934
    %v4956 = vadd.f32 %v4889, %v4934
    %v4957 = vadd.f32 %v4890, %v4934
    %v4958 = vadd.f32 %v4891, %v4934
    %v4959 = vadd.f32 %v4892, %v4934
    %v4960 = vadd.f32 %v4893, %v4934
    %v4961 = vadd.f32 %v4894, %v4934
    %v4962 = vadd.f32 %v4895, %v4934
    %v4963 = vadd.f32 %v4896, %v4934
    %v4964 = vadd.f32 %v4897, %v4934
    %v4965 = vadd.f32 %v4898, %v4934
    %v4966 = vadd.f32 %v4899, %v4934
    %v4967 = vadd.f32 %v4900, %v4934
    %v4968 = vadd.f32 %v4901, %v4934
    %v4969 = vadd.f32 %v4902, %v4934
    %v4970 = vadd.f32 %v4903, %v4934
    %v4971 = vadd.f32 %v4904, %v4934
    %v4972 = vadd.f32 %v4905, %v4934
    %v4973 = vadd.f32 %v4906, %v4934
    %v4974 = vadd.f32 %v4907, %v4934
    %v4975 = vadd.f32 %v4908, %v4934
    %v4976 = vadd.f32 %v4909, %v4934
    %v4977 = vadd.f32 %v4910, %v4934
    %v4978 = vadd.f32 %v4911, %v4934
    %v4979 = vadd.f32 %v4912, %v4934
    %v4980 = vadd.f32 %v4913, %v4934
    %v4981 = vadd.f32 %v4914, %v4934
    %v4982 = vadd.f32 %v4915, %v4934
    %v4983 = vadd.f32 %v4916, %v4934
    %v4984 = vadd.f32 %v4917, %v4934
    %v4985 = vadd.f32 %v4918, %v4934
    %v4986 = vadd.f32 %v4919, %v4934
    %v4987 = vadd.f32 %v4920, %v4934
    %v4988 = vadd.f32 %v4921, %v4934
    %v4989 = vadd.f32 %v4922, %v4934
    %v4990 = vadd.f32 %v4923, %v4934
    %v4991 = vadd.f32 %v4924, %v4934
    %v4992 = vadd.f32 %v4925, %v4934
    %v4993 = vadd.f32 %v4926, %v4934
    %v4994 = vadd.f32 %v4927, %v4934
    %v4995 = vadd.f32 %v4928, %v4934
    %v4996 = vadd.f32 %v4929, %v4934
    %v4997 = vadd.f32 %v4930, %v4934
    %v4998 = vadd.f32 %v4931, %v4934
    %v4999 = vadd.f32 %v4932, %v4934
    %v5000 = vadd.f32 %v4936, %v1439
    %v5001 = vadd.f32 %v4937, %v1441
    %v5002 = vadd.f32 %v4938, %v1443
    %v5003 = vadd.f32 %v4939, %v1445
    %v5004 = vadd.f32 %v4940, %v1447
    %v5005 = vadd.f32 %v4941, %v1449
    %v5006 = vadd.f32 %v4942, %v1451
    %v5007 = vadd.f32 %v4943, %v1453
    %v5008 = vadd.f32 %v4944, %v1455
    %v5009 = vadd.f32 %v4945, %v1457
    %v5010 = vadd.f32 %v4946, %v1459
    %v5011 = vadd.f32 %v4947, %v1461
    %v5012 = vadd.f32 %v4948, %v1463
    %v5013 = vadd.f32 %v4949, %v1465
    %v5014 = vadd.f32 %v4950, %v1467
    %v5015 = vadd.f32 %v4951, %v1469
    %v5016 = vadd.f32 %v4952, %v1471
    %v5017 = vadd.f32 %v4953, %v1473
    %v5018 = vadd.f32 %v4954, %v1475
    %v5019 = vadd.f32 %v4955, %v1477
    %v5020 = vadd.f32 %v4956, %v1479
    %v5021 = vadd.f32 %v4957, %v1481
    %v5022 = vadd.f32 %v4958, %v1483
    %v5023 = vadd.f32 %v4959, %v1485
    %v5024 = vadd.f32 %v4960, %v1487
    %v5025 = vadd.f32 %v4961, %v1489
    %v5026 = vadd.f32 %v4962, %v1491
    %v5027 = vadd.f32 %v4963, %v1493
    %v5028 = vadd.f32 %v4964, %v1495
    %v5029 = vadd.f32 %v4965, %v1497
    %v5030 = vadd.f32 %v4966, %v1499
    %v5031 = vadd.f32 %v4967, %v1501
    %v5032 = vadd.f32 %v4968, %v1503
    %v5033 = vadd.f32 %v4969, %v1505
    %v5034 = vadd.f32 %v4970, %v1507
    %v5035 = vadd.f32 %v4971, %v1509
    %v5036 = vadd.f32 %v4972, %v1511
    %v5037 = vadd.f32 %v4973, %v1513
    %v5038 = vadd.f32 %v4974, %v1515
    %v5039 = vadd.f32 %v4975, %v1517
    %v5040 = vadd.f32 %v4976, %v1519
    %v5041 = vadd.f32 %v4977, %v1521
    %v5042 = vadd.f32 %v4978, %v1523
    %v5043 = vadd.f32 %v4979, %v1525
    %v5044 = vadd.f32 %v4980, %v1527
    %v5045 = vadd.f32 %v4981, %v1529
    %v5046 = vadd.f32 %v4982, %v1531
    %v5047 = vadd.f32 %v4983, %v1533
    %v5048 = vadd.f32 %v4984, %v1535
    %v5049 = vadd.f32 %v4985, %v1537
    %v5050 = vadd.f32 %v4986, %v1539
    %v5051 = vadd.f32 %v4987, %v1541
    %v5052 = vadd.f32 %v4988, %v1543
    %v5053 = vadd.f32 %v4989, %v1545
    %v5054 = vadd.f32 %v4990, %v1547
    %v5055 = vadd.f32 %v4991, %v1549
    %v5056 = vadd.f32 %v4992, %v1551
    %v5057 = vadd.f32 %v4993, %v1553
    %v5058 = vadd.f32 %v4994, %v1555
    %v5059 = vadd.f32 %v4995, %v1557
    %v5060 = vadd.f32 %v4996, %v1559
    %v5061 = vadd.f32 %v4997, %v1561
    %v5062 = vadd.f32 %v4998, %v1563
    %v5063 = vadd.f32 %v4999, %v1565
    %v5064 = vmax.f32 %v5000, 0.0
    %v5065 = vmax.f32 %v5001, 0.0
    %v5066 = vmax.f32 %v5002, 0.0
    %v5067 = vmax.f32 %v5003, 0.0
    %v5068 = vmax.f32 %v5004, 0.0
    %v5069 = vmax.f32 %v5005, 0.0
    %v5070 = vmax.f32 %v5006, 0.0
    %v5071 = vmax.f32 %v5007, 0.0
    %v5072 = vmax.f32 %v5008, 0.0
    %v5073 = vmax.f32 %v5009, 0.0
    %v5074 = vmax.f32 %v5010, 0.0
    %v5075 = vmax.f32 %v5011, 0.0
    %v5076 = vmax.f32 %v5012, 0.0
    %v5077 = vmax.f32 %v5013, 0.0
    %v5078 = vmax.f32 %v5014, 0.0
    %v5079 = vmax.f32 %v5015, 0.0
    %v5080 = vmax.f32 %v5016, 0.0
    %v5081 = vmax.f32 %v5017, 0.0
    %v5082 = vmax.f32 %v5018, 0.0
    %v5083 = vmax.f32 %v5019, 0.0
    %v5084 = vmax.f32 %v5020, 0.0
    %v5085 = vmax.f32 %v5021, 0.0
    %v5086 = vmax.f32 %v5022, 0.0
    %v5087 = vmax.f32 %v5023, 0.0
    %v5088 = vmax.f32 %v5024, 0.0
    %v5089 = vmax.f32 %v5025, 0.0
    %v5090 = vmax.f32 %v5026, 0.0
    %v5091 = vmax.f32 %v5027, 0.0
    %v5092 = vmax.f32 %v5028, 0.0
    %v5093 = vmax.f32 %v5029, 0.0
    %v5094 = vmax.f32 %v5030, 0.0
    %v5095 = vmax.f32 %v5031, 0.0
    %v5096 = vmax.f32 %v5032, 0.0
    %v5097 = vmax.f32 %v5033, 0.0
    %v5098 = vmax.f32 %v5034, 0.0
    %v5099 = vmax.f32 %v5035, 0.0
    %v5100 = vmax.f32 %v5036, 0.0
    %v5101 = vmax.f32 %v5037, 0.0
    %v5102 = vmax.f32 %v5038, 0.0
    %v5103 = vmax.f32 %v5039, 0.0
    %v5104 = vmax.f32 %v5040, 0.0
    %v5105 = vmax.f32 %v5041, 0.0
    %v5106 = vmax.f32 %v5042, 0.0
    %v5107 = vmax.f32 %v5043, 0.0
    %v5108 = vmax.f32 %v5044, 0.0
    %v5109 = vmax.f32 %v5045, 0.0
    %v5110 = vmax.f32 %v5046, 0.0
    %v5111 = vmax.f32 %v5047, 0.0
    %v5112 = vmax.f32 %v5048, 0.0
    %v5113 = vmax.f32 %v5049, 0.0
    %v5114 = vmax.f32 %v5050, 0.0
    %v5115 = vmax.f32 %v5051, 0.0
    %v5116 = vmax.f32 %v5052, 0.0
    %v5117 = vmax.f32 %v5053, 0.0
    %v5118 = vmax.f32 %v5054, 0.0
    %v5119 = vmax.f32 %v5055, 0.0
    %v5120 = vmax.f32 %v5056, 0.0
    %v5121 = vmax.f32 %v5057, 0.0
    %v5122 = vmax.f32 %v5058, 0.0
    %v5123 = vmax.f32 %v5059, 0.0
    %v5124 = vmax.f32 %v5060, 0.0
    %v5125 = vmax.f32 %v5061, 0.0
    %v5126 = vmax.f32 %v5062, 0.0
    %v5127 = vmax.f32 %v5063, 0.0
    %vm5128 = vcmask 64512
    %5129 = vst.msk [vmem:[%s7] sm:$0xff] %vm5128, %v5064
    %5130 = vst.msk [vmem:[%s7 + $0x8] sm:$0xff] %vm5128, %v5065
    %5131 = vst.msk [vmem:[%s7 + $0x10] sm:$0xff] %vm5128, %v5066
    %5132 = vst.msk [vmem:[%s7 + $0x18] sm:$0xff] %vm5128, %v5067
    %5133 = vst.msk [vmem:[%s7 + $0x20] sm:$0xff] %vm5128, %v5068
    %5134 = vst.msk [vmem:[%s7 + $0x28] sm:$0xff] %vm5128, %v5069
    %5135 = vst.msk [vmem:[%s7 + $0x30] sm:$0xff] %vm5128, %v5070
    %5136 = vst.msk [vmem:[%s7 + $0x38] sm:$0xff] %vm5128, %v5071
    %5137 = vst.msk [vmem:[%s7 + $0x40] sm:$0xff] %vm5128, %v5072
    %5138 = vst.msk [vmem:[%s7 + $0x48] sm:$0xff] %vm5128, %v5073
    %5139 = vst.msk [vmem:[%s7 + $0x50] sm:$0xff] %vm5128, %v5074
    %5140 = vst.msk [vmem:[%s7 + $0x58] sm:$0xff] %vm5128, %v5075
    %5141 = vst.msk [vmem:[%s7 + $0x60] sm:$0xff] %vm5128, %v5076
    %5142 = vst.msk [vmem:[%s7 + $0x68] sm:$0xff] %vm5128, %v5077
    %5143 = vst.msk [vmem:[%s7 + $0x70] sm:$0xff] %vm5128, %v5078
    %5144 = vst.msk [vmem:[%s7 + $0x78] sm:$0xff] %vm5128, %v5079
    %5145 = vst.msk [vmem:[%s7 + $0x80] sm:$0xff] %vm5128, %v5080
    %5146 = vst.msk [vmem:[%s7 + $0x88] sm:$0xff] %vm5128, %v5081
    %5147 = vst.msk [vmem:[%s7 + $0x90] sm:$0xff] %vm5128, %v5082
    %5148 = vst.msk [vmem:[%s7 + $0x98] sm:$0xff] %vm5128, %v5083
    %5149 = vst.msk [vmem:[%s7 + $0xa0] sm:$0xff] %vm5128, %v5084
    %5150 = vst.msk [vmem:[%s7 + $0xa8] sm:$0xff] %vm5128, %v5085
    %5151 = vst.msk [vmem:[%s7 + $0xb0] sm:$0xff] %vm5128, %v5086
    %5152 = vst.msk [vmem:[%s7 + $0xb8] sm:$0xff] %vm5128, %v5087
    %5153 = vst.msk [vmem:[%s7 + $0xc0] sm:$0xff] %vm5128, %v5088
    %5154 = vst.msk [vmem:[%s7 + $0xc8] sm:$0xff] %vm5128, %v5089
    %5155 = vst.msk [vmem:[%s7 + $0xd0] sm:$0xff] %vm5128, %v5090
    %5156 = vst.msk [vmem:[%s7 + $0xd8] sm:$0xff] %vm5128, %v5091
    %5157 = vst.msk [vmem:[%s7 + $0xe0] sm:$0xff] %vm5128, %v5092
    %5158 = vst.msk [vmem:[%s7 + $0xe8] sm:$0xff] %vm5128, %v5093
    %5159 = vst.msk [vmem:[%s7 + $0xf0] sm:$0xff] %vm5128, %v5094
    %5160 = vst.msk [vmem:[%s7 + $0xf8] sm:$0xff] %vm5128, %v5095
    %5161 = vst.msk [vmem:[%s7 + $0x100] sm:$0xff] %vm5128, %v5096
    %5162 = vst.msk [vmem:[%s7 + $0x108] sm:$0xff] %vm5128, %v5097
    %5163 = vst.msk [vmem:[%s7 + $0x110] sm:$0xff] %vm5128, %v5098
    %5164 = vst.msk [vmem:[%s7 + $0x118] sm:$0xff] %vm5128, %v5099
    %5165 = vst.msk [vmem:[%s7 + $0x120] sm:$0xff] %vm5128, %v5100
    %5166 = vst.msk [vmem:[%s7 + $0x128] sm:$0xff] %vm5128, %v5101
    %5167 = vst.msk [vmem:[%s7 + $0x130] sm:$0xff] %vm5128, %v5102
    %5168 = vst.msk [vmem:[%s7 + $0x138] sm:$0xff] %vm5128, %v5103
    %5169 = vst.msk [vmem:[%s7 + $0x140] sm:$0xff] %vm5128, %v5104
    %5170 = vst.msk [vmem:[%s7 + $0x148] sm:$0xff] %vm5128, %v5105
    %5171 = vst.msk [vmem:[%s7 + $0x150] sm:$0xff] %vm5128, %v5106
    %5172 = vst.msk [vmem:[%s7 + $0x158] sm:$0xff] %vm5128, %v5107
    %5173 = vst.msk [vmem:[%s7 + $0x160] sm:$0xff] %vm5128, %v5108
    %5174 = vst.msk [vmem:[%s7 + $0x168] sm:$0xff] %vm5128, %v5109
    %5175 = vst.msk [vmem:[%s7 + $0x170] sm:$0xff] %vm5128, %v5110
    %5176 = vst.msk [vmem:[%s7 + $0x178] sm:$0xff] %vm5128, %v5111
    %5177 = vst.msk [vmem:[%s7 + $0x180] sm:$0xff] %vm5128, %v5112
    %5178 = vst.msk [vmem:[%s7 + $0x188] sm:$0xff] %vm5128, %v5113
    %5179 = vst.msk [vmem:[%s7 + $0x190] sm:$0xff] %vm5128, %v5114
    %5180 = vst.msk [vmem:[%s7 + $0x198] sm:$0xff] %vm5128, %v5115
    %5181 = vst.msk [vmem:[%s7 + $0x1a0] sm:$0xff] %vm5128, %v5116
    %5182 = vst.msk [vmem:[%s7 + $0x1a8] sm:$0xff] %vm5128, %v5117
    %5183 = vst.msk [vmem:[%s7 + $0x1b0] sm:$0xff] %vm5128, %v5118
    %5184 = vst.msk [vmem:[%s7 + $0x1b8] sm:$0xff] %vm5128, %v5119
    %5185 = vst.msk [vmem:[%s7 + $0x1c0] sm:$0xff] %vm5128, %v5120
    %5186 = vst.msk [vmem:[%s7 + $0x1c8] sm:$0xff] %vm5128, %v5121
    %5187 = vst.msk [vmem:[%s7 + $0x1d0] sm:$0xff] %vm5128, %v5122
    %5188 = vst.msk [vmem:[%s7 + $0x1d8] sm:$0xff] %vm5128, %v5123
    %5189 = vst.msk [vmem:[%s7 + $0x1e0] sm:$0xff] %vm5128, %v5124
    %5190 = vst.msk [vmem:[%s7 + $0x1e8] sm:$0xff] %vm5128, %v5125
    %5191 = vst.msk [vmem:[%s7 + $0x1f0] sm:$0xff] %vm5128, %v5126
    %5192 = vst.msk [vmem:[%s7 + $0x1f8] sm:$0xff] %vm5128, %v5127
    // Predicated region
    $region46: #{tpu_custom_call.1} parent=1 // pred_check
      _
    $region47: #{tpu_custom_call.1} parent=1 // pred_check_branch
      %5194 = sbr.rel (0) target = $region49
    $region48: #{tpu_custom_call.1} parent=1 // pred_region
      _
    $region49: #{tpu_custom_call.1} parent=1 // pred_fallthru
      _
    // Predicated region
    $region50: #{tpu_custom_call.1} parent=1 // pred_check
      _
    $region51: #{tpu_custom_call.1} parent=1 // pred_check_branch
      %5196 = sbr.rel (0) target = $region53
    $region52: #{tpu_custom_call.1} parent=1 // pred_region
      _
    $region53: #{tpu_custom_call.1} parent=1 // pred_fallthru
      _
    %5197 = vsyncpa [#allocation4], 1
    %5198 = vsyncpa [#allocation6], 1
    %5199 = vsyncpa [#allocation9], 1

</llo_original>
